<compile_context>
chip_gen: v6e
topology: v6e:2x2x1
jax: 0.10.0
libtpu: 0.0.40
codegen_flags: <defaults>
</compile_context>

<pallas_src>
import jax
import jax.numpy as jnp
from jax.experimental import pallas as pl
from jax.experimental.pallas import tpu as pltpu

# ----------------------------- configuration -------------------------------
VOCAB      = 50     # vocab.get_tokens_length()
EMBED_DIM  = 16     # config.embed_dim
HIDDEN     = 32     # config.blstm_dim == hidden_size
NUM_LAYERS = 2      # implied: hidden2out in_dim == 2*num_dir*H
NUM_DIR    = 2      # bidirectional
OUT_DIM    = 2      # config.out_dim
BATCH      = 2
SEQ        = 8

H    = HIDDEN
H2   = 2 * H               # 64  : fused hidden [h_fwd | h_bwd]
RZ   = 4 * H               # 128 : r/z columns for both directions = one f32 vreg
G    = 6 * H               # 192 : all gate columns
T    = SEQ
B_EFF     = 3 * BATCH                       # three branches stacked on batch
B_EFF_PAD = ((B_EFF + 7) // 8) * 8          # pad to a full sublane tile (=8)
BE   = B_EFF_PAD
VPAD = 64                  # vocab padded for the one-hot gather (>= VOCAB, multiple of 8)

# ----- GRU/bias slab row offsets ([W_SLAB_ROWS, 192] f32) -----
OFF_P0F  = 0               # emb @ W_ih0 (+ fused input bias), fwd-gate columns only
OFF_P0B  = VPAD            # same, bwd-gate columns only (paired with reversed-time one-hot)
OFF_WHH0 = 2 * VPAD        # 128: layer-0 hidden weights, block form [2H, 6H]
OFF_A1   = OFF_WHH0 + H2   # 192: layer-1 input weights (same-step term)
OFF_B1   = OFF_A1 + H2     # 256: layer-1 input weights (time-mirrored term)
OFF_WHH1 = OFF_B1 + H2     # 320
OFF_BIAS = OFF_WHH1 + H2   # 384: 8 bias rows (bhn0, gib1, bhn1, b_h1, b_h2, b_ln, b_fc, 0)
W_SLAB_ROWS = OFF_BIAS + 8  # 392

# ----- head slab row offsets ([H_SLAB_ROWS, 32] f32) -----
OFF_W1A = 0                # hidden2out Linear-1, rows for [l0_f | l0_b]
OFF_W1B = H2               # hidden2out Linear-1, rows for [l1_f | l1_b]
OFF_W2  = 2 * H2           # 128: hidden2out Linear-2
OFF_WL0 = OFF_W2 + H       # 160: Linear (3H->H), branch-1 rows
OFF_WL1 = OFF_WL0 + H      # 192: branch-2 rows
OFF_WL2 = OFF_WL1 + H      # 224: branch-3 rows
OFF_WFC = OFF_WL2 + H      # 256: fc (H->out, zero-padded to 32 cols)
H_SLAB_ROWS = OFF_WFC + H  # 288


def _vmem():
    return pl.BlockSpec(memory_space=pltpu.MemorySpace.VMEM)


# ------------------------------ Pallas kernel -------------------------------
def fused_rnn_kernel(ids_ref, w_ref, hd_ref, out_ref):
    """Whole RnnNet forward for all 3 branches stacked on the (padded) batch axis.

    ids_ref: [T*BE, 2] int32  column 0 = token id at time t (row = t*BE + b),
                              column 1 = token id at time T-1-t (reversed time order).
    w_ref:   [392, 192] f32   GRU slab (P0F, P0B, WHH0, A1, B1, WHH1, bias rows).
    hd_ref:  [288, 32]  f32   head slab (h2o W1 split, h2o W2, Linear split x3, fc).
    out_ref: [B, OUT_DIM]
    """
    B = out_ref.shape[0]

    # ---- biases: single-row reads, hoisted & pre-broadcast (JAX does not CSE bcasts) ----
    bhn0 = jnp.broadcast_to(w_ref[OFF_BIAS + 0:OFF_BIAS + 1, 0:H2], (BE, H2))
    gib1 = jnp.broadcast_to(w_ref[OFF_BIAS + 1:OFF_BIAS + 2, :], (BE, G))
    bhn1 = jnp.broadcast_to(w_ref[OFF_BIAS + 2:OFF_BIAS + 3, 0:H2], (BE, H2))
    b_h1 = w_ref[OFF_BIAS + 3:OFF_BIAS + 4, 0:H]
    b_h2 = w_ref[OFF_BIAS + 4:OFF_BIAS + 5, 0:H]
    b_ln = w_ref[OFF_BIAS + 5:OFF_BIAS + 6, 0:H]
    b_fc = w_ref[OFF_BIAS + 6:OFF_BIAS + 7, 0:H]

    # ---- layer-0 hoisted input projection via an in-kernel one-hot MXU gather ----
    # gi0 row block s already holds the direction-merged gates: fwd columns for time s,
    # bwd columns for time T-1-s (P0F/P0B are column-masked, ids col 1 is time-reversed).
    ids  = ids_ref[...]                                              # [T*BE, 2] int32
    lane = jax.lax.broadcasted_iota(jnp.int32, (T * BE, VPAD), 1)
    oh_f = (ids[:, 0:1] == lane).astype(jnp.float32)                 # forward-time one-hot
    oh_b = (ids[:, 1:2] == lane).astype(jnp.float32)                 # reversed-time one-hot
    gi0 = (jnp.dot(oh_f, w_ref[OFF_P0F:OFF_P0F + VPAD, :],
                   preferred_element_type=jnp.float32)
           + jnp.dot(oh_b, w_ref[OFF_P0B:OFF_P0B + VPAD, :],
                     preferred_element_type=jnp.float32))            # [T*BE, G]

    whh0 = w_ref[OFF_WHH0:OFF_WHH0 + H2, :]
    whh1 = w_ref[OFF_WHH1:OFF_WHH1 + H2, :]
    a1   = w_ref[OFF_A1:OFF_A1 + H2, :]
    b1   = w_ref[OFF_B1:OFF_B1 + H2, :]

    def gru_layer(gi_fn, whh, bhn):
        # Bidirectional GRU layer with both directions fused in the lane axis.
        # Per step: 1 MXU matmul, 1 [8,128] sigmoid, 1 [8,64] tanh, a handful of
        # full/aligned VPU ops; h stays vreg-resident as [h_fwd | h_bwd].
        h  = jnp.zeros((BE, H2), jnp.float32)
        hs = []
        for s in range(T):                               # static unroll, T = 8
            gi = gi_fn(s)                                # merged gates, independent of h
            gh = jnp.dot(h, whh, preferred_element_type=jnp.float32)       # [BE, G]
            rz = jax.nn.sigmoid(gi[:, 0:RZ] + gh[:, 0:RZ])   # r & z, both dirs, one vreg
            r  = rz[:, 0:H2]
            z  = rz[:, H2:RZ]
            n  = jnp.tanh(gi[:, RZ:G] + r * (gh[:, RZ:G] + bhn))
            h  = (1.0 - z) * n + z * h                   # [h_fwd | h_bwd], no concat
            hs.append(h)
        return hs, h

    # ------------------ layer 0 ------------------
    hs0, h0 = gru_layer(lambda s: gi0[s * BE:(s + 1) * BE, :], whh0, bhn0)

    # ------------------ layer 1 ------------------
    def gi1_fn(s):
        # Layer-1 merged input projection straight from the vreg-resident layer-0 step
        # outputs.  A1/B1 carry zero blocks so y0 never needs to be assembled: the fwd
        # gates read y0[s], the bwd gates read y0[T-1-s], with no lane slicing/concat
        # and no y0 scratch or masked stores.
        return (jnp.dot(hs0[s], a1, preferred_element_type=jnp.float32)
                + jnp.dot(hs0[T - 1 - s], b1, preferred_element_type=jnp.float32)
                + gib1)

    _, h1 = gru_layer(gi1_fn, whh1, bhn1)

    # ------------------ dense heads (dropouts identity in eval) ------------------
    # torch: hidden.permute(1,0,2).view(B,-1) == [l0_f | l0_b | l1_f | l1_b]; done as
    # two row-split matmuls instead of a lane concat.
    hh = jax.nn.sigmoid(
        jnp.dot(h0, hd_ref[OFF_W1A:OFF_W1A + H2, :], preferred_element_type=jnp.float32)
        + jnp.dot(h1, hd_ref[OFF_W1B:OFF_W1B + H2, :], preferred_element_type=jnp.float32)
        + b_h1)
    hh = jax.nn.sigmoid(
        jnp.dot(hh, hd_ref[OFF_W2:OFF_W2 + H, :], preferred_element_type=jnp.float32)
        + b_h2)
    # branch un-stacking (rows [0:B]=inp1, [B:2B]=inp2, [2B:3B]=inp3) as three
    # accumulated matmuls against the row-split Linear weight -> no sublane->lane shuffle.
    lr = jax.nn.sigmoid(
        jnp.dot(hh[0 * B:1 * B], hd_ref[OFF_WL0:OFF_WL0 + H, :],
                preferred_element_type=jnp.float32)
        + jnp.dot(hh[1 * B:2 * B], hd_ref[OFF_WL1:OFF_WL1 + H, :],
                  preferred_element_type=jnp.float32)
        + jnp.dot(hh[2 * B:3 * B], hd_ref[OFF_WL2:OFF_WL2 + H, :],
                  preferred_element_type=jnp.float32)
        + b_ln)
    out = jax.nn.sigmoid(
        jnp.dot(lr, hd_ref[OFF_WFC:OFF_WFC + H, :], preferred_element_type=jnp.float32)
        + b_fc)
    out_ref[...] = out[:, 0:out_ref.shape[1]].astype(out_ref.dtype)


# --------------------------- parameter preparation --------------------------
def prepare_fused_params(p):
    """Fold torch-layout params into the two slabs the kernel consumes.

    Fused gate column layout (width 6H): [r_f r_b | z_f z_b | n_f n_b].
    """
    f32 = jnp.float32
    hp = jax.lax.Precision.HIGHEST   # host-side prep only; keeps the lookup table exact

    def fuse_cols(wf, wb):           # [Din,3H]x2 (cols r|z|n) -> [Din,6H] fused layout
        blocks = []
        for g in range(3):
            blocks += [wf[:, g * H:(g + 1) * H], wb[:, g * H:(g + 1) * H]]
        return jnp.concatenate(blocks, axis=1)

    def fused_gi_bias(bif, bhf, bib, bhb):   # r/z fold b_ih+b_hh; n keeps b_ih only
        blocks = []
        for g in range(3):
            add_h = 1.0 if g < 2 else 0.0
            blocks += [bif[g * H:(g + 1) * H] + add_h * bhf[g * H:(g + 1) * H],
                       bib[g * H:(g + 1) * H] + add_h * bhb[g * H:(g + 1) * H]]
        return jnp.concatenate(blocks)[None, :]          # [1, 6H]

    def fused_whh(whf, whb):                 # [2H, 6H] block matrix (no cross-dir terms)
        whh = jnp.zeros((H2, G), f32)
        for g in range(3):
            whh = whh.at[0:H, (2 * g) * H:(2 * g + 1) * H].set(whf[:, g * H:(g + 1) * H])
            whh = whh.at[H:H2, (2 * g + 1) * H:(2 * g + 2) * H].set(whb[:, g * H:(g + 1) * H])
        return whh

    col_is_fwd = ((jnp.arange(G) // H) % 2 == 0)[None, :]
    row_is_top = (jnp.arange(H2) < H)[:, None]

    # ----- layer 0: fold embedding + input projection into a per-token table -----
    wih0f, whh0f, bih0f, bhh0f = p["gru"][0]["fwd"]
    wih0b, whh0b, bih0b, bhh0b = p["gru"][0]["bwd"]
    emb_pad = jnp.zeros((VPAD, EMBED_DIM), f32).at[:VOCAB].set(p["embedding"])
    p0 = (jnp.dot(emb_pad, fuse_cols(wih0f, wih0b), precision=hp)
          + fused_gi_bias(bih0f, bhh0f, bih0b, bhh0b))             # [VPAD, 6H]
    p0f = jnp.where(col_is_fwd, p0, 0.0)
    p0b = jnp.where(col_is_fwd, 0.0, p0)
    whh0 = fused_whh(whh0f, whh0b)
    bhn0 = jnp.concatenate([bhh0f[2 * H:], bhh0b[2 * H:]])[None, :]   # [1, 2H] (n-gate b_hh)

    # ----- layer 1: split the input projection into same-step / mirrored-step terms -----
    wih1f, whh1f, bih1f, bhh1f = p["gru"][1]["fwd"]
    wih1b, whh1b, bih1b, bhh1b = p["gru"][1]["bwd"]
    w1 = fuse_cols(wih1f, wih1b)                                      # [2H, 6H]
    w1_fcols = jnp.where(col_is_fwd, w1, 0.0)
    w1_bcols = jnp.where(col_is_fwd, 0.0, w1)
    a1 = jnp.where(row_is_top, w1_fcols, w1_bcols)   # consumes h_step[s]
    b1 = jnp.where(row_is_top, w1_bcols, w1_fcols)   # consumes h_step[T-1-s]
    gib1 = fused_gi_bias(bih1f, bhh1f, bih1b, bhh1b)
    whh1 = fused_whh(whh1f, whh1b)
    bhn1 = jnp.concatenate([bhh1f[2 * H:], bhh1b[2 * H:]])[None, :]

    # ----- bias rows block [8, 6H] appended to the GRU slab -----
    def row(v):
        r = jnp.zeros((1, G), f32)
        return r.at[:, :v.shape[1]].set(v)

    bias_block = jnp.concatenate(
        [row(bhn0), row(gib1), row(bhn1),
         row(p["h2o_b1"]), row(p["h2o_b2"]), row(p["lin_b"]), row(p["fc_b"]),
         jnp.zeros((1, G), f32)], axis=0)                             # [8, 192]

    w_slab = jnp.concatenate([p0f, p0b, whh0, a1, b1, whh1, bias_block], axis=0)
    assert w_slab.shape == (W_SLAB_ROWS, G), w_slab.shape

    # ----- head slab (width 32) -----
    fc_pad = jnp.zeros((H, H), f32).at[:, :OUT_DIM].set(p["fc_w"])
    h_slab = jnp.concatenate(
        [p["h2o_w1"][0:H2], p["h2o_w1"][H2:2 * H2],
         p["h2o_w2"],
         p["lin_w"][0:H], p["lin_w"][H:2 * H], p["lin_w"][2 * H:3 * H],
         fc_pad], axis=0)
    assert h_slab.shape == (H_SLAB_ROWS, H), h_slab.shape

    return {"w_slab": w_slab, "h_slab": h_slab}


# ------------------------------ full forward --------------------------------
def rnn_net_forward(fused, inp1, inp2, inp3):
    B = inp1.shape[0]
    # Tiny int-only glue (fused by XLA into one small op): stack branches on batch,
    # pad to a sublane tile, and lay out forward-time / reversed-time id columns.
    ids = jnp.concatenate([inp1, inp2, inp3], axis=0).astype(jnp.int32)     # [3B, T]
    ids = jnp.pad(ids, ((0, B_EFF_PAD - ids.shape[0]), (0, 0)))             # pad rows -> token 0
    ids_f = ids.T.reshape(SEQ * B_EFF_PAD, 1)           # row = t*BE + b
    ids_b = ids.T[::-1].reshape(SEQ * B_EFF_PAD, 1)     # row block s holds time T-1-s
    ids2 = jnp.concatenate([ids_f, ids_b], axis=1)      # [T*BE, 2]

    return pl.pallas_call(
        fused_rnn_kernel,
        out_shape=jax.ShapeDtypeStruct((B, OUT_DIM), jnp.float32),
        in_specs=[_vmem(), _vmem(), _vmem()],
        out_specs=_vmem(),
    )(ids2, fused["w_slab"], fused["h_slab"])


# ------------------------------ parameter init ------------------------------
def init_params(key):
    keys = iter(jax.random.split(key, 64))

    def uni(shape, bound):
        return jax.random.uniform(next(keys), shape, jnp.float32, -bound, bound)

    emb = jax.random.normal(next(keys), (VOCAB, EMBED_DIM), jnp.float32)
    emb = emb.at[0].set(0.0)                                  # padding_idx = 0

    kh = 1.0 / (HIDDEN ** 0.5)
    gru = []
    for layer in range(NUM_LAYERS):
        din = EMBED_DIM if layer == 0 else NUM_DIR * HIDDEN
        layer_p = {}
        for d in ("fwd", "bwd"):
            layer_p[d] = (
                uni((din, 3 * HIDDEN), kh),      # W_ih^T  (in, 3H), cols [r|z|n]
                uni((HIDDEN, 3 * HIDDEN), kh),   # W_hh^T
                uni((3 * HIDDEN,), kh),          # b_ih
                uni((3 * HIDDEN,), kh),          # b_hh
            )
        gru.append(layer_p)

    h2o_in = 2 * NUM_DIR * HIDDEN
    kin = 1.0 / (h2o_in ** 0.5)
    k3h = 1.0 / ((3 * HIDDEN) ** 0.5)
    return {
        "embedding": emb,
        "gru": gru,
        "h2o_w1": uni((h2o_in, HIDDEN), kin), "h2o_b1": uni((1, HIDDEN), kin),
        "h2o_w2": uni((HIDDEN, HIDDEN), kh),  "h2o_b2": uni((1, HIDDEN), kh),
        "lin_w": uni((3 * HIDDEN, HIDDEN), k3h), "lin_b": uni((1, HIDDEN), k3h),
        "fc_w": uni((HIDDEN, OUT_DIM), kh),   "fc_b": uni((1, OUT_DIM), kh),
    }


# --------------------------- pure-JAX reference -----------------------------
def _ref_gru_dir(x_bte, p, reverse):
    wih, whh, bih, bhh = p
    Bb, Tt, _ = x_bte.shape
    h = jnp.zeros((Bb, HIDDEN), jnp.float32)
    ys = [None] * Tt
    order = range(Tt - 1, -1, -1) if reverse else range(Tt)
    for t in order:
        gi = x_bte[:, t, :] @ wih + bih
        gh = h @ whh + bhh
        r = jax.nn.sigmoid(gi[:, :H] + gh[:, :H])
        z = jax.nn.sigmoid(gi[:, H:2 * H] + gh[:, H:2 * H])
        n = jnp.tanh(gi[:, 2 * H:] + r * gh[:, 2 * H:])
        h = (1.0 - z) * n + z * h
        ys[t] = h
    return jnp.stack(ys, axis=1), h


def rnn_net_reference(params, inp1, inp2, inp3):
    emb = params["embedding"]

    def branch(inp):
        x = jnp.take(emb, inp.astype(jnp.int32), axis=0)
        hs, layer_in = [], x
        for layer in range(NUM_LAYERS):
            yf, hf = _ref_gru_dir(layer_in, params["gru"][layer]["fwd"], False)
            yb, hb = _ref_gru_dir(layer_in, params["gru"][layer]["bwd"], True)
            hs += [hf, hb]
            layer_in = jnp.concatenate([yf, yb], axis=-1)
        hid = jnp.concatenate(hs, axis=-1)
        hh = jax.nn.sigmoid(hid @ params["h2o_w1"] + params["h2o_b1"])
        return jax.nn.sigmoid(hh @ params["h2o_w2"] + params["h2o_b2"])

    lg = jnp.concatenate([branch(inp1), branch(inp2), branch(inp3)], axis=1)
    lr = jax.nn.sigmoid(lg @ params["lin_w"] + params["lin_b"])
    return jax.nn.sigmoid(lr @ params["fc_w"] + params["fc_b"])


# ----------------------------------- main -----------------------------------
if __name__ == "__main__":
    key = jax.random.PRNGKey(0)
    kp, k1, k2, k3 = jax.random.split(key, 4)
    params = init_params(kp)
    fused = prepare_fused_params(params)

    inp1 = jax.random.randint(k1, (BATCH, SEQ), 0, VOCAB, dtype=jnp.int32)
    inp2 = jax.random.randint(k2, (BATCH, SEQ), 0, VOCAB, dtype=jnp.int32)
    inp3 = jax.random.randint(k3, (BATCH, SEQ), 0, VOCAB, dtype=jnp.int32)

    out = jax.jit(rnn_net_forward)(fused, inp1, inp2, inp3)
    out = jax.block_until_ready(out)

    assert out.shape == (BATCH, OUT_DIM), out.shape
    assert bool(jnp.all(jnp.isfinite(out)))

    with jax.default_matmul_precision("highest"):
        ref = jax.jit(rnn_net_reference)(params, inp1, inp2, inp3)
    ref = jax.block_until_ready(ref)
    assert bool(jnp.allclose(out, ref, atol=5e-3, rtol=0.0)), \
        float(jnp.max(jnp.abs(out - ref)))

    print("KERNEL_OK")
</pallas_src>

<mosaic_0001>
module attributes {stable_mosaic.version = 11 : i64} {
  func.func @fused_rnn_kernel(%arg0: memref<64x2xi32, #tpu.memory_space<vmem>>, %arg1: memref<392x192xf32, #tpu.memory_space<vmem>>, %arg2: memref<288x32xf32, #tpu.memory_space<vmem>>, %arg3: memref<2x2xf32, #tpu.memory_space<vmem>>) attributes {dimension_semantics = [], scalar_prefetch = 0 : i64, scratch_operands = 0 : i64, tpu.core_type = #tpu.core_type<tc>} {
    %c384 = arith.constant 384 : index
    %c0 = arith.constant 0 : index
    %0 = vector.load %arg1[%c384, %c0] : memref<392x192xf32, #tpu.memory_space<vmem>>, vector<1x64xf32>
    %1 = vector.shape_cast %0 : vector<1x64xf32> to vector<1x64xf32>
    %2 = vector.broadcast %1 : vector<1x64xf32> to vector<8x64xf32>
    %c385 = arith.constant 385 : index
    %c0_0 = arith.constant 0 : index
    %3 = vector.load %arg1[%c385, %c0_0] : memref<392x192xf32, #tpu.memory_space<vmem>>, vector<1x192xf32>
    %4 = vector.shape_cast %3 : vector<1x192xf32> to vector<1x192xf32>
    %5 = vector.broadcast %4 : vector<1x192xf32> to vector<8x192xf32>
    %c386 = arith.constant 386 : index
    %c0_1 = arith.constant 0 : index
    %6 = vector.load %arg1[%c386, %c0_1] : memref<392x192xf32, #tpu.memory_space<vmem>>, vector<1x64xf32>
    %7 = vector.shape_cast %6 : vector<1x64xf32> to vector<1x64xf32>
    %8 = vector.broadcast %7 : vector<1x64xf32> to vector<8x64xf32>
    %c387 = arith.constant 387 : index
    %c0_2 = arith.constant 0 : index
    %9 = vector.load %arg1[%c387, %c0_2] : memref<392x192xf32, #tpu.memory_space<vmem>>, vector<1x32xf32>
    %c388 = arith.constant 388 : index
    %c0_3 = arith.constant 0 : index
    %10 = vector.load %arg1[%c388, %c0_3] : memref<392x192xf32, #tpu.memory_space<vmem>>, vector<1x32xf32>
    %c389 = arith.constant 389 : index
    %c0_4 = arith.constant 0 : index
    %11 = vector.load %arg1[%c389, %c0_4] : memref<392x192xf32, #tpu.memory_space<vmem>>, vector<1x32xf32>
    %c390 = arith.constant 390 : index
    %c0_5 = arith.constant 0 : index
    %12 = vector.load %arg1[%c390, %c0_5] : memref<392x192xf32, #tpu.memory_space<vmem>>, vector<1x32xf32>
    %c0_6 = arith.constant 0 : index
    %c0_7 = arith.constant 0 : index
    %13 = vector.load %arg0[%c0_6, %c0_7] : memref<64x2xi32, #tpu.memory_space<vmem>>, vector<64x2xi32>
    %14 = tpu.iota {dimensions = array<i32: 1>} : vector<64x64xi32>
    %15 = vector.extract_strided_slice %13 {offsets = [0, 0], sizes = [64, 1], strides = [1, 1]} : vector<64x2xi32> to vector<64x1xi32>
    %16 = vector.broadcast %15 : vector<64x1xi32> to vector<64x64xi32>
    %17 = arith.cmpi eq, %16, %14 : vector<64x64xi32>
    %18 = arith.extui %17 : vector<64x64xi1> to vector<64x64xi32>
    %19 = arith.sitofp %18 : vector<64x64xi32> to vector<64x64xf32>
    %20 = vector.extract_strided_slice %13 {offsets = [0, 1], sizes = [64, 1], strides = [1, 1]} : vector<64x2xi32> to vector<64x1xi32>
    %21 = vector.broadcast %20 : vector<64x1xi32> to vector<64x64xi32>
    %22 = arith.cmpi eq, %21, %14 : vector<64x64xi32>
    %23 = arith.extui %22 : vector<64x64xi1> to vector<64x64xi32>
    %24 = arith.sitofp %23 : vector<64x64xi32> to vector<64x64xf32>
    %c0_8 = arith.constant 0 : index
    %c0_9 = arith.constant 0 : index
    %25 = vector.load %arg1[%c0_8, %c0_9] : memref<392x192xf32, #tpu.memory_space<vmem>>, vector<64x192xf32>
    %cst = arith.constant dense<0.000000e+00> : vector<64x192xf32>
    %26 = tpu.matmul %19, %25, %cst {dimension_numbers = #tpu.dot_dimension_numbers<[1], [0], [0], [1], [0, 0, 1, 1], [], []>} : vector<64x64xf32>, vector<64x192xf32>, vector<64x192xf32> -> vector<64x192xf32>
    %c64 = arith.constant 64 : index
    %c0_10 = arith.constant 0 : index
    %27 = vector.load %arg1[%c64, %c0_10] : memref<392x192xf32, #tpu.memory_space<vmem>>, vector<64x192xf32>
    %cst_11 = arith.constant dense<0.000000e+00> : vector<64x192xf32>
    %28 = tpu.matmul %24, %27, %cst_11 {dimension_numbers = #tpu.dot_dimension_numbers<[1], [0], [0], [1], [0, 0, 1, 1], [], []>} : vector<64x64xf32>, vector<64x192xf32>, vector<64x192xf32> -> vector<64x192xf32>
    %29 = arith.addf %26, %28 : vector<64x192xf32>
    %c128 = arith.constant 128 : index
    %c0_12 = arith.constant 0 : index
    %30 = vector.load %arg1[%c128, %c0_12] : memref<392x192xf32, #tpu.memory_space<vmem>>, vector<64x192xf32>
    %c320 = arith.constant 320 : index
    %c0_13 = arith.constant 0 : index
    %31 = vector.load %arg1[%c320, %c0_13] : memref<392x192xf32, #tpu.memory_space<vmem>>, vector<64x192xf32>
    %c192 = arith.constant 192 : index
    %c0_14 = arith.constant 0 : index
    %32 = vector.load %arg1[%c192, %c0_14] : memref<392x192xf32, #tpu.memory_space<vmem>>, vector<64x192xf32>
    %c256 = arith.constant 256 : index
    %c0_15 = arith.constant 0 : index
    %33 = vector.load %arg1[%c256, %c0_15] : memref<392x192xf32, #tpu.memory_space<vmem>>, vector<64x192xf32>
    %cst_16 = arith.constant 0.000000e+00 : f32
    %34 = vector.broadcast %cst_16 : f32 to vector<8x64xf32>
    %35 = vector.extract_strided_slice %29 {offsets = [0, 0], sizes = [8, 192], strides = [1, 1]} : vector<64x192xf32> to vector<8x192xf32>
    %cst_17 = arith.constant dense<0.000000e+00> : vector<8x192xf32>
    %36 = tpu.matmul %34, %30, %cst_17 {dimension_numbers = #tpu.dot_dimension_numbers<[1], [0], [0], [1], [0, 0, 1, 1], [], []>} : vector<8x64xf32>, vector<64x192xf32>, vector<8x192xf32> -> vector<8x192xf32>
    %37 = vector.extract_strided_slice %35 {offsets = [0, 0], sizes = [8, 128], strides = [1, 1]} : vector<8x192xf32> to vector<8x128xf32>
    %38 = vector.extract_strided_slice %36 {offsets = [0, 0], sizes = [8, 128], strides = [1, 1]} : vector<8x192xf32> to vector<8x128xf32>
    %39 = arith.addf %37, %38 : vector<8x128xf32>
    %40 = arith.negf %39 : vector<8x128xf32>
    %41 = math.exp %40 : vector<8x128xf32>
    %cst_18 = arith.constant 1.000000e+00 : f32
    %42 = vector.broadcast %cst_18 : f32 to vector<8x128xf32>
    %43 = arith.addf %42, %41 : vector<8x128xf32>
    %44 = arith.divf %42, %43 : vector<8x128xf32>
    %45 = vector.extract_strided_slice %44 {offsets = [0, 0], sizes = [8, 64], strides = [1, 1]} : vector<8x128xf32> to vector<8x64xf32>
    %46 = vector.extract_strided_slice %44 {offsets = [0, 64], sizes = [8, 64], strides = [1, 1]} : vector<8x128xf32> to vector<8x64xf32>
    %47 = vector.extract_strided_slice %35 {offsets = [0, 128], sizes = [8, 64], strides = [1, 1]} : vector<8x192xf32> to vector<8x64xf32>
    %48 = vector.extract_strided_slice %36 {offsets = [0, 128], sizes = [8, 64], strides = [1, 1]} : vector<8x192xf32> to vector<8x64xf32>
    %49 = arith.addf %48, %2 : vector<8x64xf32>
    %50 = arith.mulf %45, %49 : vector<8x64xf32>
    %51 = arith.addf %47, %50 : vector<8x64xf32>
    %52 = math.tanh %51 : vector<8x64xf32>
    %cst_19 = arith.constant 1.000000e+00 : f32
    %53 = vector.broadcast %cst_19 : f32 to vector<8x64xf32>
    %54 = arith.subf %53, %46 : vector<8x64xf32>
    %55 = arith.mulf %54, %52 : vector<8x64xf32>
    %56 = arith.mulf %46, %34 : vector<8x64xf32>
    %57 = arith.addf %55, %56 : vector<8x64xf32>
    %58 = vector.extract_strided_slice %29 {offsets = [8, 0], sizes = [8, 192], strides = [1, 1]} : vector<64x192xf32> to vector<8x192xf32>
    %cst_20 = arith.constant dense<0.000000e+00> : vector<8x192xf32>
    %59 = tpu.matmul %57, %30, %cst_20 {dimension_numbers = #tpu.dot_dimension_numbers<[1], [0], [0], [1], [0, 0, 1, 1], [], []>} : vector<8x64xf32>, vector<64x192xf32>, vector<8x192xf32> -> vector<8x192xf32>
    %60 = vector.extract_strided_slice %58 {offsets = [0, 0], sizes = [8, 128], strides = [1, 1]} : vector<8x192xf32> to vector<8x128xf32>
    %61 = vector.extract_strided_slice %59 {offsets = [0, 0], sizes = [8, 128], strides = [1, 1]} : vector<8x192xf32> to vector<8x128xf32>
    %62 = arith.addf %60, %61 : vector<8x128xf32>
    %63 = arith.negf %62 : vector<8x128xf32>
    %64 = math.exp %63 : vector<8x128xf32>
    %cst_21 = arith.constant 1.000000e+00 : f32
    %65 = vector.broadcast %cst_21 : f32 to vector<8x128xf32>
    %66 = arith.addf %65, %64 : vector<8x128xf32>
    %67 = arith.divf %65, %66 : vector<8x128xf32>
    %68 = vector.extract_strided_slice %67 {offsets = [0, 0], sizes = [8, 64], strides = [1, 1]} : vector<8x128xf32> to vector<8x64xf32>
    %69 = vector.extract_strided_slice %67 {offsets = [0, 64], sizes = [8, 64], strides = [1, 1]} : vector<8x128xf32> to vector<8x64xf32>
    %70 = vector.extract_strided_slice %58 {offsets = [0, 128], sizes = [8, 64], strides = [1, 1]} : vector<8x192xf32> to vector<8x64xf32>
    %71 = vector.extract_strided_slice %59 {offsets = [0, 128], sizes = [8, 64], strides = [1, 1]} : vector<8x192xf32> to vector<8x64xf32>
    %72 = arith.addf %71, %2 : vector<8x64xf32>
    %73 = arith.mulf %68, %72 : vector<8x64xf32>
    %74 = arith.addf %70, %73 : vector<8x64xf32>
    %75 = math.tanh %74 : vector<8x64xf32>
    %cst_22 = arith.constant 1.000000e+00 : f32
    %76 = vector.broadcast %cst_22 : f32 to vector<8x64xf32>
    %77 = arith.subf %76, %69 : vector<8x64xf32>
    %78 = arith.mulf %77, %75 : vector<8x64xf32>
    %79 = arith.mulf %69, %57 : vector<8x64xf32>
    %80 = arith.addf %78, %79 : vector<8x64xf32>
    %81 = vector.extract_strided_slice %29 {offsets = [16, 0], sizes = [8, 192], strides = [1, 1]} : vector<64x192xf32> to vector<8x192xf32>
    %cst_23 = arith.constant dense<0.000000e+00> : vector<8x192xf32>
    %82 = tpu.matmul %80, %30, %cst_23 {dimension_numbers = #tpu.dot_dimension_numbers<[1], [0], [0], [1], [0, 0, 1, 1], [], []>} : vector<8x64xf32>, vector<64x192xf32>, vector<8x192xf32> -> vector<8x192xf32>
    %83 = vector.extract_strided_slice %81 {offsets = [0, 0], sizes = [8, 128], strides = [1, 1]} : vector<8x192xf32> to vector<8x128xf32>
    %84 = vector.extract_strided_slice %82 {offsets = [0, 0], sizes = [8, 128], strides = [1, 1]} : vector<8x192xf32> to vector<8x128xf32>
    %85 = arith.addf %83, %84 : vector<8x128xf32>
    %86 = arith.negf %85 : vector<8x128xf32>
    %87 = math.exp %86 : vector<8x128xf32>
    %cst_24 = arith.constant 1.000000e+00 : f32
    %88 = vector.broadcast %cst_24 : f32 to vector<8x128xf32>
    %89 = arith.addf %88, %87 : vector<8x128xf32>
    %90 = arith.divf %88, %89 : vector<8x128xf32>
    %91 = vector.extract_strided_slice %90 {offsets = [0, 0], sizes = [8, 64], strides = [1, 1]} : vector<8x128xf32> to vector<8x64xf32>
    %92 = vector.extract_strided_slice %90 {offsets = [0, 64], sizes = [8, 64], strides = [1, 1]} : vector<8x128xf32> to vector<8x64xf32>
    %93 = vector.extract_strided_slice %81 {offsets = [0, 128], sizes = [8, 64], strides = [1, 1]} : vector<8x192xf32> to vector<8x64xf32>
    %94 = vector.extract_strided_slice %82 {offsets = [0, 128], sizes = [8, 64], strides = [1, 1]} : vector<8x192xf32> to vector<8x64xf32>
    %95 = arith.addf %94, %2 : vector<8x64xf32>
    %96 = arith.mulf %91, %95 : vector<8x64xf32>
    %97 = arith.addf %93, %96 : vector<8x64xf32>
    %98 = math.tanh %97 : vector<8x64xf32>
    %cst_25 = arith.constant 1.000000e+00 : f32
    %99 = vector.broadcast %cst_25 : f32 to vector<8x64xf32>
    %100 = arith.subf %99, %92 : vector<8x64xf32>
    %101 = arith.mulf %100, %98 : vector<8x64xf32>
    %102 = arith.mulf %92, %80 : vector<8x64xf32>
    %103 = arith.addf %101, %102 : vector<8x64xf32>
    %104 = vector.extract_strided_slice %29 {offsets = [24, 0], sizes = [8, 192], strides = [1, 1]} : vector<64x192xf32> to vector<8x192xf32>
    %cst_26 = arith.constant dense<0.000000e+00> : vector<8x192xf32>
    %105 = tpu.matmul %103, %30, %cst_26 {dimension_numbers = #tpu.dot_dimension_numbers<[1], [0], [0], [1], [0, 0, 1, 1], [], []>} : vector<8x64xf32>, vector<64x192xf32>, vector<8x192xf32> -> vector<8x192xf32>
    %106 = vector.extract_strided_slice %104 {offsets = [0, 0], sizes = [8, 128], strides = [1, 1]} : vector<8x192xf32> to vector<8x128xf32>
    %107 = vector.extract_strided_slice %105 {offsets = [0, 0], sizes = [8, 128], strides = [1, 1]} : vector<8x192xf32> to vector<8x128xf32>
    %108 = arith.addf %106, %107 : vector<8x128xf32>
    %109 = arith.negf %108 : vector<8x128xf32>
    %110 = math.exp %109 : vector<8x128xf32>
    %cst_27 = arith.constant 1.000000e+00 : f32
    %111 = vector.broadcast %cst_27 : f32 to vector<8x128xf32>
    %112 = arith.addf %111, %110 : vector<8x128xf32>
    %113 = arith.divf %111, %112 : vector<8x128xf32>
    %114 = vector.extract_strided_slice %113 {offsets = [0, 0], sizes = [8, 64], strides = [1, 1]} : vector<8x128xf32> to vector<8x64xf32>
    %115 = vector.extract_strided_slice %113 {offsets = [0, 64], sizes = [8, 64], strides = [1, 1]} : vector<8x128xf32> to vector<8x64xf32>
    %116 = vector.extract_strided_slice %104 {offsets = [0, 128], sizes = [8, 64], strides = [1, 1]} : vector<8x192xf32> to vector<8x64xf32>
    %117 = vector.extract_strided_slice %105 {offsets = [0, 128], sizes = [8, 64], strides = [1, 1]} : vector<8x192xf32> to vector<8x64xf32>
    %118 = arith.addf %117, %2 : vector<8x64xf32>
    %119 = arith.mulf %114, %118 : vector<8x64xf32>
    %120 = arith.addf %116, %119 : vector<8x64xf32>
    %121 = math.tanh %120 : vector<8x64xf32>
    %cst_28 = arith.constant 1.000000e+00 : f32
    %122 = vector.broadcast %cst_28 : f32 to vector<8x64xf32>
    %123 = arith.subf %122, %115 : vector<8x64xf32>
    %124 = arith.mulf %123, %121 : vector<8x64xf32>
    %125 = arith.mulf %115, %103 : vector<8x64xf32>
    %126 = arith.addf %124, %125 : vector<8x64xf32>
    %127 = vector.extract_strided_slice %29 {offsets = [32, 0], sizes = [8, 192], strides = [1, 1]} : vector<64x192xf32> to vector<8x192xf32>
    %cst_29 = arith.constant dense<0.000000e+00> : vector<8x192xf32>
    %128 = tpu.matmul %126, %30, %cst_29 {dimension_numbers = #tpu.dot_dimension_numbers<[1], [0], [0], [1], [0, 0, 1, 1], [], []>} : vector<8x64xf32>, vector<64x192xf32>, vector<8x192xf32> -> vector<8x192xf32>
    %129 = vector.extract_strided_slice %127 {offsets = [0, 0], sizes = [8, 128], strides = [1, 1]} : vector<8x192xf32> to vector<8x128xf32>
    %130 = vector.extract_strided_slice %128 {offsets = [0, 0], sizes = [8, 128], strides = [1, 1]} : vector<8x192xf32> to vector<8x128xf32>
    %131 = arith.addf %129, %130 : vector<8x128xf32>
    %132 = arith.negf %131 : vector<8x128xf32>
    %133 = math.exp %132 : vector<8x128xf32>
    %cst_30 = arith.constant 1.000000e+00 : f32
    %134 = vector.broadcast %cst_30 : f32 to vector<8x128xf32>
    %135 = arith.addf %134, %133 : vector<8x128xf32>
    %136 = arith.divf %134, %135 : vector<8x128xf32>
    %137 = vector.extract_strided_slice %136 {offsets = [0, 0], sizes = [8, 64], strides = [1, 1]} : vector<8x128xf32> to vector<8x64xf32>
    %138 = vector.extract_strided_slice %136 {offsets = [0, 64], sizes = [8, 64], strides = [1, 1]} : vector<8x128xf32> to vector<8x64xf32>
    %139 = vector.extract_strided_slice %127 {offsets = [0, 128], sizes = [8, 64], strides = [1, 1]} : vector<8x192xf32> to vector<8x64xf32>
    %140 = vector.extract_strided_slice %128 {offsets = [0, 128], sizes = [8, 64], strides = [1, 1]} : vector<8x192xf32> to vector<8x64xf32>
    %141 = arith.addf %140, %2 : vector<8x64xf32>
    %142 = arith.mulf %137, %141 : vector<8x64xf32>
    %143 = arith.addf %139, %142 : vector<8x64xf32>
    %144 = math.tanh %143 : vector<8x64xf32>
    %cst_31 = arith.constant 1.000000e+00 : f32
    %145 = vector.broadcast %cst_31 : f32 to vector<8x64xf32>
    %146 = arith.subf %145, %138 : vector<8x64xf32>
    %147 = arith.mulf %146, %144 : vector<8x64xf32>
    %148 = arith.mulf %138, %126 : vector<8x64xf32>
    %149 = arith.addf %147, %148 : vector<8x64xf32>
    %150 = vector.extract_strided_slice %29 {offsets = [40, 0], sizes = [8, 192], strides = [1, 1]} : vector<64x192xf32> to vector<8x192xf32>
    %cst_32 = arith.constant dense<0.000000e+00> : vector<8x192xf32>
    %151 = tpu.matmul %149, %30, %cst_32 {dimension_numbers = #tpu.dot_dimension_numbers<[1], [0], [0], [1], [0, 0, 1, 1], [], []>} : vector<8x64xf32>, vector<64x192xf32>, vector<8x192xf32> -> vector<8x192xf32>
    %152 = vector.extract_strided_slice %150 {offsets = [0, 0], sizes = [8, 128], strides = [1, 1]} : vector<8x192xf32> to vector<8x128xf32>
    %153 = vector.extract_strided_slice %151 {offsets = [0, 0], sizes = [8, 128], strides = [1, 1]} : vector<8x192xf32> to vector<8x128xf32>
    %154 = arith.addf %152, %153 : vector<8x128xf32>
    %155 = arith.negf %154 : vector<8x128xf32>
    %156 = math.exp %155 : vector<8x128xf32>
    %cst_33 = arith.constant 1.000000e+00 : f32
    %157 = vector.broadcast %cst_33 : f32 to vector<8x128xf32>
    %158 = arith.addf %157, %156 : vector<8x128xf32>
    %159 = arith.divf %157, %158 : vector<8x128xf32>
    %160 = vector.extract_strided_slice %159 {offsets = [0, 0], sizes = [8, 64], strides = [1, 1]} : vector<8x128xf32> to vector<8x64xf32>
    %161 = vector.extract_strided_slice %159 {offsets = [0, 64], sizes = [8, 64], strides = [1, 1]} : vector<8x128xf32> to vector<8x64xf32>
    %162 = vector.extract_strided_slice %150 {offsets = [0, 128], sizes = [8, 64], strides = [1, 1]} : vector<8x192xf32> to vector<8x64xf32>
    %163 = vector.extract_strided_slice %151 {offsets = [0, 128], sizes = [8, 64], strides = [1, 1]} : vector<8x192xf32> to vector<8x64xf32>
    %164 = arith.addf %163, %2 : vector<8x64xf32>
    %165 = arith.mulf %160, %164 : vector<8x64xf32>
    %166 = arith.addf %162, %165 : vector<8x64xf32>
    %167 = math.tanh %166 : vector<8x64xf32>
    %cst_34 = arith.constant 1.000000e+00 : f32
    %168 = vector.broadcast %cst_34 : f32 to vector<8x64xf32>
    %169 = arith.subf %168, %161 : vector<8x64xf32>
    %170 = arith.mulf %169, %167 : vector<8x64xf32>
    %171 = arith.mulf %161, %149 : vector<8x64xf32>
    %172 = arith.addf %170, %171 : vector<8x64xf32>
    %173 = vector.extract_strided_slice %29 {offsets = [48, 0], sizes = [8, 192], strides = [1, 1]} : vector<64x192xf32> to vector<8x192xf32>
    %cst_35 = arith.constant dense<0.000000e+00> : vector<8x192xf32>
    %174 = tpu.matmul %172, %30, %cst_35 {dimension_numbers = #tpu.dot_dimension_numbers<[1], [0], [0], [1], [0, 0, 1, 1], [], []>} : vector<8x64xf32>, vector<64x192xf32>, vector<8x192xf32> -> vector<8x192xf32>
    %175 = vector.extract_strided_slice %173 {offsets = [0, 0], sizes = [8, 128], strides = [1, 1]} : vector<8x192xf32> to vector<8x128xf32>
    %176 = vector.extract_strided_slice %174 {offsets = [0, 0], sizes = [8, 128], strides = [1, 1]} : vector<8x192xf32> to vector<8x128xf32>
    %177 = arith.addf %175, %176 : vector<8x128xf32>
    %178 = arith.negf %177 : vector<8x128xf32>
    %179 = math.exp %178 : vector<8x128xf32>
    %cst_36 = arith.constant 1.000000e+00 : f32
    %180 = vector.broadcast %cst_36 : f32 to vector<8x128xf32>
    %181 = arith.addf %180, %179 : vector<8x128xf32>
    %182 = arith.divf %180, %181 : vector<8x128xf32>
    %183 = vector.extract_strided_slice %182 {offsets = [0, 0], sizes = [8, 64], strides = [1, 1]} : vector<8x128xf32> to vector<8x64xf32>
    %184 = vector.extract_strided_slice %182 {offsets = [0, 64], sizes = [8, 64], strides = [1, 1]} : vector<8x128xf32> to vector<8x64xf32>
    %185 = vector.extract_strided_slice %173 {offsets = [0, 128], sizes = [8, 64], strides = [1, 1]} : vector<8x192xf32> to vector<8x64xf32>
    %186 = vector.extract_strided_slice %174 {offsets = [0, 128], sizes = [8, 64], strides = [1, 1]} : vector<8x192xf32> to vector<8x64xf32>
    %187 = arith.addf %186, %2 : vector<8x64xf32>
    %188 = arith.mulf %183, %187 : vector<8x64xf32>
    %189 = arith.addf %185, %188 : vector<8x64xf32>
    %190 = math.tanh %189 : vector<8x64xf32>
    %cst_37 = arith.constant 1.000000e+00 : f32
    %191 = vector.broadcast %cst_37 : f32 to vector<8x64xf32>
    %192 = arith.subf %191, %184 : vector<8x64xf32>
    %193 = arith.mulf %192, %190 : vector<8x64xf32>
    %194 = arith.mulf %184, %172 : vector<8x64xf32>
    %195 = arith.addf %193, %194 : vector<8x64xf32>
    %196 = vector.extract_strided_slice %29 {offsets = [56, 0], sizes = [8, 192], strides = [1, 1]} : vector<64x192xf32> to vector<8x192xf32>
    %cst_38 = arith.constant dense<0.000000e+00> : vector<8x192xf32>
    %197 = tpu.matmul %195, %30, %cst_38 {dimension_numbers = #tpu.dot_dimension_numbers<[1], [0], [0], [1], [0, 0, 1, 1], [], []>} : vector<8x64xf32>, vector<64x192xf32>, vector<8x192xf32> -> vector<8x192xf32>
    %198 = vector.extract_strided_slice %196 {offsets = [0, 0], sizes = [8, 128], strides = [1, 1]} : vector<8x192xf32> to vector<8x128xf32>
    %199 = vector.extract_strided_slice %197 {offsets = [0, 0], sizes = [8, 128], strides = [1, 1]} : vector<8x192xf32> to vector<8x128xf32>
    %200 = arith.addf %198, %199 : vector<8x128xf32>
    %201 = arith.negf %200 : vector<8x128xf32>
    %202 = math.exp %201 : vector<8x128xf32>
    %cst_39 = arith.constant 1.000000e+00 : f32
    %203 = vector.broadcast %cst_39 : f32 to vector<8x128xf32>
    %204 = arith.addf %203, %202 : vector<8x128xf32>
    %205 = arith.divf %203, %204 : vector<8x128xf32>
    %206 = vector.extract_strided_slice %205 {offsets = [0, 0], sizes = [8, 64], strides = [1, 1]} : vector<8x128xf32> to vector<8x64xf32>
    %207 = vector.extract_strided_slice %205 {offsets = [0, 64], sizes = [8, 64], strides = [1, 1]} : vector<8x128xf32> to vector<8x64xf32>
    %208 = vector.extract_strided_slice %196 {offsets = [0, 128], sizes = [8, 64], strides = [1, 1]} : vector<8x192xf32> to vector<8x64xf32>
    %209 = vector.extract_strided_slice %197 {offsets = [0, 128], sizes = [8, 64], strides = [1, 1]} : vector<8x192xf32> to vector<8x64xf32>
    %210 = arith.addf %209, %2 : vector<8x64xf32>
    %211 = arith.mulf %206, %210 : vector<8x64xf32>
    %212 = arith.addf %208, %211 : vector<8x64xf32>
    %213 = math.tanh %212 : vector<8x64xf32>
    %cst_40 = arith.constant 1.000000e+00 : f32
    %214 = vector.broadcast %cst_40 : f32 to vector<8x64xf32>
    %215 = arith.subf %214, %207 : vector<8x64xf32>
    %216 = arith.mulf %215, %213 : vector<8x64xf32>
    %217 = arith.mulf %207, %195 : vector<8x64xf32>
    %218 = arith.addf %216, %217 : vector<8x64xf32>
    %cst_41 = arith.constant 0.000000e+00 : f32
    %219 = vector.broadcast %cst_41 : f32 to vector<8x64xf32>
    %cst_42 = arith.constant dense<0.000000e+00> : vector<8x192xf32>
    %220 = tpu.matmul %57, %32, %cst_42 {dimension_numbers = #tpu.dot_dimension_numbers<[1], [0], [0], [1], [0, 0, 1, 1], [], []>} : vector<8x64xf32>, vector<64x192xf32>, vector<8x192xf32> -> vector<8x192xf32>
    %cst_43 = arith.constant dense<0.000000e+00> : vector<8x192xf32>
    %221 = tpu.matmul %218, %33, %cst_43 {dimension_numbers = #tpu.dot_dimension_numbers<[1], [0], [0], [1], [0, 0, 1, 1], [], []>} : vector<8x64xf32>, vector<64x192xf32>, vector<8x192xf32> -> vector<8x192xf32>
    %222 = arith.addf %220, %221 : vector<8x192xf32>
    %223 = arith.addf %222, %5 : vector<8x192xf32>
    %cst_44 = arith.constant dense<0.000000e+00> : vector<8x192xf32>
    %224 = tpu.matmul %219, %31, %cst_44 {dimension_numbers = #tpu.dot_dimension_numbers<[1], [0], [0], [1], [0, 0, 1, 1], [], []>} : vector<8x64xf32>, vector<64x192xf32>, vector<8x192xf32> -> vector<8x192xf32>
    %225 = vector.extract_strided_slice %223 {offsets = [0, 0], sizes = [8, 128], strides = [1, 1]} : vector<8x192xf32> to vector<8x128xf32>
    %226 = vector.extract_strided_slice %224 {offsets = [0, 0], sizes = [8, 128], strides = [1, 1]} : vector<8x192xf32> to vector<8x128xf32>
    %227 = arith.addf %225, %226 : vector<8x128xf32>
    %228 = arith.negf %227 : vector<8x128xf32>
    %229 = math.exp %228 : vector<8x128xf32>
    %cst_45 = arith.constant 1.000000e+00 : f32
    %230 = vector.broadcast %cst_45 : f32 to vector<8x128xf32>
    %231 = arith.addf %230, %229 : vector<8x128xf32>
    %232 = arith.divf %230, %231 : vector<8x128xf32>
    %233 = vector.extract_strided_slice %232 {offsets = [0, 0], sizes = [8, 64], strides = [1, 1]} : vector<8x128xf32> to vector<8x64xf32>
    %234 = vector.extract_strided_slice %232 {offsets = [0, 64], sizes = [8, 64], strides = [1, 1]} : vector<8x128xf32> to vector<8x64xf32>
    %235 = vector.extract_strided_slice %223 {offsets = [0, 128], sizes = [8, 64], strides = [1, 1]} : vector<8x192xf32> to vector<8x64xf32>
    %236 = vector.extract_strided_slice %224 {offsets = [0, 128], sizes = [8, 64], strides = [1, 1]} : vector<8x192xf32> to vector<8x64xf32>
    %237 = arith.addf %236, %8 : vector<8x64xf32>
    %238 = arith.mulf %233, %237 : vector<8x64xf32>
    %239 = arith.addf %235, %238 : vector<8x64xf32>
    %240 = math.tanh %239 : vector<8x64xf32>
    %cst_46 = arith.constant 1.000000e+00 : f32
    %241 = vector.broadcast %cst_46 : f32 to vector<8x64xf32>
    %242 = arith.subf %241, %234 : vector<8x64xf32>
    %243 = arith.mulf %242, %240 : vector<8x64xf32>
    %244 = arith.mulf %234, %219 : vector<8x64xf32>
    %245 = arith.addf %243, %244 : vector<8x64xf32>
    %cst_47 = arith.constant dense<0.000000e+00> : vector<8x192xf32>
    %246 = tpu.matmul %80, %32, %cst_47 {dimension_numbers = #tpu.dot_dimension_numbers<[1], [0], [0], [1], [0, 0, 1, 1], [], []>} : vector<8x64xf32>, vector<64x192xf32>, vector<8x192xf32> -> vector<8x192xf32>
    %cst_48 = arith.constant dense<0.000000e+00> : vector<8x192xf32>
    %247 = tpu.matmul %195, %33, %cst_48 {dimension_numbers = #tpu.dot_dimension_numbers<[1], [0], [0], [1], [0, 0, 1, 1], [], []>} : vector<8x64xf32>, vector<64x192xf32>, vector<8x192xf32> -> vector<8x192xf32>
    %248 = arith.addf %246, %247 : vector<8x192xf32>
    %249 = arith.addf %248, %5 : vector<8x192xf32>
    %cst_49 = arith.constant dense<0.000000e+00> : vector<8x192xf32>
    %250 = tpu.matmul %245, %31, %cst_49 {dimension_numbers = #tpu.dot_dimension_numbers<[1], [0], [0], [1], [0, 0, 1, 1], [], []>} : vector<8x64xf32>, vector<64x192xf32>, vector<8x192xf32> -> vector<8x192xf32>
    %251 = vector.extract_strided_slice %249 {offsets = [0, 0], sizes = [8, 128], strides = [1, 1]} : vector<8x192xf32> to vector<8x128xf32>
    %252 = vector.extract_strided_slice %250 {offsets = [0, 0], sizes = [8, 128], strides = [1, 1]} : vector<8x192xf32> to vector<8x128xf32>
    %253 = arith.addf %251, %252 : vector<8x128xf32>
    %254 = arith.negf %253 : vector<8x128xf32>
    %255 = math.exp %254 : vector<8x128xf32>
    %cst_50 = arith.constant 1.000000e+00 : f32
    %256 = vector.broadcast %cst_50 : f32 to vector<8x128xf32>
    %257 = arith.addf %256, %255 : vector<8x128xf32>
    %258 = arith.divf %256, %257 : vector<8x128xf32>
    %259 = vector.extract_strided_slice %258 {offsets = [0, 0], sizes = [8, 64], strides = [1, 1]} : vector<8x128xf32> to vector<8x64xf32>
    %260 = vector.extract_strided_slice %258 {offsets = [0, 64], sizes = [8, 64], strides = [1, 1]} : vector<8x128xf32> to vector<8x64xf32>
    %261 = vector.extract_strided_slice %249 {offsets = [0, 128], sizes = [8, 64], strides = [1, 1]} : vector<8x192xf32> to vector<8x64xf32>
    %262 = vector.extract_strided_slice %250 {offsets = [0, 128], sizes = [8, 64], strides = [1, 1]} : vector<8x192xf32> to vector<8x64xf32>
    %263 = arith.addf %262, %8 : vector<8x64xf32>
    %264 = arith.mulf %259, %263 : vector<8x64xf32>
    %265 = arith.addf %261, %264 : vector<8x64xf32>
    %266 = math.tanh %265 : vector<8x64xf32>
    %cst_51 = arith.constant 1.000000e+00 : f32
    %267 = vector.broadcast %cst_51 : f32 to vector<8x64xf32>
    %268 = arith.subf %267, %260 : vector<8x64xf32>
    %269 = arith.mulf %268, %266 : vector<8x64xf32>
    %270 = arith.mulf %260, %245 : vector<8x64xf32>
    %271 = arith.addf %269, %270 : vector<8x64xf32>
    %cst_52 = arith.constant dense<0.000000e+00> : vector<8x192xf32>
    %272 = tpu.matmul %103, %32, %cst_52 {dimension_numbers = #tpu.dot_dimension_numbers<[1], [0], [0], [1], [0, 0, 1, 1], [], []>} : vector<8x64xf32>, vector<64x192xf32>, vector<8x192xf32> -> vector<8x192xf32>
    %cst_53 = arith.constant dense<0.000000e+00> : vector<8x192xf32>
    %273 = tpu.matmul %172, %33, %cst_53 {dimension_numbers = #tpu.dot_dimension_numbers<[1], [0], [0], [1], [0, 0, 1, 1], [], []>} : vector<8x64xf32>, vector<64x192xf32>, vector<8x192xf32> -> vector<8x192xf32>
    %274 = arith.addf %272, %273 : vector<8x192xf32>
    %275 = arith.addf %274, %5 : vector<8x192xf32>
    %cst_54 = arith.constant dense<0.000000e+00> : vector<8x192xf32>
    %276 = tpu.matmul %271, %31, %cst_54 {dimension_numbers = #tpu.dot_dimension_numbers<[1], [0], [0], [1], [0, 0, 1, 1], [], []>} : vector<8x64xf32>, vector<64x192xf32>, vector<8x192xf32> -> vector<8x192xf32>
    %277 = vector.extract_strided_slice %275 {offsets = [0, 0], sizes = [8, 128], strides = [1, 1]} : vector<8x192xf32> to vector<8x128xf32>
    %278 = vector.extract_strided_slice %276 {offsets = [0, 0], sizes = [8, 128], strides = [1, 1]} : vector<8x192xf32> to vector<8x128xf32>
    %279 = arith.addf %277, %278 : vector<8x128xf32>
    %280 = arith.negf %279 : vector<8x128xf32>
    %281 = math.exp %280 : vector<8x128xf32>
    %cst_55 = arith.constant 1.000000e+00 : f32
    %282 = vector.broadcast %cst_55 : f32 to vector<8x128xf32>
    %283 = arith.addf %282, %281 : vector<8x128xf32>
    %284 = arith.divf %282, %283 : vector<8x128xf32>
    %285 = vector.extract_strided_slice %284 {offsets = [0, 0], sizes = [8, 64], strides = [1, 1]} : vector<8x128xf32> to vector<8x64xf32>
    %286 = vector.extract_strided_slice %284 {offsets = [0, 64], sizes = [8, 64], strides = [1, 1]} : vector<8x128xf32> to vector<8x64xf32>
    %287 = vector.extract_strided_slice %275 {offsets = [0, 128], sizes = [8, 64], strides = [1, 1]} : vector<8x192xf32> to vector<8x64xf32>
    %288 = vector.extract_strided_slice %276 {offsets = [0, 128], sizes = [8, 64], strides = [1, 1]} : vector<8x192xf32> to vector<8x64xf32>
    %289 = arith.addf %288, %8 : vector<8x64xf32>
    %290 = arith.mulf %285, %289 : vector<8x64xf32>
    %291 = arith.addf %287, %290 : vector<8x64xf32>
    %292 = math.tanh %291 : vector<8x64xf32>
    %cst_56 = arith.constant 1.000000e+00 : f32
    %293 = vector.broadcast %cst_56 : f32 to vector<8x64xf32>
    %294 = arith.subf %293, %286 : vector<8x64xf32>
    %295 = arith.mulf %294, %292 : vector<8x64xf32>
    %296 = arith.mulf %286, %271 : vector<8x64xf32>
    %297 = arith.addf %295, %296 : vector<8x64xf32>
    %cst_57 = arith.constant dense<0.000000e+00> : vector<8x192xf32>
    %298 = tpu.matmul %126, %32, %cst_57 {dimension_numbers = #tpu.dot_dimension_numbers<[1], [0], [0], [1], [0, 0, 1, 1], [], []>} : vector<8x64xf32>, vector<64x192xf32>, vector<8x192xf32> -> vector<8x192xf32>
    %cst_58 = arith.constant dense<0.000000e+00> : vector<8x192xf32>
    %299 = tpu.matmul %149, %33, %cst_58 {dimension_numbers = #tpu.dot_dimension_numbers<[1], [0], [0], [1], [0, 0, 1, 1], [], []>} : vector<8x64xf32>, vector<64x192xf32>, vector<8x192xf32> -> vector<8x192xf32>
    %300 = arith.addf %298, %299 : vector<8x192xf32>
    %301 = arith.addf %300, %5 : vector<8x192xf32>
    %cst_59 = arith.constant dense<0.000000e+00> : vector<8x192xf32>
    %302 = tpu.matmul %297, %31, %cst_59 {dimension_numbers = #tpu.dot_dimension_numbers<[1], [0], [0], [1], [0, 0, 1, 1], [], []>} : vector<8x64xf32>, vector<64x192xf32>, vector<8x192xf32> -> vector<8x192xf32>
    %303 = vector.extract_strided_slice %301 {offsets = [0, 0], sizes = [8, 128], strides = [1, 1]} : vector<8x192xf32> to vector<8x128xf32>
    %304 = vector.extract_strided_slice %302 {offsets = [0, 0], sizes = [8, 128], strides = [1, 1]} : vector<8x192xf32> to vector<8x128xf32>
    %305 = arith.addf %303, %304 : vector<8x128xf32>
    %306 = arith.negf %305 : vector<8x128xf32>
    %307 = math.exp %306 : vector<8x128xf32>
    %cst_60 = arith.constant 1.000000e+00 : f32
    %308 = vector.broadcast %cst_60 : f32 to vector<8x128xf32>
    %309 = arith.addf %308, %307 : vector<8x128xf32>
    %310 = arith.divf %308, %309 : vector<8x128xf32>
    %311 = vector.extract_strided_slice %310 {offsets = [0, 0], sizes = [8, 64], strides = [1, 1]} : vector<8x128xf32> to vector<8x64xf32>
    %312 = vector.extract_strided_slice %310 {offsets = [0, 64], sizes = [8, 64], strides = [1, 1]} : vector<8x128xf32> to vector<8x64xf32>
    %313 = vector.extract_strided_slice %301 {offsets = [0, 128], sizes = [8, 64], strides = [1, 1]} : vector<8x192xf32> to vector<8x64xf32>
    %314 = vector.extract_strided_slice %302 {offsets = [0, 128], sizes = [8, 64], strides = [1, 1]} : vector<8x192xf32> to vector<8x64xf32>
    %315 = arith.addf %314, %8 : vector<8x64xf32>
    %316 = arith.mulf %311, %315 : vector<8x64xf32>
    %317 = arith.addf %313, %316 : vector<8x64xf32>
    %318 = math.tanh %317 : vector<8x64xf32>
    %cst_61 = arith.constant 1.000000e+00 : f32
    %319 = vector.broadcast %cst_61 : f32 to vector<8x64xf32>
    %320 = arith.subf %319, %312 : vector<8x64xf32>
    %321 = arith.mulf %320, %318 : vector<8x64xf32>
    %322 = arith.mulf %312, %297 : vector<8x64xf32>
    %323 = arith.addf %321, %322 : vector<8x64xf32>
    %cst_62 = arith.constant dense<0.000000e+00> : vector<8x192xf32>
    %324 = tpu.matmul %149, %32, %cst_62 {dimension_numbers = #tpu.dot_dimension_numbers<[1], [0], [0], [1], [0, 0, 1, 1], [], []>} : vector<8x64xf32>, vector<64x192xf32>, vector<8x192xf32> -> vector<8x192xf32>
    %cst_63 = arith.constant dense<0.000000e+00> : vector<8x192xf32>
    %325 = tpu.matmul %126, %33, %cst_63 {dimension_numbers = #tpu.dot_dimension_numbers<[1], [0], [0], [1], [0, 0, 1, 1], [], []>} : vector<8x64xf32>, vector<64x192xf32>, vector<8x192xf32> -> vector<8x192xf32>
    %326 = arith.addf %324, %325 : vector<8x192xf32>
    %327 = arith.addf %326, %5 : vector<8x192xf32>
    %cst_64 = arith.constant dense<0.000000e+00> : vector<8x192xf32>
    %328 = tpu.matmul %323, %31, %cst_64 {dimension_numbers = #tpu.dot_dimension_numbers<[1], [0], [0], [1], [0, 0, 1, 1], [], []>} : vector<8x64xf32>, vector<64x192xf32>, vector<8x192xf32> -> vector<8x192xf32>
    %329 = vector.extract_strided_slice %327 {offsets = [0, 0], sizes = [8, 128], strides = [1, 1]} : vector<8x192xf32> to vector<8x128xf32>
    %330 = vector.extract_strided_slice %328 {offsets = [0, 0], sizes = [8, 128], strides = [1, 1]} : vector<8x192xf32> to vector<8x128xf32>
    %331 = arith.addf %329, %330 : vector<8x128xf32>
    %332 = arith.negf %331 : vector<8x128xf32>
    %333 = math.exp %332 : vector<8x128xf32>
    %cst_65 = arith.constant 1.000000e+00 : f32
    %334 = vector.broadcast %cst_65 : f32 to vector<8x128xf32>
    %335 = arith.addf %334, %333 : vector<8x128xf32>
    %336 = arith.divf %334, %335 : vector<8x128xf32>
    %337 = vector.extract_strided_slice %336 {offsets = [0, 0], sizes = [8, 64], strides = [1, 1]} : vector<8x128xf32> to vector<8x64xf32>
    %338 = vector.extract_strided_slice %336 {offsets = [0, 64], sizes = [8, 64], strides = [1, 1]} : vector<8x128xf32> to vector<8x64xf32>
    %339 = vector.extract_strided_slice %327 {offsets = [0, 128], sizes = [8, 64], strides = [1, 1]} : vector<8x192xf32> to vector<8x64xf32>
    %340 = vector.extract_strided_slice %328 {offsets = [0, 128], sizes = [8, 64], strides = [1, 1]} : vector<8x192xf32> to vector<8x64xf32>
    %341 = arith.addf %340, %8 : vector<8x64xf32>
    %342 = arith.mulf %337, %341 : vector<8x64xf32>
    %343 = arith.addf %339, %342 : vector<8x64xf32>
    %344 = math.tanh %343 : vector<8x64xf32>
    %cst_66 = arith.constant 1.000000e+00 : f32
    %345 = vector.broadcast %cst_66 : f32 to vector<8x64xf32>
    %346 = arith.subf %345, %338 : vector<8x64xf32>
    %347 = arith.mulf %346, %344 : vector<8x64xf32>
    %348 = arith.mulf %338, %323 : vector<8x64xf32>
    %349 = arith.addf %347, %348 : vector<8x64xf32>
    %cst_67 = arith.constant dense<0.000000e+00> : vector<8x192xf32>
    %350 = tpu.matmul %172, %32, %cst_67 {dimension_numbers = #tpu.dot_dimension_numbers<[1], [0], [0], [1], [0, 0, 1, 1], [], []>} : vector<8x64xf32>, vector<64x192xf32>, vector<8x192xf32> -> vector<8x192xf32>
    %cst_68 = arith.constant dense<0.000000e+00> : vector<8x192xf32>
    %351 = tpu.matmul %103, %33, %cst_68 {dimension_numbers = #tpu.dot_dimension_numbers<[1], [0], [0], [1], [0, 0, 1, 1], [], []>} : vector<8x64xf32>, vector<64x192xf32>, vector<8x192xf32> -> vector<8x192xf32>
    %352 = arith.addf %350, %351 : vector<8x192xf32>
    %353 = arith.addf %352, %5 : vector<8x192xf32>
    %cst_69 = arith.constant dense<0.000000e+00> : vector<8x192xf32>
    %354 = tpu.matmul %349, %31, %cst_69 {dimension_numbers = #tpu.dot_dimension_numbers<[1], [0], [0], [1], [0, 0, 1, 1], [], []>} : vector<8x64xf32>, vector<64x192xf32>, vector<8x192xf32> -> vector<8x192xf32>
    %355 = vector.extract_strided_slice %353 {offsets = [0, 0], sizes = [8, 128], strides = [1, 1]} : vector<8x192xf32> to vector<8x128xf32>
    %356 = vector.extract_strided_slice %354 {offsets = [0, 0], sizes = [8, 128], strides = [1, 1]} : vector<8x192xf32> to vector<8x128xf32>
    %357 = arith.addf %355, %356 : vector<8x128xf32>
    %358 = arith.negf %357 : vector<8x128xf32>
    %359 = math.exp %358 : vector<8x128xf32>
    %cst_70 = arith.constant 1.000000e+00 : f32
    %360 = vector.broadcast %cst_70 : f32 to vector<8x128xf32>
    %361 = arith.addf %360, %359 : vector<8x128xf32>
    %362 = arith.divf %360, %361 : vector<8x128xf32>
    %363 = vector.extract_strided_slice %362 {offsets = [0, 0], sizes = [8, 64], strides = [1, 1]} : vector<8x128xf32> to vector<8x64xf32>
    %364 = vector.extract_strided_slice %362 {offsets = [0, 64], sizes = [8, 64], strides = [1, 1]} : vector<8x128xf32> to vector<8x64xf32>
    %365 = vector.extract_strided_slice %353 {offsets = [0, 128], sizes = [8, 64], strides = [1, 1]} : vector<8x192xf32> to vector<8x64xf32>
    %366 = vector.extract_strided_slice %354 {offsets = [0, 128], sizes = [8, 64], strides = [1, 1]} : vector<8x192xf32> to vector<8x64xf32>
    %367 = arith.addf %366, %8 : vector<8x64xf32>
    %368 = arith.mulf %363, %367 : vector<8x64xf32>
    %369 = arith.addf %365, %368 : vector<8x64xf32>
    %370 = math.tanh %369 : vector<8x64xf32>
    %cst_71 = arith.constant 1.000000e+00 : f32
    %371 = vector.broadcast %cst_71 : f32 to vector<8x64xf32>
    %372 = arith.subf %371, %364 : vector<8x64xf32>
    %373 = arith.mulf %372, %370 : vector<8x64xf32>
    %374 = arith.mulf %364, %349 : vector<8x64xf32>
    %375 = arith.addf %373, %374 : vector<8x64xf32>
    %cst_72 = arith.constant dense<0.000000e+00> : vector<8x192xf32>
    %376 = tpu.matmul %195, %32, %cst_72 {dimension_numbers = #tpu.dot_dimension_numbers<[1], [0], [0], [1], [0, 0, 1, 1], [], []>} : vector<8x64xf32>, vector<64x192xf32>, vector<8x192xf32> -> vector<8x192xf32>
    %cst_73 = arith.constant dense<0.000000e+00> : vector<8x192xf32>
    %377 = tpu.matmul %80, %33, %cst_73 {dimension_numbers = #tpu.dot_dimension_numbers<[1], [0], [0], [1], [0, 0, 1, 1], [], []>} : vector<8x64xf32>, vector<64x192xf32>, vector<8x192xf32> -> vector<8x192xf32>
    %378 = arith.addf %376, %377 : vector<8x192xf32>
    %379 = arith.addf %378, %5 : vector<8x192xf32>
    %cst_74 = arith.constant dense<0.000000e+00> : vector<8x192xf32>
    %380 = tpu.matmul %375, %31, %cst_74 {dimension_numbers = #tpu.dot_dimension_numbers<[1], [0], [0], [1], [0, 0, 1, 1], [], []>} : vector<8x64xf32>, vector<64x192xf32>, vector<8x192xf32> -> vector<8x192xf32>
    %381 = vector.extract_strided_slice %379 {offsets = [0, 0], sizes = [8, 128], strides = [1, 1]} : vector<8x192xf32> to vector<8x128xf32>
    %382 = vector.extract_strided_slice %380 {offsets = [0, 0], sizes = [8, 128], strides = [1, 1]} : vector<8x192xf32> to vector<8x128xf32>
    %383 = arith.addf %381, %382 : vector<8x128xf32>
    %384 = arith.negf %383 : vector<8x128xf32>
    %385 = math.exp %384 : vector<8x128xf32>
    %cst_75 = arith.constant 1.000000e+00 : f32
    %386 = vector.broadcast %cst_75 : f32 to vector<8x128xf32>
    %387 = arith.addf %386, %385 : vector<8x128xf32>
    %388 = arith.divf %386, %387 : vector<8x128xf32>
    %389 = vector.extract_strided_slice %388 {offsets = [0, 0], sizes = [8, 64], strides = [1, 1]} : vector<8x128xf32> to vector<8x64xf32>
    %390 = vector.extract_strided_slice %388 {offsets = [0, 64], sizes = [8, 64], strides = [1, 1]} : vector<8x128xf32> to vector<8x64xf32>
    %391 = vector.extract_strided_slice %379 {offsets = [0, 128], sizes = [8, 64], strides = [1, 1]} : vector<8x192xf32> to vector<8x64xf32>
    %392 = vector.extract_strided_slice %380 {offsets = [0, 128], sizes = [8, 64], strides = [1, 1]} : vector<8x192xf32> to vector<8x64xf32>
    %393 = arith.addf %392, %8 : vector<8x64xf32>
    %394 = arith.mulf %389, %393 : vector<8x64xf32>
    %395 = arith.addf %391, %394 : vector<8x64xf32>
    %396 = math.tanh %395 : vector<8x64xf32>
    %cst_76 = arith.constant 1.000000e+00 : f32
    %397 = vector.broadcast %cst_76 : f32 to vector<8x64xf32>
    %398 = arith.subf %397, %390 : vector<8x64xf32>
    %399 = arith.mulf %398, %396 : vector<8x64xf32>
    %400 = arith.mulf %390, %375 : vector<8x64xf32>
    %401 = arith.addf %399, %400 : vector<8x64xf32>
    %cst_77 = arith.constant dense<0.000000e+00> : vector<8x192xf32>
    %402 = tpu.matmul %218, %32, %cst_77 {dimension_numbers = #tpu.dot_dimension_numbers<[1], [0], [0], [1], [0, 0, 1, 1], [], []>} : vector<8x64xf32>, vector<64x192xf32>, vector<8x192xf32> -> vector<8x192xf32>
    %cst_78 = arith.constant dense<0.000000e+00> : vector<8x192xf32>
    %403 = tpu.matmul %57, %33, %cst_78 {dimension_numbers = #tpu.dot_dimension_numbers<[1], [0], [0], [1], [0, 0, 1, 1], [], []>} : vector<8x64xf32>, vector<64x192xf32>, vector<8x192xf32> -> vector<8x192xf32>
    %404 = arith.addf %402, %403 : vector<8x192xf32>
    %405 = arith.addf %404, %5 : vector<8x192xf32>
    %cst_79 = arith.constant dense<0.000000e+00> : vector<8x192xf32>
    %406 = tpu.matmul %401, %31, %cst_79 {dimension_numbers = #tpu.dot_dimension_numbers<[1], [0], [0], [1], [0, 0, 1, 1], [], []>} : vector<8x64xf32>, vector<64x192xf32>, vector<8x192xf32> -> vector<8x192xf32>
    %407 = vector.extract_strided_slice %405 {offsets = [0, 0], sizes = [8, 128], strides = [1, 1]} : vector<8x192xf32> to vector<8x128xf32>
    %408 = vector.extract_strided_slice %406 {offsets = [0, 0], sizes = [8, 128], strides = [1, 1]} : vector<8x192xf32> to vector<8x128xf32>
    %409 = arith.addf %407, %408 : vector<8x128xf32>
    %410 = arith.negf %409 : vector<8x128xf32>
    %411 = math.exp %410 : vector<8x128xf32>
    %cst_80 = arith.constant 1.000000e+00 : f32
    %412 = vector.broadcast %cst_80 : f32 to vector<8x128xf32>
    %413 = arith.addf %412, %411 : vector<8x128xf32>
    %414 = arith.divf %412, %413 : vector<8x128xf32>
    %415 = vector.extract_strided_slice %414 {offsets = [0, 0], sizes = [8, 64], strides = [1, 1]} : vector<8x128xf32> to vector<8x64xf32>
    %416 = vector.extract_strided_slice %414 {offsets = [0, 64], sizes = [8, 64], strides = [1, 1]} : vector<8x128xf32> to vector<8x64xf32>
    %417 = vector.extract_strided_slice %405 {offsets = [0, 128], sizes = [8, 64], strides = [1, 1]} : vector<8x192xf32> to vector<8x64xf32>
    %418 = vector.extract_strided_slice %406 {offsets = [0, 128], sizes = [8, 64], strides = [1, 1]} : vector<8x192xf32> to vector<8x64xf32>
    %419 = arith.addf %418, %8 : vector<8x64xf32>
    %420 = arith.mulf %415, %419 : vector<8x64xf32>
    %421 = arith.addf %417, %420 : vector<8x64xf32>
    %422 = math.tanh %421 : vector<8x64xf32>
    %cst_81 = arith.constant 1.000000e+00 : f32
    %423 = vector.broadcast %cst_81 : f32 to vector<8x64xf32>
    %424 = arith.subf %423, %416 : vector<8x64xf32>
    %425 = arith.mulf %424, %422 : vector<8x64xf32>
    %426 = arith.mulf %416, %401 : vector<8x64xf32>
    %427 = arith.addf %425, %426 : vector<8x64xf32>
    %c0_82 = arith.constant 0 : index
    %c0_83 = arith.constant 0 : index
    %428 = vector.load %arg2[%c0_82, %c0_83] : memref<288x32xf32, #tpu.memory_space<vmem>>, vector<64x32xf32>
    %cst_84 = arith.constant dense<0.000000e+00> : vector<8x32xf32>
    %429 = tpu.matmul %218, %428, %cst_84 {dimension_numbers = #tpu.dot_dimension_numbers<[1], [0], [0], [1], [0, 0, 1, 1], [], []>} : vector<8x64xf32>, vector<64x32xf32>, vector<8x32xf32> -> vector<8x32xf32>
    %c64_85 = arith.constant 64 : index
    %c0_86 = arith.constant 0 : index
    %430 = vector.load %arg2[%c64_85, %c0_86] : memref<288x32xf32, #tpu.memory_space<vmem>>, vector<64x32xf32>
    %cst_87 = arith.constant dense<0.000000e+00> : vector<8x32xf32>
    %431 = tpu.matmul %427, %430, %cst_87 {dimension_numbers = #tpu.dot_dimension_numbers<[1], [0], [0], [1], [0, 0, 1, 1], [], []>} : vector<8x64xf32>, vector<64x32xf32>, vector<8x32xf32> -> vector<8x32xf32>
    %432 = arith.addf %429, %431 : vector<8x32xf32>
    %433 = vector.broadcast %9 : vector<1x32xf32> to vector<8x32xf32>
    %434 = arith.addf %432, %433 : vector<8x32xf32>
    %435 = arith.negf %434 : vector<8x32xf32>
    %436 = math.exp %435 : vector<8x32xf32>
    %cst_88 = arith.constant 1.000000e+00 : f32
    %437 = vector.broadcast %cst_88 : f32 to vector<8x32xf32>
    %438 = arith.addf %437, %436 : vector<8x32xf32>
    %439 = arith.divf %437, %438 : vector<8x32xf32>
    %c128_89 = arith.constant 128 : index
    %c0_90 = arith.constant 0 : index
    %440 = vector.load %arg2[%c128_89, %c0_90] : memref<288x32xf32, #tpu.memory_space<vmem>>, vector<32x32xf32>
    %cst_91 = arith.constant dense<0.000000e+00> : vector<8x32xf32>
    %441 = tpu.matmul %439, %440, %cst_91 {dimension_numbers = #tpu.dot_dimension_numbers<[1], [0], [0], [1], [0, 0, 1, 1], [], []>} : vector<8x32xf32>, vector<32x32xf32>, vector<8x32xf32> -> vector<8x32xf32>
    %442 = vector.broadcast %10 : vector<1x32xf32> to vector<8x32xf32>
    %443 = arith.addf %441, %442 : vector<8x32xf32>
    %444 = arith.negf %443 : vector<8x32xf32>
    %445 = math.exp %444 : vector<8x32xf32>
    %cst_92 = arith.constant 1.000000e+00 : f32
    %446 = vector.broadcast %cst_92 : f32 to vector<8x32xf32>
    %447 = arith.addf %446, %445 : vector<8x32xf32>
    %448 = arith.divf %446, %447 : vector<8x32xf32>
    %449 = vector.extract_strided_slice %448 {offsets = [0, 0], sizes = [2, 32], strides = [1, 1]} : vector<8x32xf32> to vector<2x32xf32>
    %c160 = arith.constant 160 : index
    %c0_93 = arith.constant 0 : index
    %450 = vector.load %arg2[%c160, %c0_93] : memref<288x32xf32, #tpu.memory_space<vmem>>, vector<32x32xf32>
    %cst_94 = arith.constant dense<0.000000e+00> : vector<2x32xf32>
    %451 = tpu.matmul %449, %450, %cst_94 {dimension_numbers = #tpu.dot_dimension_numbers<[1], [0], [0], [1], [0, 0, 1, 1], [], []>} : vector<2x32xf32>, vector<32x32xf32>, vector<2x32xf32> -> vector<2x32xf32>
    %452 = vector.extract_strided_slice %448 {offsets = [2, 0], sizes = [2, 32], strides = [1, 1]} : vector<8x32xf32> to vector<2x32xf32>
    %c192_95 = arith.constant 192 : index
    %c0_96 = arith.constant 0 : index
    %453 = vector.load %arg2[%c192_95, %c0_96] : memref<288x32xf32, #tpu.memory_space<vmem>>, vector<32x32xf32>
    %cst_97 = arith.constant dense<0.000000e+00> : vector<2x32xf32>
    %454 = tpu.matmul %452, %453, %cst_97 {dimension_numbers = #tpu.dot_dimension_numbers<[1], [0], [0], [1], [0, 0, 1, 1], [], []>} : vector<2x32xf32>, vector<32x32xf32>, vector<2x32xf32> -> vector<2x32xf32>
    %455 = arith.addf %451, %454 : vector<2x32xf32>
    %456 = vector.extract_strided_slice %448 {offsets = [4, 0], sizes = [2, 32], strides = [1, 1]} : vector<8x32xf32> to vector<2x32xf32>
    %c224 = arith.constant 224 : index
    %c0_98 = arith.constant 0 : index
    %457 = vector.load %arg2[%c224, %c0_98] : memref<288x32xf32, #tpu.memory_space<vmem>>, vector<32x32xf32>
    %cst_99 = arith.constant dense<0.000000e+00> : vector<2x32xf32>
    %458 = tpu.matmul %456, %457, %cst_99 {dimension_numbers = #tpu.dot_dimension_numbers<[1], [0], [0], [1], [0, 0, 1, 1], [], []>} : vector<2x32xf32>, vector<32x32xf32>, vector<2x32xf32> -> vector<2x32xf32>
    %459 = arith.addf %455, %458 : vector<2x32xf32>
    %460 = vector.broadcast %11 : vector<1x32xf32> to vector<2x32xf32>
    %461 = arith.addf %459, %460 : vector<2x32xf32>
    %462 = arith.negf %461 : vector<2x32xf32>
    %463 = math.exp %462 : vector<2x32xf32>
    %cst_100 = arith.constant 1.000000e+00 : f32
    %464 = vector.broadcast %cst_100 : f32 to vector<2x32xf32>
    %465 = arith.addf %464, %463 : vector<2x32xf32>
    %466 = arith.divf %464, %465 : vector<2x32xf32>
    %c256_101 = arith.constant 256 : index
    %c0_102 = arith.constant 0 : index
    %467 = vector.load %arg2[%c256_101, %c0_102] : memref<288x32xf32, #tpu.memory_space<vmem>>, vector<32x32xf32>
    %cst_103 = arith.constant dense<0.000000e+00> : vector<2x32xf32>
    %468 = tpu.matmul %466, %467, %cst_103 {dimension_numbers = #tpu.dot_dimension_numbers<[1], [0], [0], [1], [0, 0, 1, 1], [], []>} : vector<2x32xf32>, vector<32x32xf32>, vector<2x32xf32> -> vector<2x32xf32>
    %469 = vector.broadcast %12 : vector<1x32xf32> to vector<2x32xf32>
    %470 = arith.addf %468, %469 : vector<2x32xf32>
    %471 = arith.negf %470 : vector<2x32xf32>
    %472 = math.exp %471 : vector<2x32xf32>
    %cst_104 = arith.constant 1.000000e+00 : f32
    %473 = vector.broadcast %cst_104 : f32 to vector<2x32xf32>
    %474 = arith.addf %473, %472 : vector<2x32xf32>
    %475 = arith.divf %473, %474 : vector<2x32xf32>
    %476 = vector.extract_strided_slice %475 {offsets = [0, 0], sizes = [2, 2], strides = [1, 1]} : vector<2x32xf32> to vector<2x2xf32>
    %c0_105 = arith.constant 0 : index
    %c0_106 = arith.constant 0 : index
    %477 = vector.load %arg3[%c0_105, %c0_106] : memref<2x2xf32, #tpu.memory_space<vmem>>, vector<2x2xf32>
    tpu.vector_store %arg3[%c0_105, %c0_106], %476 {strides = array<i32>} : memref<2x2xf32, #tpu.memory_space<vmem>>, vector<2x2xf32>,
    return
  }
}

</mosaic_0001>

<llo_original>
// kernel: rnn_net_forward.1
$region0: #{rnn_net_forward.1}
  #allocation0 [shape = 'u32[]', space=smem, size = 0x4, offset = 0x4, fixed_abs, tag = 'smem constant byte address 0x4 - core index']
  #allocation1 [shape = 'u32[144,128]{1,0:T(1,128)}', space=vmem, size = 0x12000, scoped, tag = 'internal scratch']
  %s0 = inlined_call_operand.vmem [shape: s32[64,2], index: 0, kind: input, shape index: {}]
  %s1 = inlined_call_operand.vmem [shape: f32[392,192], index: 1, kind: input, shape index: {}]
  %s2 = inlined_call_operand.vmem [shape: f32[288,32], index: 2, kind: input, shape index: {}]
  %s3 = inlined_call_operand.hbm [shape: f32[2,2], index: 3, kind: output, shape index: {}]
  %s4 = sld [smem:[#allocation0]]
  $region22: #{rnn_net_forward.1} parent=0
    _
  %s6 = ssub.s32 1, %s4
  %s7 = scalar_select 0, %s6, %s4
  $region1: #{rnn_net_forward.1} parent=0
    #allocation2 [shape = 'u8[1024]{0}', space=vmem, size = 0x400, scoped, tag = 'output window, operand 0, single buffered']
    #allocation3 [shape = 's32[1]{0}', space=sflag, size = 0x4, scoped, tag = 'scoped memory for rnn_net_forward.1']
    %8 = vsyncpa [#allocation3], 0
    // Predicated region
    $region2: #{rnn_net_forward.1} parent=1 // pred_check
      _
    $region3: #{rnn_net_forward.1} parent=1 // pred_check_branch
      %10 = sbr.rel (0) target = $region5
    $region4: #{rnn_net_forward.1} parent=1 // pred_region
      _
    $region5: #{rnn_net_forward.1} parent=1 // pred_fallthru
      _
    // Predicated region
    $region6: #{rnn_net_forward.1} parent=1 // pred_check
      _
    $region7: #{rnn_net_forward.1} parent=1 // pred_check_branch
      %12 = sbr.rel (0) target = $region9
    $region8: #{rnn_net_forward.1} parent=1 // pred_region
      _
    $region9: #{rnn_net_forward.1} parent=1 // pred_fallthru
      _
    // Predicated region
    $region10: #{rnn_net_forward.1} parent=1 // pred_check
      _
    $region11: #{rnn_net_forward.1} parent=1 // pred_check_branch
      %14 = sbr.rel (0) target = $region13
    $region12: #{rnn_net_forward.1} parent=1 // pred_region
      _
    $region13: #{rnn_net_forward.1} parent=1 // pred_fallthru
      _
    %v15 = vld [vmem:[%s1 + $0x300] ss:$0 sm:$0xff]
    %s16 = scalar_lea.vmem %s1, 769
    %v17 = vld [vmem:[%s16] ss:$8 sm:$0x3]
    %v19 = vlaneseq
    %v20 = vshrl.u32 %v19, 7
    %v21 = vsub.s32 0, %v20
    %v22 = vrot.slane %v17, %v21
    %v23 = vlaneseq
    %v24 = vshrl.u32 %v23, 7
    %v25 = vsub.s32 1, %v24
    %v26 = vrot.slane %v17, %v25
    %v29 = vld [vmem:[%s1 + $0x302] ss:$0 sm:$0xff]
    %v30 = vld [vmem:[%s1 + $0x303] ss:$0 sm:$0xff]
    %v31 = vld [vmem:[%s1 + $0x304] ss:$0 sm:$0xff]
    %v32 = vld [vmem:[%s1 + $0x305] ss:$0 sm:$0xff]
    %v33 = vld [vmem:[%s1 + $0x306] ss:$0 sm:$0xff]
    %v34 = vld [vmem:[%s0] sm:$0xff]
    %v35 = vld [vmem:[%s0 + $0x8] sm:$0xff]
    %v36 = vld [vmem:[%s0 + $0x10] sm:$0xff]
    %v37 = vld [vmem:[%s0 + $0x18] sm:$0xff]
    %v38 = vld [vmem:[%s0 + $0x20] sm:$0xff]
    %v39 = vld [vmem:[%s0 + $0x28] sm:$0xff]
    %v40 = vld [vmem:[%s0 + $0x30] sm:$0xff]
    %v41 = vld [vmem:[%s0 + $0x38] sm:$0xff]
    %v42 = vlaneseq
    %v43 = vand.u32 %v42, 127
    %44 = vset.pattern.permute.xlu0 0
    %45 = vperm.xlu0 %44, %v34
    %v46 = vpop.permute.xlu0 %45
    %47 = vset.pattern.permute.xlu0 0
    %48 = vperm.xlu0 %47, %v35
    %v49 = vpop.permute.xlu0 %48
    %50 = vset.pattern.permute.xlu0 0
    %51 = vperm.xlu0 %50, %v36
    %v52 = vpop.permute.xlu0 %51
    %53 = vset.pattern.permute.xlu0 0
    %54 = vperm.xlu0 %53, %v37
    %v55 = vpop.permute.xlu0 %54
    %56 = vset.pattern.permute.xlu0 0
    %57 = vperm.xlu0 %56, %v38
    %v58 = vpop.permute.xlu0 %57
    %59 = vset.pattern.permute.xlu0 0
    %60 = vperm.xlu0 %59, %v39
    %v61 = vpop.permute.xlu0 %60
    %62 = vset.pattern.permute.xlu0 0
    %63 = vperm.xlu0 %62, %v40
    %v64 = vpop.permute.xlu0 %63
    %65 = vset.pattern.permute.xlu0 0
    %66 = vperm.xlu0 %65, %v41
    %v67 = vpop.permute.xlu0 %66
    %vm68 = vcmp.eq.s32.totalorder %v46, %v43
    %vm69 = vcmp.eq.s32.totalorder %v49, %v43
    %vm70 = vcmp.eq.s32.totalorder %v52, %v43
    %vm71 = vcmp.eq.s32.totalorder %v55, %v43
    %vm72 = vcmp.eq.s32.totalorder %v58, %v43
    %vm73 = vcmp.eq.s32.totalorder %v61, %v43
    %vm74 = vcmp.eq.s32.totalorder %v64, %v43
    %vm75 = vcmp.eq.s32.totalorder %v67, %v43
    %v76 = vsel %vm68, 1, 0
    %v77 = vsel %vm69, 1, 0
    %v78 = vsel %vm70, 1, 0
    %v79 = vsel %vm71, 1, 0
    %v80 = vsel %vm72, 1, 0
    %v81 = vsel %vm73, 1, 0
    %v82 = vsel %vm74, 1, 0
    %v83 = vsel %vm75, 1, 0
    %v84 = vcvt.s32.f32 %v76
    %v85 = vcvt.s32.f32 %v77
    %v86 = vcvt.s32.f32 %v78
    %v87 = vcvt.s32.f32 %v79
    %v88 = vcvt.s32.f32 %v80
    %v89 = vcvt.s32.f32 %v81
    %v90 = vcvt.s32.f32 %v82
    %v91 = vcvt.s32.f32 %v83
    %92 = vset.pattern.permute.xlu0 1
    %93 = vperm.xlu0 %92, %v34
    %v94 = vpop.permute.xlu0 %93
    %95 = vset.pattern.permute.xlu0 1
    %96 = vperm.xlu0 %95, %v35
    %v97 = vpop.permute.xlu0 %96
    %98 = vset.pattern.permute.xlu0 1
    %99 = vperm.xlu0 %98, %v36
    %v100 = vpop.permute.xlu0 %99
    %101 = vset.pattern.permute.xlu0 1
    %102 = vperm.xlu0 %101, %v37
    %v103 = vpop.permute.xlu0 %102
    %104 = vset.pattern.permute.xlu0 1
    %105 = vperm.xlu0 %104, %v38
    %v106 = vpop.permute.xlu0 %105
    %107 = vset.pattern.permute.xlu0 1
    %108 = vperm.xlu0 %107, %v39
    %v109 = vpop.permute.xlu0 %108
    %110 = vset.pattern.permute.xlu0 1
    %111 = vperm.xlu0 %110, %v40
    %v112 = vpop.permute.xlu0 %111
    %113 = vset.pattern.permute.xlu0 1
    %114 = vperm.xlu0 %113, %v41
    %v115 = vpop.permute.xlu0 %114
    %vm116 = vcmp.eq.s32.totalorder %v94, %v43
    %vm117 = vcmp.eq.s32.totalorder %v97, %v43
    %vm118 = vcmp.eq.s32.totalorder %v100, %v43
    %vm119 = vcmp.eq.s32.totalorder %v103, %v43
    %vm120 = vcmp.eq.s32.totalorder %v106, %v43
    %vm121 = vcmp.eq.s32.totalorder %v109, %v43
    %vm122 = vcmp.eq.s32.totalorder %v112, %v43
    %vm123 = vcmp.eq.s32.totalorder %v115, %v43
    %v124 = vsel %vm116, 1, 0
    %v125 = vsel %vm117, 1, 0
    %v126 = vsel %vm118, 1, 0
    %v127 = vsel %vm119, 1, 0
    %v128 = vsel %vm120, 1, 0
    %v129 = vsel %vm121, 1, 0
    %v130 = vsel %vm122, 1, 0
    %v131 = vsel %vm123, 1, 0
    %v132 = vcvt.s32.f32 %v124
    %v133 = vcvt.s32.f32 %v125
    %v134 = vcvt.s32.f32 %v126
    %v135 = vcvt.s32.f32 %v127
    %v136 = vcvt.s32.f32 %v128
    %v137 = vcvt.s32.f32 %v129
    %v138 = vcvt.s32.f32 %v130
    %v139 = vcvt.s32.f32 %v131
    %v140 = vld [vmem:[%s1] sm:$0xff]
    %v141 = vld [vmem:[%s1 + $0x8] sm:$0xff]
    %v142 = vld [vmem:[%s1 + $0x10] sm:$0xff]
    %v143 = vld [vmem:[%s1 + $0x18] sm:$0xff]
    %v144 = vld [vmem:[%s1 + $0x20] sm:$0xff]
    %v145 = vld [vmem:[%s1 + $0x28] sm:$0xff]
    %v146 = vld [vmem:[%s1 + $0x30] sm:$0xff]
    %v147 = vld [vmem:[%s1 + $0x38] sm:$0xff]
    %v148 = vld [vmem:[%s1 + $0x40] sm:$0xff]
    %v149 = vld [vmem:[%s1 + $0x48] sm:$0xff]
    %v150 = vld [vmem:[%s1 + $0x50] sm:$0xff]
    %v151 = vld [vmem:[%s1 + $0x58] sm:$0xff]
    %v152 = vld [vmem:[%s1 + $0x60] sm:$0xff]
    %v153 = vld [vmem:[%s1 + $0x68] sm:$0xff]
    %v154 = vld [vmem:[%s1 + $0x70] sm:$0xff]
    %v155 = vld [vmem:[%s1 + $0x78] sm:$0xff]
    %v156 = vld [vmem:[%s1 + $0x80] sm:$0xff]
    %v157 = vld [vmem:[%s1 + $0x88] sm:$0xff]
    %v158 = vld [vmem:[%s1 + $0x90] sm:$0xff]
    %v159 = vld [vmem:[%s1 + $0x98] sm:$0xff]
    %v160 = vld [vmem:[%s1 + $0xa0] sm:$0xff]
    %v161 = vld [vmem:[%s1 + $0xa8] sm:$0xff]
    %v162 = vld [vmem:[%s1 + $0xb0] sm:$0xff]
    %v163 = vld [vmem:[%s1 + $0xb8] sm:$0xff]
    %v164 = vld [vmem:[%s1 + $0xc0] sm:$0xff]
    %v165 = vld [vmem:[%s1 + $0xc8] sm:$0xff]
    %v166 = vld [vmem:[%s1 + $0xd0] sm:$0xff]
    %v167 = vld [vmem:[%s1 + $0xd8] sm:$0xff]
    %v168 = vld [vmem:[%s1 + $0xe0] sm:$0xff]
    %v169 = vld [vmem:[%s1 + $0xe8] sm:$0xff]
    %v170 = vld [vmem:[%s1 + $0xf0] sm:$0xff]
    %v171 = vld [vmem:[%s1 + $0xf8] sm:$0xff]
    %vm172 = vcmask 523264
    %v174 = vsel %vm172, %v132, 0
    %v177 = vsel %vm172, %v133, 0
    %v180 = vsel %vm172, %v134, 0
    %v183 = vsel %vm172, %v135, 0
    %v186 = vsel %vm172, %v136, 0
    %v189 = vsel %vm172, %v137, 0
    %v192 = vsel %vm172, %v138, 0
    %v195 = vsel %vm172, %v139, 0
    %197 = vmatprep.subr.mxu0 0.0
    %198 = vmatpush1.msra.mxu0 0.0
    %199 = vmatprep.subr.mxu0 0.0
    %200 = vmatpush1.msra.mxu0 0.0
    %201 = vmatprep.subr.mxu0 0.0
    %202 = vmatpush1.msra.mxu0 0.0
    %203 = vmatprep.subr.mxu0 0.0
    %204 = vmatpush1.msra.mxu0 0.0
    %205 = vmatprep.subr.mxu0 0.0
    %206 = vmatpush1.msra.mxu0 0.0
    %207 = vmatprep.subr.mxu0 0.0
    %208 = vmatpush1.msra.mxu0 0.0
    %209 = vmatprep.subr.mxu0 0.0
    %210 = vmatpush1.msra.mxu0 0.0
    %211 = vmatprep.subr.mxu0 0.0
    %212 = vmatpush1.msra.mxu0 0.0
    %213 = vmatprep.subr.mxu0 %v171
    %214 = vmatpush1.msra.mxu0 %v170
    %215 = vmatprep.subr.mxu0 %v169
    %216 = vmatpush1.msra.mxu0 %v168
    %217 = vmatprep.subr.mxu0 %v167
    %218 = vmatpush1.msra.mxu0 %v166
    %219 = vmatprep.subr.mxu0 %v165
    %220 = vmatpush1.msra.mxu0 %v164
    %221 = vmatprep.subr.mxu0 %v163
    %222 = vmatpush1.msra.mxu0 %v162
    %223 = vmatprep.subr.mxu0 %v161
    %224 = vmatpush1.msra.mxu0 %v160
    %225 = vmatprep.subr.mxu0 %v159
    %226 = vmatpush1.msra.mxu0 %v158
    %227 = vmatprep.subr.mxu0 %v157
    %228 = vmatpush1.msra.mxu0 %v156
    %229 = vmatprep.subr.mxu0 0.0
    %230 = vmatpush2.msra.mxu0 0.0
    %231 = vmatprep.subr.mxu0 0.0
    %232 = vmatpush2.msra.mxu0 0.0
    %233 = vmatprep.subr.mxu0 0.0
    %234 = vmatpush2.msra.mxu0 0.0
    %235 = vmatprep.subr.mxu0 0.0
    %236 = vmatpush2.msra.mxu0 0.0
    %237 = vmatprep.subr.mxu0 0.0
    %238 = vmatpush2.msra.mxu0 0.0
    %239 = vmatprep.subr.mxu0 0.0
    %240 = vmatpush2.msra.mxu0 0.0
    %241 = vmatprep.subr.mxu0 0.0
    %242 = vmatpush2.msra.mxu0 0.0
    %243 = vmatprep.subr.mxu0 0.0
    %244 = vmatpush2.msra.mxu0 0.0
    %245 = vmatprep.subr.mxu0 0.0
    %246 = vmatpush2.msra.mxu0 0.0
    %247 = vmatprep.subr.mxu0 0.0
    %248 = vmatpush2.msra.mxu0 0.0
    %249 = vmatprep.subr.mxu0 0.0
    %250 = vmatpush2.msra.mxu0 0.0
    %251 = vmatprep.subr.mxu0 0.0
    %252 = vmatpush2.msra.mxu0 0.0
    %253 = vmatprep.subr.mxu0 0.0
    %254 = vmatpush2.msra.mxu0 0.0
    %255 = vmatprep.subr.mxu0 0.0
    %256 = vmatpush2.msra.mxu0 0.0
    %257 = vmatprep.subr.mxu0 0.0
    %258 = vmatpush2.msra.mxu0 0.0
    %259 = vmatprep.subr.mxu0 0.0
    %260 = vmatpush2.msra.mxu0 0.0
    %261 = vmatprep.mubr.f32.mxu0 0.0
    %262 = vmatmul.mubr.f32.gmra.mxu0 %v174
    %v263 = vpop.f32.mrf.mxu0
    %v264 = vadd.f32 0.0, %v263
    %v265 = vpop.f32.mrf.mxu0
    %v266 = vadd.f32 0.0, %v265
    %267 = vmatprep.mubr.f32.mxu0 0.0
    %268 = vmatmul.mubr.f32.gmra.mxu0 %v177
    %v269 = vpop.f32.mrf.mxu0
    %v270 = vadd.f32 0.0, %v269
    %v271 = vpop.f32.mrf.mxu0
    %v272 = vadd.f32 0.0, %v271
    %273 = vmatprep.mubr.f32.mxu0 0.0
    %274 = vmatmul.mubr.f32.gmra.mxu0 %v180
    %v275 = vpop.f32.mrf.mxu0
    %v276 = vadd.f32 0.0, %v275
    %v277 = vpop.f32.mrf.mxu0
    %v278 = vadd.f32 0.0, %v277
    %279 = vmatprep.mubr.f32.mxu0 0.0
    %280 = vmatmul.mubr.f32.gmra.mxu0 %v183
    %v281 = vpop.f32.mrf.mxu0
    %v282 = vadd.f32 0.0, %v281
    %v283 = vpop.f32.mrf.mxu0
    %v284 = vadd.f32 0.0, %v283
    %285 = vmatprep.mubr.f32.mxu0 0.0
    %286 = vmatmul.mubr.f32.gmra.mxu0 %v186
    %v287 = vpop.f32.mrf.mxu0
    %v288 = vadd.f32 0.0, %v287
    %v289 = vpop.f32.mrf.mxu0
    %v290 = vadd.f32 0.0, %v289
    %291 = vmatprep.mubr.f32.mxu0 0.0
    %292 = vmatmul.mubr.f32.gmra.mxu0 %v189
    %v293 = vpop.f32.mrf.mxu0
    %v294 = vadd.f32 0.0, %v293
    %v295 = vpop.f32.mrf.mxu0
    %v296 = vadd.f32 0.0, %v295
    %297 = vmatprep.mubr.f32.mxu0 0.0
    %298 = vmatmul.mubr.f32.gmra.mxu0 %v192
    %v299 = vpop.f32.mrf.mxu0
    %v300 = vadd.f32 0.0, %v299
    %v301 = vpop.f32.mrf.mxu0
    %v302 = vadd.f32 0.0, %v301
    %303 = vmatprep.mubr.f32.mxu0 0.0
    %304 = vmatmul.mubr.f32.gmra.mxu0 %v195
    %v305 = vpop.f32.mrf.mxu0
    %v306 = vadd.f32 0.0, %v305
    %v307 = vpop.f32.mrf.mxu0
    %v308 = vadd.f32 0.0, %v307
    %309 = vdwg.mxu0
    %v311 = vsel %vm172, %v84, 0
    %v314 = vsel %vm172, %v85, 0
    %v317 = vsel %vm172, %v86, 0
    %v320 = vsel %vm172, %v87, 0
    %v323 = vsel %vm172, %v88, 0
    %v326 = vsel %vm172, %v89, 0
    %v329 = vsel %vm172, %v90, 0
    %v332 = vsel %vm172, %v91, 0
    %334 = vmatprep.subr.mxu0 0.0
    %335 = vmatpush1.msra.mxu0 0.0
    %336 = vmatprep.subr.mxu0 0.0
    %337 = vmatpush1.msra.mxu0 0.0
    %338 = vmatprep.subr.mxu0 0.0
    %339 = vmatpush1.msra.mxu0 0.0
    %340 = vmatprep.subr.mxu0 0.0
    %341 = vmatpush1.msra.mxu0 0.0
    %342 = vmatprep.subr.mxu0 0.0
    %343 = vmatpush1.msra.mxu0 0.0
    %344 = vmatprep.subr.mxu0 0.0
    %345 = vmatpush1.msra.mxu0 0.0
    %346 = vmatprep.subr.mxu0 0.0
    %347 = vmatpush1.msra.mxu0 0.0
    %348 = vmatprep.subr.mxu0 0.0
    %349 = vmatpush1.msra.mxu0 0.0
    %350 = vmatprep.subr.mxu0 %v155
    %351 = vmatpush1.msra.mxu0 %v154
    %352 = vmatprep.subr.mxu0 %v153
    %353 = vmatpush1.msra.mxu0 %v152
    %354 = vmatprep.subr.mxu0 %v151
    %355 = vmatpush1.msra.mxu0 %v150
    %356 = vmatprep.subr.mxu0 %v149
    %357 = vmatpush1.msra.mxu0 %v148
    %358 = vmatprep.subr.mxu0 %v147
    %359 = vmatpush1.msra.mxu0 %v146
    %360 = vmatprep.subr.mxu0 %v145
    %361 = vmatpush1.msra.mxu0 %v144
    %362 = vmatprep.subr.mxu0 %v143
    %363 = vmatpush1.msra.mxu0 %v142
    %364 = vmatprep.subr.mxu0 %v141
    %365 = vmatpush1.msra.mxu0 %v140
    %366 = vmatprep.subr.mxu0 0.0
    %367 = vmatpush2.msra.mxu0 0.0
    %368 = vmatprep.subr.mxu0 0.0
    %369 = vmatpush2.msra.mxu0 0.0
    %370 = vmatprep.subr.mxu0 0.0
    %371 = vmatpush2.msra.mxu0 0.0
    %372 = vmatprep.subr.mxu0 0.0
    %373 = vmatpush2.msra.mxu0 0.0
    %374 = vmatprep.subr.mxu0 0.0
    %375 = vmatpush2.msra.mxu0 0.0
    %376 = vmatprep.subr.mxu0 0.0
    %377 = vmatpush2.msra.mxu0 0.0
    %378 = vmatprep.subr.mxu0 0.0
    %379 = vmatpush2.msra.mxu0 0.0
    %380 = vmatprep.subr.mxu0 0.0
    %381 = vmatpush2.msra.mxu0 0.0
    %382 = vmatprep.subr.mxu0 0.0
    %383 = vmatpush2.msra.mxu0 0.0
    %384 = vmatprep.subr.mxu0 0.0
    %385 = vmatpush2.msra.mxu0 0.0
    %386 = vmatprep.subr.mxu0 0.0
    %387 = vmatpush2.msra.mxu0 0.0
    %388 = vmatprep.subr.mxu0 0.0
    %389 = vmatpush2.msra.mxu0 0.0
    %390 = vmatprep.subr.mxu0 0.0
    %391 = vmatpush2.msra.mxu0 0.0
    %392 = vmatprep.subr.mxu0 0.0
    %393 = vmatpush2.msra.mxu0 0.0
    %394 = vmatprep.subr.mxu0 0.0
    %395 = vmatpush2.msra.mxu0 0.0
    %396 = vmatprep.subr.mxu0 0.0
    %397 = vmatpush2.msra.mxu0 0.0
    %398 = vmatprep.mubr.f32.mxu0 0.0
    %399 = vmatmul.mubr.f32.gmra.mxu0 %v311
    %v400 = vpop.f32.mrf.mxu0
    %v401 = vadd.f32 %v264, %v400
    %v402 = vpop.f32.mrf.mxu0
    %v403 = vadd.f32 %v266, %v402
    %404 = vmatprep.mubr.f32.mxu0 0.0
    %405 = vmatmul.mubr.f32.gmra.mxu0 %v314
    %v406 = vpop.f32.mrf.mxu0
    %v407 = vadd.f32 %v270, %v406
    %v408 = vpop.f32.mrf.mxu0
    %v409 = vadd.f32 %v272, %v408
    %410 = vmatprep.mubr.f32.mxu0 0.0
    %411 = vmatmul.mubr.f32.gmra.mxu0 %v317
    %v412 = vpop.f32.mrf.mxu0
    %v413 = vadd.f32 %v276, %v412
    %v414 = vpop.f32.mrf.mxu0
    %v415 = vadd.f32 %v278, %v414
    %416 = vmatprep.mubr.f32.mxu0 0.0
    %417 = vmatmul.mubr.f32.gmra.mxu0 %v320
    %v418 = vpop.f32.mrf.mxu0
    %v419 = vadd.f32 %v282, %v418
    %v420 = vpop.f32.mrf.mxu0
    %v421 = vadd.f32 %v284, %v420
    %422 = vmatprep.mubr.f32.mxu0 0.0
    %423 = vmatmul.mubr.f32.gmra.mxu0 %v323
    %v424 = vpop.f32.mrf.mxu0
    %v425 = vadd.f32 %v288, %v424
    %v426 = vpop.f32.mrf.mxu0
    %v427 = vadd.f32 %v290, %v426
    %428 = vmatprep.mubr.f32.mxu0 0.0
    %429 = vmatmul.mubr.f32.gmra.mxu0 %v326
    %v430 = vpop.f32.mrf.mxu0
    %v431 = vadd.f32 %v294, %v430
    %v432 = vpop.f32.mrf.mxu0
    %v433 = vadd.f32 %v296, %v432
    %434 = vmatprep.mubr.f32.mxu0 0.0
    %435 = vmatmul.mubr.f32.gmra.mxu0 %v329
    %v436 = vpop.f32.mrf.mxu0
    %v437 = vadd.f32 %v300, %v436
    %v438 = vpop.f32.mrf.mxu0
    %v439 = vadd.f32 %v302, %v438
    %440 = vmatprep.mubr.f32.mxu0 0.0
    %441 = vmatmul.mubr.f32.gmra.mxu0 %v332
    %v442 = vpop.f32.mrf.mxu0
    %v443 = vadd.f32 %v306, %v442
    %v444 = vpop.f32.mrf.mxu0
    %v445 = vadd.f32 %v308, %v444
    %446 = vdwg.mxu0
    %v447 = vld [vmem:[%s1 + $0x100] sm:$0xff]
    %v448 = vld [vmem:[%s1 + $0x108] sm:$0xff]
    %v449 = vld [vmem:[%s1 + $0x110] sm:$0xff]
    %v450 = vld [vmem:[%s1 + $0x118] sm:$0xff]
    %v451 = vld [vmem:[%s1 + $0x120] sm:$0xff]
    %v452 = vld [vmem:[%s1 + $0x128] sm:$0xff]
    %v453 = vld [vmem:[%s1 + $0x130] sm:$0xff]
    %v454 = vld [vmem:[%s1 + $0x138] sm:$0xff]
    %v455 = vld [vmem:[%s1 + $0x140] sm:$0xff]
    %v456 = vld [vmem:[%s1 + $0x148] sm:$0xff]
    %v457 = vld [vmem:[%s1 + $0x150] sm:$0xff]
    %v458 = vld [vmem:[%s1 + $0x158] sm:$0xff]
    %v459 = vld [vmem:[%s1 + $0x160] sm:$0xff]
    %v460 = vld [vmem:[%s1 + $0x168] sm:$0xff]
    %v461 = vld [vmem:[%s1 + $0x170] sm:$0xff]
    %v462 = vld [vmem:[%s1 + $0x178] sm:$0xff]
    %v463 = vld [vmem:[%s1 + $0x280] sm:$0xff]
    %v464 = vld [vmem:[%s1 + $0x288] sm:$0xff]
    %v465 = vld [vmem:[%s1 + $0x290] sm:$0xff]
    %v466 = vld [vmem:[%s1 + $0x298] sm:$0xff]
    %v467 = vld [vmem:[%s1 + $0x2a0] sm:$0xff]
    %v468 = vld [vmem:[%s1 + $0x2a8] sm:$0xff]
    %v469 = vld [vmem:[%s1 + $0x2b0] sm:$0xff]
    %v470 = vld [vmem:[%s1 + $0x2b8] sm:$0xff]
    %v471 = vld [vmem:[%s1 + $0x2c0] sm:$0xff]
    %v472 = vld [vmem:[%s1 + $0x2c8] sm:$0xff]
    %v473 = vld [vmem:[%s1 + $0x2d0] sm:$0xff]
    %v474 = vld [vmem:[%s1 + $0x2d8] sm:$0xff]
    %v475 = vld [vmem:[%s1 + $0x2e0] sm:$0xff]
    %v476 = vld [vmem:[%s1 + $0x2e8] sm:$0xff]
    %v477 = vld [vmem:[%s1 + $0x2f0] sm:$0xff]
    %v478 = vld [vmem:[%s1 + $0x2f8] sm:$0xff]
    %v479 = vld [vmem:[%s1 + $0x180] sm:$0xff]
    %v480 = vld [vmem:[%s1 + $0x188] sm:$0xff]
    %v481 = vld [vmem:[%s1 + $0x190] sm:$0xff]
    %v482 = vld [vmem:[%s1 + $0x198] sm:$0xff]
    %v483 = vld [vmem:[%s1 + $0x1a0] sm:$0xff]
    %v484 = vld [vmem:[%s1 + $0x1a8] sm:$0xff]
    %v485 = vld [vmem:[%s1 + $0x1b0] sm:$0xff]
    %v486 = vld [vmem:[%s1 + $0x1b8] sm:$0xff]
    %v487 = vld [vmem:[%s1 + $0x1c0] sm:$0xff]
    %v488 = vld [vmem:[%s1 + $0x1c8] sm:$0xff]
    %v489 = vld [vmem:[%s1 + $0x1d0] sm:$0xff]
    %v490 = vld [vmem:[%s1 + $0x1d8] sm:$0xff]
    %v491 = vld [vmem:[%s1 + $0x1e0] sm:$0xff]
    %v492 = vld [vmem:[%s1 + $0x1e8] sm:$0xff]
    %v493 = vld [vmem:[%s1 + $0x1f0] sm:$0xff]
    %v494 = vld [vmem:[%s1 + $0x1f8] sm:$0xff]
    %v495 = vld [vmem:[%s1 + $0x200] sm:$0xff]
    %v496 = vld [vmem:[%s1 + $0x208] sm:$0xff]
    %v497 = vld [vmem:[%s1 + $0x210] sm:$0xff]
    %v498 = vld [vmem:[%s1 + $0x218] sm:$0xff]
    %v499 = vld [vmem:[%s1 + $0x220] sm:$0xff]
    %v500 = vld [vmem:[%s1 + $0x228] sm:$0xff]
    %v501 = vld [vmem:[%s1 + $0x230] sm:$0xff]
    %v502 = vld [vmem:[%s1 + $0x238] sm:$0xff]
    %v503 = vld [vmem:[%s1 + $0x240] sm:$0xff]
    %v504 = vld [vmem:[%s1 + $0x248] sm:$0xff]
    %v505 = vld [vmem:[%s1 + $0x250] sm:$0xff]
    %v506 = vld [vmem:[%s1 + $0x258] sm:$0xff]
    %v507 = vld [vmem:[%s1 + $0x260] sm:$0xff]
    %v508 = vld [vmem:[%s1 + $0x268] sm:$0xff]
    %v509 = vld [vmem:[%s1 + $0x270] sm:$0xff]
    %v510 = vld [vmem:[%s1 + $0x278] sm:$0xff]
    %v512 = vsel %vm172, 0.0, 0
    %514 = vmatprep.subr.mxu0 0.0
    %515 = vmatpush1.msra.mxu0 0.0
    %516 = vmatprep.subr.mxu0 0.0
    %517 = vmatpush1.msra.mxu0 0.0
    %518 = vmatprep.subr.mxu0 0.0
    %519 = vmatpush1.msra.mxu0 0.0
    %520 = vmatprep.subr.mxu0 0.0
    %521 = vmatpush1.msra.mxu0 0.0
    %522 = vmatprep.subr.mxu0 0.0
    %523 = vmatpush1.msra.mxu0 0.0
    %524 = vmatprep.subr.mxu0 0.0
    %525 = vmatpush1.msra.mxu0 0.0
    %526 = vmatprep.subr.mxu0 0.0
    %527 = vmatpush1.msra.mxu0 0.0
    %528 = vmatprep.subr.mxu0 0.0
    %529 = vmatpush1.msra.mxu0 0.0
    %530 = vmatprep.subr.mxu0 %v462
    %531 = vmatpush1.msra.mxu0 %v461
    %532 = vmatprep.subr.mxu0 %v460
    %533 = vmatpush1.msra.mxu0 %v459
    %534 = vmatprep.subr.mxu0 %v458
    %535 = vmatpush1.msra.mxu0 %v457
    %536 = vmatprep.subr.mxu0 %v456
    %537 = vmatpush1.msra.mxu0 %v455
    %538 = vmatprep.subr.mxu0 %v454
    %539 = vmatpush1.msra.mxu0 %v453
    %540 = vmatprep.subr.mxu0 %v452
    %541 = vmatpush1.msra.mxu0 %v451
    %542 = vmatprep.subr.mxu0 %v450
    %543 = vmatpush1.msra.mxu0 %v449
    %544 = vmatprep.subr.mxu0 %v448
    %545 = vmatpush1.msra.mxu0 %v447
    %546 = vmatprep.subr.mxu0 0.0
    %547 = vmatpush2.msra.mxu0 0.0
    %548 = vmatprep.subr.mxu0 0.0
    %549 = vmatpush2.msra.mxu0 0.0
    %550 = vmatprep.subr.mxu0 0.0
    %551 = vmatpush2.msra.mxu0 0.0
    %552 = vmatprep.subr.mxu0 0.0
    %553 = vmatpush2.msra.mxu0 0.0
    %554 = vmatprep.subr.mxu0 0.0
    %555 = vmatpush2.msra.mxu0 0.0
    %556 = vmatprep.subr.mxu0 0.0
    %557 = vmatpush2.msra.mxu0 0.0
    %558 = vmatprep.subr.mxu0 0.0
    %559 = vmatpush2.msra.mxu0 0.0
    %560 = vmatprep.subr.mxu0 0.0
    %561 = vmatpush2.msra.mxu0 0.0
    %562 = vmatprep.subr.mxu0 0.0
    %563 = vmatpush2.msra.mxu0 0.0
    %564 = vmatprep.subr.mxu0 0.0
    %565 = vmatpush2.msra.mxu0 0.0
    %566 = vmatprep.subr.mxu0 0.0
    %567 = vmatpush2.msra.mxu0 0.0
    %568 = vmatprep.subr.mxu0 0.0
    %569 = vmatpush2.msra.mxu0 0.0
    %570 = vmatprep.subr.mxu0 0.0
    %571 = vmatpush2.msra.mxu0 0.0
    %572 = vmatprep.subr.mxu0 0.0
    %573 = vmatpush2.msra.mxu0 0.0
    %574 = vmatprep.subr.mxu0 0.0
    %575 = vmatpush2.msra.mxu0 0.0
    %576 = vmatprep.subr.mxu0 0.0
    %577 = vmatpush2.msra.mxu0 0.0
    %578 = vmatprep.mubr.f32.mxu0 0.0
    %579 = vmatmul.mubr.f32.gmra.mxu0 %v512
    %v580 = vpop.f32.mrf.mxu0
    %v581 = vadd.f32 0.0, %v580
    %v582 = vpop.f32.mrf.mxu0
    %v583 = vadd.f32 0.0, %v582
    %584 = vdwg.mxu0
    %v585 = vadd.f32 %v401, %v581
    %v586 = vxor.u32 %v585, 2147483648
    %v587 = vmul.f32 %v586, 1.442695
    %v588 = vpow.pop %v587
    %v589 = vadd.f32 %v588, 1.0
    %v590 = vrcp.pop %v589
    %v591 = vmul.f32 1.0, %v590
    %v592 = vadd.f32 %v583, %v15
    %v593 = vmul.f32 %v591, %v592
    %v594 = vadd.f32 %v403, %v593
    %v595 = vtanh.pop %v594
    %v596 = vsub.f32 1.0, %v591
    %598 = vrot.lane.b32.xlu0 %v595, 64
    %v599 = vpop.permute.xlu0 %598
    %v601 = vmul.f32 %v596, %v599
    %v602 = vmul.f32 %v591, 0.0
    %v603 = vadd.f32 %v601, %v602
    %605 = vrot.lane.b32.xlu0 %v603, 64
    %v606 = vpop.permute.xlu0 %605
    %v607 = vsel %vm172, %v606, 0
    %609 = vmatprep.subr.mxu0 0.0
    %610 = vmatpush1.msra.mxu0 0.0
    %611 = vmatprep.subr.mxu0 0.0
    %612 = vmatpush1.msra.mxu0 0.0
    %613 = vmatprep.subr.mxu0 0.0
    %614 = vmatpush1.msra.mxu0 0.0
    %615 = vmatprep.subr.mxu0 0.0
    %616 = vmatpush1.msra.mxu0 0.0
    %617 = vmatprep.subr.mxu0 0.0
    %618 = vmatpush1.msra.mxu0 0.0
    %619 = vmatprep.subr.mxu0 0.0
    %620 = vmatpush1.msra.mxu0 0.0
    %621 = vmatprep.subr.mxu0 0.0
    %622 = vmatpush1.msra.mxu0 0.0
    %623 = vmatprep.subr.mxu0 0.0
    %624 = vmatpush1.msra.mxu0 0.0
    %625 = vmatprep.subr.mxu0 %v462
    %626 = vmatpush1.msra.mxu0 %v461
    %627 = vmatprep.subr.mxu0 %v460
    %628 = vmatpush1.msra.mxu0 %v459
    %629 = vmatprep.subr.mxu0 %v458
    %630 = vmatpush1.msra.mxu0 %v457
    %631 = vmatprep.subr.mxu0 %v456
    %632 = vmatpush1.msra.mxu0 %v455
    %633 = vmatprep.subr.mxu0 %v454
    %634 = vmatpush1.msra.mxu0 %v453
    %635 = vmatprep.subr.mxu0 %v452
    %636 = vmatpush1.msra.mxu0 %v451
    %637 = vmatprep.subr.mxu0 %v450
    %638 = vmatpush1.msra.mxu0 %v449
    %639 = vmatprep.subr.mxu0 %v448
    %640 = vmatpush1.msra.mxu0 %v447
    %641 = vmatprep.subr.mxu0 0.0
    %642 = vmatpush2.msra.mxu0 0.0
    %643 = vmatprep.subr.mxu0 0.0
    %644 = vmatpush2.msra.mxu0 0.0
    %645 = vmatprep.subr.mxu0 0.0
    %646 = vmatpush2.msra.mxu0 0.0
    %647 = vmatprep.subr.mxu0 0.0
    %648 = vmatpush2.msra.mxu0 0.0
    %649 = vmatprep.subr.mxu0 0.0
    %650 = vmatpush2.msra.mxu0 0.0
    %651 = vmatprep.subr.mxu0 0.0
    %652 = vmatpush2.msra.mxu0 0.0
    %653 = vmatprep.subr.mxu0 0.0
    %654 = vmatpush2.msra.mxu0 0.0
    %655 = vmatprep.subr.mxu0 0.0
    %656 = vmatpush2.msra.mxu0 0.0
    %657 = vmatprep.subr.mxu0 0.0
    %658 = vmatpush2.msra.mxu0 0.0
    %659 = vmatprep.subr.mxu0 0.0
    %660 = vmatpush2.msra.mxu0 0.0
    %661 = vmatprep.subr.mxu0 0.0
    %662 = vmatpush2.msra.mxu0 0.0
    %663 = vmatprep.subr.mxu0 0.0
    %664 = vmatpush2.msra.mxu0 0.0
    %665 = vmatprep.subr.mxu0 0.0
    %666 = vmatpush2.msra.mxu0 0.0
    %667 = vmatprep.subr.mxu0 0.0
    %668 = vmatpush2.msra.mxu0 0.0
    %669 = vmatprep.subr.mxu0 0.0
    %670 = vmatpush2.msra.mxu0 0.0
    %671 = vmatprep.subr.mxu0 0.0
    %672 = vmatpush2.msra.mxu0 0.0
    %673 = vmatprep.mubr.f32.mxu0 0.0
    %674 = vmatmul.mubr.f32.gmra.mxu0 %v607
    %v675 = vpop.f32.mrf.mxu0
    %v676 = vadd.f32 0.0, %v675
    %v677 = vpop.f32.mrf.mxu0
    %v678 = vadd.f32 0.0, %v677
    %679 = vdwg.mxu0
    %v680 = vadd.f32 %v407, %v676
    %v681 = vxor.u32 %v680, 2147483648
    %v682 = vmul.f32 %v681, 1.442695
    %v683 = vpow.pop %v682
    %v684 = vadd.f32 %v683, 1.0
    %v685 = vrcp.pop %v684
    %v686 = vmul.f32 1.0, %v685
    %v687 = vadd.f32 %v678, %v15
    %v688 = vmul.f32 %v686, %v687
    %v689 = vadd.f32 %v409, %v688
    %v690 = vtanh.pop %v689
    %v691 = vsub.f32 1.0, %v686
    %693 = vrot.lane.b32.xlu0 %v690, 64
    %v694 = vpop.permute.xlu0 %693
    %v696 = vmul.f32 %v691, %v694
    %v697 = vmul.f32 %v686, %v603
    %v698 = vadd.f32 %v696, %v697
    %700 = vrot.lane.b32.xlu0 %v698, 64
    %v701 = vpop.permute.xlu0 %700
    %v702 = vsel %vm172, %v701, 0
    %704 = vmatprep.subr.mxu0 0.0
    %705 = vmatpush1.msra.mxu0 0.0
    %706 = vmatprep.subr.mxu0 0.0
    %707 = vmatpush1.msra.mxu0 0.0
    %708 = vmatprep.subr.mxu0 0.0
    %709 = vmatpush1.msra.mxu0 0.0
    %710 = vmatprep.subr.mxu0 0.0
    %711 = vmatpush1.msra.mxu0 0.0
    %712 = vmatprep.subr.mxu0 0.0
    %713 = vmatpush1.msra.mxu0 0.0
    %714 = vmatprep.subr.mxu0 0.0
    %715 = vmatpush1.msra.mxu0 0.0
    %716 = vmatprep.subr.mxu0 0.0
    %717 = vmatpush1.msra.mxu0 0.0
    %718 = vmatprep.subr.mxu0 0.0
    %719 = vmatpush1.msra.mxu0 0.0
    %720 = vmatprep.subr.mxu0 %v462
    %721 = vmatpush1.msra.mxu0 %v461
    %722 = vmatprep.subr.mxu0 %v460
    %723 = vmatpush1.msra.mxu0 %v459
    %724 = vmatprep.subr.mxu0 %v458
    %725 = vmatpush1.msra.mxu0 %v457
    %726 = vmatprep.subr.mxu0 %v456
    %727 = vmatpush1.msra.mxu0 %v455
    %728 = vmatprep.subr.mxu0 %v454
    %729 = vmatpush1.msra.mxu0 %v453
    %730 = vmatprep.subr.mxu0 %v452
    %731 = vmatpush1.msra.mxu0 %v451
    %732 = vmatprep.subr.mxu0 %v450
    %733 = vmatpush1.msra.mxu0 %v449
    %734 = vmatprep.subr.mxu0 %v448
    %735 = vmatpush1.msra.mxu0 %v447
    %736 = vmatprep.subr.mxu0 0.0
    %737 = vmatpush2.msra.mxu0 0.0
    %738 = vmatprep.subr.mxu0 0.0
    %739 = vmatpush2.msra.mxu0 0.0
    %740 = vmatprep.subr.mxu0 0.0
    %741 = vmatpush2.msra.mxu0 0.0
    %742 = vmatprep.subr.mxu0 0.0
    %743 = vmatpush2.msra.mxu0 0.0
    %744 = vmatprep.subr.mxu0 0.0
    %745 = vmatpush2.msra.mxu0 0.0
    %746 = vmatprep.subr.mxu0 0.0
    %747 = vmatpush2.msra.mxu0 0.0
    %748 = vmatprep.subr.mxu0 0.0
    %749 = vmatpush2.msra.mxu0 0.0
    %750 = vmatprep.subr.mxu0 0.0
    %751 = vmatpush2.msra.mxu0 0.0
    %752 = vmatprep.subr.mxu0 0.0
    %753 = vmatpush2.msra.mxu0 0.0
    %754 = vmatprep.subr.mxu0 0.0
    %755 = vmatpush2.msra.mxu0 0.0
    %756 = vmatprep.subr.mxu0 0.0
    %757 = vmatpush2.msra.mxu0 0.0
    %758 = vmatprep.subr.mxu0 0.0
    %759 = vmatpush2.msra.mxu0 0.0
    %760 = vmatprep.subr.mxu0 0.0
    %761 = vmatpush2.msra.mxu0 0.0
    %762 = vmatprep.subr.mxu0 0.0
    %763 = vmatpush2.msra.mxu0 0.0
    %764 = vmatprep.subr.mxu0 0.0
    %765 = vmatpush2.msra.mxu0 0.0
    %766 = vmatprep.subr.mxu0 0.0
    %767 = vmatpush2.msra.mxu0 0.0
    %768 = vmatprep.mubr.f32.mxu0 0.0
    %769 = vmatmul.mubr.f32.gmra.mxu0 %v702
    %v770 = vpop.f32.mrf.mxu0
    %v771 = vadd.f32 0.0, %v770
    %v772 = vpop.f32.mrf.mxu0
    %v773 = vadd.f32 0.0, %v772
    %774 = vdwg.mxu0
    %v775 = vadd.f32 %v413, %v771
    %v776 = vxor.u32 %v775, 2147483648
    %v777 = vmul.f32 %v776, 1.442695
    %v778 = vpow.pop %v777
    %v779 = vadd.f32 %v778, 1.0
    %v780 = vrcp.pop %v779
    %v781 = vmul.f32 1.0, %v780
    %v782 = vadd.f32 %v773, %v15
    %v783 = vmul.f32 %v781, %v782
    %v784 = vadd.f32 %v415, %v783
    %v785 = vtanh.pop %v784
    %v786 = vsub.f32 1.0, %v781
    %788 = vrot.lane.b32.xlu0 %v785, 64
    %v789 = vpop.permute.xlu0 %788
    %v791 = vmul.f32 %v786, %v789
    %v792 = vmul.f32 %v781, %v698
    %v793 = vadd.f32 %v791, %v792
    %795 = vrot.lane.b32.xlu0 %v793, 64
    %v796 = vpop.permute.xlu0 %795
    %v797 = vsel %vm172, %v796, 0
    %799 = vmatprep.subr.mxu0 0.0
    %800 = vmatpush1.msra.mxu0 0.0
    %801 = vmatprep.subr.mxu0 0.0
    %802 = vmatpush1.msra.mxu0 0.0
    %803 = vmatprep.subr.mxu0 0.0
    %804 = vmatpush1.msra.mxu0 0.0
    %805 = vmatprep.subr.mxu0 0.0
    %806 = vmatpush1.msra.mxu0 0.0
    %807 = vmatprep.subr.mxu0 0.0
    %808 = vmatpush1.msra.mxu0 0.0
    %809 = vmatprep.subr.mxu0 0.0
    %810 = vmatpush1.msra.mxu0 0.0
    %811 = vmatprep.subr.mxu0 0.0
    %812 = vmatpush1.msra.mxu0 0.0
    %813 = vmatprep.subr.mxu0 0.0
    %814 = vmatpush1.msra.mxu0 0.0
    %815 = vmatprep.subr.mxu0 %v462
    %816 = vmatpush1.msra.mxu0 %v461
    %817 = vmatprep.subr.mxu0 %v460
    %818 = vmatpush1.msra.mxu0 %v459
    %819 = vmatprep.subr.mxu0 %v458
    %820 = vmatpush1.msra.mxu0 %v457
    %821 = vmatprep.subr.mxu0 %v456
    %822 = vmatpush1.msra.mxu0 %v455
    %823 = vmatprep.subr.mxu0 %v454
    %824 = vmatpush1.msra.mxu0 %v453
    %825 = vmatprep.subr.mxu0 %v452
    %826 = vmatpush1.msra.mxu0 %v451
    %827 = vmatprep.subr.mxu0 %v450
    %828 = vmatpush1.msra.mxu0 %v449
    %829 = vmatprep.subr.mxu0 %v448
    %830 = vmatpush1.msra.mxu0 %v447
    %831 = vmatprep.subr.mxu0 0.0
    %832 = vmatpush2.msra.mxu0 0.0
    %833 = vmatprep.subr.mxu0 0.0
    %834 = vmatpush2.msra.mxu0 0.0
    %835 = vmatprep.subr.mxu0 0.0
    %836 = vmatpush2.msra.mxu0 0.0
    %837 = vmatprep.subr.mxu0 0.0
    %838 = vmatpush2.msra.mxu0 0.0
    %839 = vmatprep.subr.mxu0 0.0
    %840 = vmatpush2.msra.mxu0 0.0
    %841 = vmatprep.subr.mxu0 0.0
    %842 = vmatpush2.msra.mxu0 0.0
    %843 = vmatprep.subr.mxu0 0.0
    %844 = vmatpush2.msra.mxu0 0.0
    %845 = vmatprep.subr.mxu0 0.0
    %846 = vmatpush2.msra.mxu0 0.0
    %847 = vmatprep.subr.mxu0 0.0
    %848 = vmatpush2.msra.mxu0 0.0
    %849 = vmatprep.subr.mxu0 0.0
    %850 = vmatpush2.msra.mxu0 0.0
    %851 = vmatprep.subr.mxu0 0.0
    %852 = vmatpush2.msra.mxu0 0.0
    %853 = vmatprep.subr.mxu0 0.0
    %854 = vmatpush2.msra.mxu0 0.0
    %855 = vmatprep.subr.mxu0 0.0
    %856 = vmatpush2.msra.mxu0 0.0
    %857 = vmatprep.subr.mxu0 0.0
    %858 = vmatpush2.msra.mxu0 0.0
    %859 = vmatprep.subr.mxu0 0.0
    %860 = vmatpush2.msra.mxu0 0.0
    %861 = vmatprep.subr.mxu0 0.0
    %862 = vmatpush2.msra.mxu0 0.0
    %863 = vmatprep.mubr.f32.mxu0 0.0
    %864 = vmatmul.mubr.f32.gmra.mxu0 %v797
    %v865 = vpop.f32.mrf.mxu0
    %v866 = vadd.f32 0.0, %v865
    %v867 = vpop.f32.mrf.mxu0
    %v868 = vadd.f32 0.0, %v867
    %869 = vdwg.mxu0
    %v870 = vadd.f32 %v419, %v866
    %v871 = vxor.u32 %v870, 2147483648
    %v872 = vmul.f32 %v871, 1.442695
    %v873 = vpow.pop %v872
    %v874 = vadd.f32 %v873, 1.0
    %v875 = vrcp.pop %v874
    %v876 = vmul.f32 1.0, %v875
    %v877 = vadd.f32 %v868, %v15
    %v878 = vmul.f32 %v876, %v877
    %v879 = vadd.f32 %v421, %v878
    %v880 = vtanh.pop %v879
    %v881 = vsub.f32 1.0, %v876
    %883 = vrot.lane.b32.xlu0 %v880, 64
    %v884 = vpop.permute.xlu0 %883
    %v886 = vmul.f32 %v881, %v884
    %v887 = vmul.f32 %v876, %v793
    %v888 = vadd.f32 %v886, %v887
    %890 = vrot.lane.b32.xlu0 %v888, 64
    %v891 = vpop.permute.xlu0 %890
    %v892 = vsel %vm172, %v891, 0
    %894 = vmatprep.subr.mxu0 0.0
    %895 = vmatpush1.msra.mxu0 0.0
    %896 = vmatprep.subr.mxu0 0.0
    %897 = vmatpush1.msra.mxu0 0.0
    %898 = vmatprep.subr.mxu0 0.0
    %899 = vmatpush1.msra.mxu0 0.0
    %900 = vmatprep.subr.mxu0 0.0
    %901 = vmatpush1.msra.mxu0 0.0
    %902 = vmatprep.subr.mxu0 0.0
    %903 = vmatpush1.msra.mxu0 0.0
    %904 = vmatprep.subr.mxu0 0.0
    %905 = vmatpush1.msra.mxu0 0.0
    %906 = vmatprep.subr.mxu0 0.0
    %907 = vmatpush1.msra.mxu0 0.0
    %908 = vmatprep.subr.mxu0 0.0
    %909 = vmatpush1.msra.mxu0 0.0
    %910 = vmatprep.subr.mxu0 %v462
    %911 = vmatpush1.msra.mxu0 %v461
    %912 = vmatprep.subr.mxu0 %v460
    %913 = vmatpush1.msra.mxu0 %v459
    %914 = vmatprep.subr.mxu0 %v458
    %915 = vmatpush1.msra.mxu0 %v457
    %916 = vmatprep.subr.mxu0 %v456
    %917 = vmatpush1.msra.mxu0 %v455
    %918 = vmatprep.subr.mxu0 %v454
    %919 = vmatpush1.msra.mxu0 %v453
    %920 = vmatprep.subr.mxu0 %v452
    %921 = vmatpush1.msra.mxu0 %v451
    %922 = vmatprep.subr.mxu0 %v450
    %923 = vmatpush1.msra.mxu0 %v449
    %924 = vmatprep.subr.mxu0 %v448
    %925 = vmatpush1.msra.mxu0 %v447
    %926 = vmatprep.subr.mxu0 0.0
    %927 = vmatpush2.msra.mxu0 0.0
    %928 = vmatprep.subr.mxu0 0.0
    %929 = vmatpush2.msra.mxu0 0.0
    %930 = vmatprep.subr.mxu0 0.0
    %931 = vmatpush2.msra.mxu0 0.0
    %932 = vmatprep.subr.mxu0 0.0
    %933 = vmatpush2.msra.mxu0 0.0
    %934 = vmatprep.subr.mxu0 0.0
    %935 = vmatpush2.msra.mxu0 0.0
    %936 = vmatprep.subr.mxu0 0.0
    %937 = vmatpush2.msra.mxu0 0.0
    %938 = vmatprep.subr.mxu0 0.0
    %939 = vmatpush2.msra.mxu0 0.0
    %940 = vmatprep.subr.mxu0 0.0
    %941 = vmatpush2.msra.mxu0 0.0
    %942 = vmatprep.subr.mxu0 0.0
    %943 = vmatpush2.msra.mxu0 0.0
    %944 = vmatprep.subr.mxu0 0.0
    %945 = vmatpush2.msra.mxu0 0.0
    %946 = vmatprep.subr.mxu0 0.0
    %947 = vmatpush2.msra.mxu0 0.0
    %948 = vmatprep.subr.mxu0 0.0
    %949 = vmatpush2.msra.mxu0 0.0
    %950 = vmatprep.subr.mxu0 0.0
    %951 = vmatpush2.msra.mxu0 0.0
    %952 = vmatprep.subr.mxu0 0.0
    %953 = vmatpush2.msra.mxu0 0.0
    %954 = vmatprep.subr.mxu0 0.0
    %955 = vmatpush2.msra.mxu0 0.0
    %956 = vmatprep.subr.mxu0 0.0
    %957 = vmatpush2.msra.mxu0 0.0
    %958 = vmatprep.mubr.f32.mxu0 0.0
    %959 = vmatmul.mubr.f32.gmra.mxu0 %v892
    %v960 = vpop.f32.mrf.mxu0
    %v961 = vadd.f32 0.0, %v960
    %v962 = vpop.f32.mrf.mxu0
    %v963 = vadd.f32 0.0, %v962
    %964 = vdwg.mxu0
    %v965 = vadd.f32 %v425, %v961
    %v966 = vxor.u32 %v965, 2147483648
    %v967 = vmul.f32 %v966, 1.442695
    %v968 = vpow.pop %v967
    %v969 = vadd.f32 %v968, 1.0
    %v970 = vrcp.pop %v969
    %v971 = vmul.f32 1.0, %v970
    %v972 = vadd.f32 %v963, %v15
    %v973 = vmul.f32 %v971, %v972
    %v974 = vadd.f32 %v427, %v973
    %v975 = vtanh.pop %v974
    %v976 = vsub.f32 1.0, %v971
    %978 = vrot.lane.b32.xlu0 %v975, 64
    %v979 = vpop.permute.xlu0 %978
    %v981 = vmul.f32 %v976, %v979
    %v982 = vmul.f32 %v971, %v888
    %v983 = vadd.f32 %v981, %v982
    %985 = vrot.lane.b32.xlu0 %v983, 64
    %v986 = vpop.permute.xlu0 %985
    %v987 = vsel %vm172, %v986, 0
    %989 = vmatprep.subr.mxu0 0.0
    %990 = vmatpush1.msra.mxu0 0.0
    %991 = vmatprep.subr.mxu0 0.0
    %992 = vmatpush1.msra.mxu0 0.0
    %993 = vmatprep.subr.mxu0 0.0
    %994 = vmatpush1.msra.mxu0 0.0
    %995 = vmatprep.subr.mxu0 0.0
    %996 = vmatpush1.msra.mxu0 0.0
    %997 = vmatprep.subr.mxu0 0.0
    %998 = vmatpush1.msra.mxu0 0.0
    %999 = vmatprep.subr.mxu0 0.0
    %1000 = vmatpush1.msra.mxu0 0.0
    %1001 = vmatprep.subr.mxu0 0.0
    %1002 = vmatpush1.msra.mxu0 0.0
    %1003 = vmatprep.subr.mxu0 0.0
    %1004 = vmatpush1.msra.mxu0 0.0
    %1005 = vmatprep.subr.mxu0 %v462
    %1006 = vmatpush1.msra.mxu0 %v461
    %1007 = vmatprep.subr.mxu0 %v460
    %1008 = vmatpush1.msra.mxu0 %v459
    %1009 = vmatprep.subr.mxu0 %v458
    %1010 = vmatpush1.msra.mxu0 %v457
    %1011 = vmatprep.subr.mxu0 %v456
    %1012 = vmatpush1.msra.mxu0 %v455
    %1013 = vmatprep.subr.mxu0 %v454
    %1014 = vmatpush1.msra.mxu0 %v453
    %1015 = vmatprep.subr.mxu0 %v452
    %1016 = vmatpush1.msra.mxu0 %v451
    %1017 = vmatprep.subr.mxu0 %v450
    %1018 = vmatpush1.msra.mxu0 %v449
    %1019 = vmatprep.subr.mxu0 %v448
    %1020 = vmatpush1.msra.mxu0 %v447
    %1021 = vmatprep.subr.mxu0 0.0
    %1022 = vmatpush2.msra.mxu0 0.0
    %1023 = vmatprep.subr.mxu0 0.0
    %1024 = vmatpush2.msra.mxu0 0.0
    %1025 = vmatprep.subr.mxu0 0.0
    %1026 = vmatpush2.msra.mxu0 0.0
    %1027 = vmatprep.subr.mxu0 0.0
    %1028 = vmatpush2.msra.mxu0 0.0
    %1029 = vmatprep.subr.mxu0 0.0
    %1030 = vmatpush2.msra.mxu0 0.0
    %1031 = vmatprep.subr.mxu0 0.0
    %1032 = vmatpush2.msra.mxu0 0.0
    %1033 = vmatprep.subr.mxu0 0.0
    %1034 = vmatpush2.msra.mxu0 0.0
    %1035 = vmatprep.subr.mxu0 0.0
    %1036 = vmatpush2.msra.mxu0 0.0
    %1037 = vmatprep.subr.mxu0 0.0
    %1038 = vmatpush2.msra.mxu0 0.0
    %1039 = vmatprep.subr.mxu0 0.0
    %1040 = vmatpush2.msra.mxu0 0.0
    %1041 = vmatprep.subr.mxu0 0.0
    %1042 = vmatpush2.msra.mxu0 0.0
    %1043 = vmatprep.subr.mxu0 0.0
    %1044 = vmatpush2.msra.mxu0 0.0
    %1045 = vmatprep.subr.mxu0 0.0
    %1046 = vmatpush2.msra.mxu0 0.0
    %1047 = vmatprep.subr.mxu0 0.0
    %1048 = vmatpush2.msra.mxu0 0.0
    %1049 = vmatprep.subr.mxu0 0.0
    %1050 = vmatpush2.msra.mxu0 0.0
    %1051 = vmatprep.subr.mxu0 0.0
    %1052 = vmatpush2.msra.mxu0 0.0
    %1053 = vmatprep.mubr.f32.mxu0 0.0
    %1054 = vmatmul.mubr.f32.gmra.mxu0 %v987
    %v1055 = vpop.f32.mrf.mxu0
    %v1056 = vadd.f32 0.0, %v1055
    %v1057 = vpop.f32.mrf.mxu0
    %v1058 = vadd.f32 0.0, %v1057
    %1059 = vdwg.mxu0
    %v1060 = vadd.f32 %v431, %v1056
    %v1061 = vxor.u32 %v1060, 2147483648
    %v1062 = vmul.f32 %v1061, 1.442695
    %v1063 = vpow.pop %v1062
    %v1064 = vadd.f32 %v1063, 1.0
    %v1065 = vrcp.pop %v1064
    %v1066 = vmul.f32 1.0, %v1065
    %v1067 = vadd.f32 %v1058, %v15
    %v1068 = vmul.f32 %v1066, %v1067
    %v1069 = vadd.f32 %v433, %v1068
    %v1070 = vtanh.pop %v1069
    %v1071 = vsub.f32 1.0, %v1066
    %1073 = vrot.lane.b32.xlu0 %v1070, 64
    %v1074 = vpop.permute.xlu0 %1073
    %v1076 = vmul.f32 %v1071, %v1074
    %v1077 = vmul.f32 %v1066, %v983
    %v1078 = vadd.f32 %v1076, %v1077
    %1080 = vrot.lane.b32.xlu0 %v1078, 64
    %v1081 = vpop.permute.xlu0 %1080
    %v1082 = vsel %vm172, %v1081, 0
    %1084 = vmatprep.subr.mxu0 0.0
    %1085 = vmatpush1.msra.mxu0 0.0
    %1086 = vmatprep.subr.mxu0 0.0
    %1087 = vmatpush1.msra.mxu0 0.0
    %1088 = vmatprep.subr.mxu0 0.0
    %1089 = vmatpush1.msra.mxu0 0.0
    %1090 = vmatprep.subr.mxu0 0.0
    %1091 = vmatpush1.msra.mxu0 0.0
    %1092 = vmatprep.subr.mxu0 0.0
    %1093 = vmatpush1.msra.mxu0 0.0
    %1094 = vmatprep.subr.mxu0 0.0
    %1095 = vmatpush1.msra.mxu0 0.0
    %1096 = vmatprep.subr.mxu0 0.0
    %1097 = vmatpush1.msra.mxu0 0.0
    %1098 = vmatprep.subr.mxu0 0.0
    %1099 = vmatpush1.msra.mxu0 0.0
    %1100 = vmatprep.subr.mxu0 %v462
    %1101 = vmatpush1.msra.mxu0 %v461
    %1102 = vmatprep.subr.mxu0 %v460
    %1103 = vmatpush1.msra.mxu0 %v459
    %1104 = vmatprep.subr.mxu0 %v458
    %1105 = vmatpush1.msra.mxu0 %v457
    %1106 = vmatprep.subr.mxu0 %v456
    %1107 = vmatpush1.msra.mxu0 %v455
    %1108 = vmatprep.subr.mxu0 %v454
    %1109 = vmatpush1.msra.mxu0 %v453
    %1110 = vmatprep.subr.mxu0 %v452
    %1111 = vmatpush1.msra.mxu0 %v451
    %1112 = vmatprep.subr.mxu0 %v450
    %1113 = vmatpush1.msra.mxu0 %v449
    %1114 = vmatprep.subr.mxu0 %v448
    %1115 = vmatpush1.msra.mxu0 %v447
    %1116 = vmatprep.subr.mxu0 0.0
    %1117 = vmatpush2.msra.mxu0 0.0
    %1118 = vmatprep.subr.mxu0 0.0
    %1119 = vmatpush2.msra.mxu0 0.0
    %1120 = vmatprep.subr.mxu0 0.0
    %1121 = vmatpush2.msra.mxu0 0.0
    %1122 = vmatprep.subr.mxu0 0.0
    %1123 = vmatpush2.msra.mxu0 0.0
    %1124 = vmatprep.subr.mxu0 0.0
    %1125 = vmatpush2.msra.mxu0 0.0
    %1126 = vmatprep.subr.mxu0 0.0
    %1127 = vmatpush2.msra.mxu0 0.0
    %1128 = vmatprep.subr.mxu0 0.0
    %1129 = vmatpush2.msra.mxu0 0.0
    %1130 = vmatprep.subr.mxu0 0.0
    %1131 = vmatpush2.msra.mxu0 0.0
    %1132 = vmatprep.subr.mxu0 0.0
    %1133 = vmatpush2.msra.mxu0 0.0
    %1134 = vmatprep.subr.mxu0 0.0
    %1135 = vmatpush2.msra.mxu0 0.0
    %1136 = vmatprep.subr.mxu0 0.0
    %1137 = vmatpush2.msra.mxu0 0.0
    %1138 = vmatprep.subr.mxu0 0.0
    %1139 = vmatpush2.msra.mxu0 0.0
    %1140 = vmatprep.subr.mxu0 0.0
    %1141 = vmatpush2.msra.mxu0 0.0
    %1142 = vmatprep.subr.mxu0 0.0
    %1143 = vmatpush2.msra.mxu0 0.0
    %1144 = vmatprep.subr.mxu0 0.0
    %1145 = vmatpush2.msra.mxu0 0.0
    %1146 = vmatprep.subr.mxu0 0.0
    %1147 = vmatpush2.msra.mxu0 0.0
    %1148 = vmatprep.mubr.f32.mxu0 0.0
    %1149 = vmatmul.mubr.f32.gmra.mxu0 %v1082
    %v1150 = vpop.f32.mrf.mxu0
    %v1151 = vadd.f32 0.0, %v1150
    %v1152 = vpop.f32.mrf.mxu0
    %v1153 = vadd.f32 0.0, %v1152
    %1154 = vdwg.mxu0
    %v1155 = vadd.f32 %v437, %v1151
    %v1156 = vxor.u32 %v1155, 2147483648
    %v1157 = vmul.f32 %v1156, 1.442695
    %v1158 = vpow.pop %v1157
    %v1159 = vadd.f32 %v1158, 1.0
    %v1160 = vrcp.pop %v1159
    %v1161 = vmul.f32 1.0, %v1160
    %v1162 = vadd.f32 %v1153, %v15
    %v1163 = vmul.f32 %v1161, %v1162
    %v1164 = vadd.f32 %v439, %v1163
    %v1165 = vtanh.pop %v1164
    %v1166 = vsub.f32 1.0, %v1161
    %1168 = vrot.lane.b32.xlu0 %v1165, 64
    %v1169 = vpop.permute.xlu0 %1168
    %v1171 = vmul.f32 %v1166, %v1169
    %v1172 = vmul.f32 %v1161, %v1078
    %v1173 = vadd.f32 %v1171, %v1172
    %1175 = vrot.lane.b32.xlu0 %v1173, 64
    %v1176 = vpop.permute.xlu0 %1175
    %v1177 = vsel %vm172, %v1176, 0
    %1179 = vmatprep.subr.mxu0 0.0
    %1180 = vmatpush1.msra.mxu0 0.0
    %1181 = vmatprep.subr.mxu0 0.0
    %1182 = vmatpush1.msra.mxu0 0.0
    %1183 = vmatprep.subr.mxu0 0.0
    %1184 = vmatpush1.msra.mxu0 0.0
    %1185 = vmatprep.subr.mxu0 0.0
    %1186 = vmatpush1.msra.mxu0 0.0
    %1187 = vmatprep.subr.mxu0 0.0
    %1188 = vmatpush1.msra.mxu0 0.0
    %1189 = vmatprep.subr.mxu0 0.0
    %1190 = vmatpush1.msra.mxu0 0.0
    %1191 = vmatprep.subr.mxu0 0.0
    %1192 = vmatpush1.msra.mxu0 0.0
    %1193 = vmatprep.subr.mxu0 0.0
    %1194 = vmatpush1.msra.mxu0 0.0
    %1195 = vmatprep.subr.mxu0 %v462
    %1196 = vmatpush1.msra.mxu0 %v461
    %1197 = vmatprep.subr.mxu0 %v460
    %1198 = vmatpush1.msra.mxu0 %v459
    %1199 = vmatprep.subr.mxu0 %v458
    %1200 = vmatpush1.msra.mxu0 %v457
    %1201 = vmatprep.subr.mxu0 %v456
    %1202 = vmatpush1.msra.mxu0 %v455
    %1203 = vmatprep.subr.mxu0 %v454
    %1204 = vmatpush1.msra.mxu0 %v453
    %1205 = vmatprep.subr.mxu0 %v452
    %1206 = vmatpush1.msra.mxu0 %v451
    %1207 = vmatprep.subr.mxu0 %v450
    %1208 = vmatpush1.msra.mxu0 %v449
    %1209 = vmatprep.subr.mxu0 %v448
    %1210 = vmatpush1.msra.mxu0 %v447
    %1211 = vmatprep.subr.mxu0 0.0
    %1212 = vmatpush2.msra.mxu0 0.0
    %1213 = vmatprep.subr.mxu0 0.0
    %1214 = vmatpush2.msra.mxu0 0.0
    %1215 = vmatprep.subr.mxu0 0.0
    %1216 = vmatpush2.msra.mxu0 0.0
    %1217 = vmatprep.subr.mxu0 0.0
    %1218 = vmatpush2.msra.mxu0 0.0
    %1219 = vmatprep.subr.mxu0 0.0
    %1220 = vmatpush2.msra.mxu0 0.0
    %1221 = vmatprep.subr.mxu0 0.0
    %1222 = vmatpush2.msra.mxu0 0.0
    %1223 = vmatprep.subr.mxu0 0.0
    %1224 = vmatpush2.msra.mxu0 0.0
    %1225 = vmatprep.subr.mxu0 0.0
    %1226 = vmatpush2.msra.mxu0 0.0
    %1227 = vmatprep.subr.mxu0 0.0
    %1228 = vmatpush2.msra.mxu0 0.0
    %1229 = vmatprep.subr.mxu0 0.0
    %1230 = vmatpush2.msra.mxu0 0.0
    %1231 = vmatprep.subr.mxu0 0.0
    %1232 = vmatpush2.msra.mxu0 0.0
    %1233 = vmatprep.subr.mxu0 0.0
    %1234 = vmatpush2.msra.mxu0 0.0
    %1235 = vmatprep.subr.mxu0 0.0
    %1236 = vmatpush2.msra.mxu0 0.0
    %1237 = vmatprep.subr.mxu0 0.0
    %1238 = vmatpush2.msra.mxu0 0.0
    %1239 = vmatprep.subr.mxu0 0.0
    %1240 = vmatpush2.msra.mxu0 0.0
    %1241 = vmatprep.subr.mxu0 0.0
    %1242 = vmatpush2.msra.mxu0 0.0
    %1243 = vmatprep.mubr.f32.mxu0 0.0
    %1244 = vmatmul.mubr.f32.gmra.mxu0 %v1177
    %v1245 = vpop.f32.mrf.mxu0
    %v1246 = vadd.f32 0.0, %v1245
    %v1247 = vpop.f32.mrf.mxu0
    %v1248 = vadd.f32 0.0, %v1247
    %1249 = vdwg.mxu0
    %v1250 = vadd.f32 %v443, %v1246
    %v1251 = vxor.u32 %v1250, 2147483648
    %v1252 = vmul.f32 %v1251, 1.442695
    %v1253 = vpow.pop %v1252
    %v1254 = vadd.f32 %v1253, 1.0
    %v1255 = vrcp.pop %v1254
    %v1256 = vmul.f32 1.0, %v1255
    %v1257 = vadd.f32 %v1248, %v15
    %v1258 = vmul.f32 %v1256, %v1257
    %v1259 = vadd.f32 %v445, %v1258
    %v1260 = vtanh.pop %v1259
    %v1261 = vsub.f32 1.0, %v1256
    %1263 = vrot.lane.b32.xlu0 %v1260, 64
    %v1264 = vpop.permute.xlu0 %1263
    %v1266 = vmul.f32 %v1261, %v1264
    %v1267 = vmul.f32 %v1256, %v1173
    %v1268 = vadd.f32 %v1266, %v1267
    %1270 = vrot.lane.b32.xlu0 %v1268, 64
    %v1271 = vpop.permute.xlu0 %1270
    %v1272 = vsel %vm172, %v1271, 0
    %1274 = vmatprep.subr.mxu0 0.0
    %1275 = vmatpush1.msra.mxu0 0.0
    %1276 = vmatprep.subr.mxu0 0.0
    %1277 = vmatpush1.msra.mxu0 0.0
    %1278 = vmatprep.subr.mxu0 0.0
    %1279 = vmatpush1.msra.mxu0 0.0
    %1280 = vmatprep.subr.mxu0 0.0
    %1281 = vmatpush1.msra.mxu0 0.0
    %1282 = vmatprep.subr.mxu0 0.0
    %1283 = vmatpush1.msra.mxu0 0.0
    %1284 = vmatprep.subr.mxu0 0.0
    %1285 = vmatpush1.msra.mxu0 0.0
    %1286 = vmatprep.subr.mxu0 0.0
    %1287 = vmatpush1.msra.mxu0 0.0
    %1288 = vmatprep.subr.mxu0 0.0
    %1289 = vmatpush1.msra.mxu0 0.0
    %1290 = vmatprep.subr.mxu0 %v510
    %1291 = vmatpush1.msra.mxu0 %v509
    %1292 = vmatprep.subr.mxu0 %v508
    %1293 = vmatpush1.msra.mxu0 %v507
    %1294 = vmatprep.subr.mxu0 %v506
    %1295 = vmatpush1.msra.mxu0 %v505
    %1296 = vmatprep.subr.mxu0 %v504
    %1297 = vmatpush1.msra.mxu0 %v503
    %1298 = vmatprep.subr.mxu0 %v502
    %1299 = vmatpush1.msra.mxu0 %v501
    %1300 = vmatprep.subr.mxu0 %v500
    %1301 = vmatpush1.msra.mxu0 %v499
    %1302 = vmatprep.subr.mxu0 %v498
    %1303 = vmatpush1.msra.mxu0 %v497
    %1304 = vmatprep.subr.mxu0 %v496
    %1305 = vmatpush1.msra.mxu0 %v495
    %1306 = vmatprep.subr.mxu0 0.0
    %1307 = vmatpush2.msra.mxu0 0.0
    %1308 = vmatprep.subr.mxu0 0.0
    %1309 = vmatpush2.msra.mxu0 0.0
    %1310 = vmatprep.subr.mxu0 0.0
    %1311 = vmatpush2.msra.mxu0 0.0
    %1312 = vmatprep.subr.mxu0 0.0
    %1313 = vmatpush2.msra.mxu0 0.0
    %1314 = vmatprep.subr.mxu0 0.0
    %1315 = vmatpush2.msra.mxu0 0.0
    %1316 = vmatprep.subr.mxu0 0.0
    %1317 = vmatpush2.msra.mxu0 0.0
    %1318 = vmatprep.subr.mxu0 0.0
    %1319 = vmatpush2.msra.mxu0 0.0
    %1320 = vmatprep.subr.mxu0 0.0
    %1321 = vmatpush2.msra.mxu0 0.0
    %1322 = vmatprep.subr.mxu0 0.0
    %1323 = vmatpush2.msra.mxu0 0.0
    %1324 = vmatprep.subr.mxu0 0.0
    %1325 = vmatpush2.msra.mxu0 0.0
    %1326 = vmatprep.subr.mxu0 0.0
    %1327 = vmatpush2.msra.mxu0 0.0
    %1328 = vmatprep.subr.mxu0 0.0
    %1329 = vmatpush2.msra.mxu0 0.0
    %1330 = vmatprep.subr.mxu0 0.0
    %1331 = vmatpush2.msra.mxu0 0.0
    %1332 = vmatprep.subr.mxu0 0.0
    %1333 = vmatpush2.msra.mxu0 0.0
    %1334 = vmatprep.subr.mxu0 0.0
    %1335 = vmatpush2.msra.mxu0 0.0
    %1336 = vmatprep.subr.mxu0 0.0
    %1337 = vmatpush2.msra.mxu0 0.0
    %1338 = vmatprep.mubr.f32.mxu0 0.0
    %1339 = vmatmul.mubr.f32.gmra.mxu0 %v1272
    %v1340 = vpop.f32.mrf.mxu0
    %v1341 = vadd.f32 0.0, %v1340
    %v1342 = vpop.f32.mrf.mxu0
    %v1343 = vadd.f32 0.0, %v1342
    %1344 = vdwg.mxu0
    %1345 = vmatprep.subr.mxu0 0.0
    %1346 = vmatpush1.msra.mxu0 0.0
    %1347 = vmatprep.subr.mxu0 0.0
    %1348 = vmatpush1.msra.mxu0 0.0
    %1349 = vmatprep.subr.mxu0 0.0
    %1350 = vmatpush1.msra.mxu0 0.0
    %1351 = vmatprep.subr.mxu0 0.0
    %1352 = vmatpush1.msra.mxu0 0.0
    %1353 = vmatprep.subr.mxu0 0.0
    %1354 = vmatpush1.msra.mxu0 0.0
    %1355 = vmatprep.subr.mxu0 0.0
    %1356 = vmatpush1.msra.mxu0 0.0
    %1357 = vmatprep.subr.mxu0 0.0
    %1358 = vmatpush1.msra.mxu0 0.0
    %1359 = vmatprep.subr.mxu0 0.0
    %1360 = vmatpush1.msra.mxu0 0.0
    %1361 = vmatprep.subr.mxu0 %v494
    %1362 = vmatpush1.msra.mxu0 %v493
    %1363 = vmatprep.subr.mxu0 %v492
    %1364 = vmatpush1.msra.mxu0 %v491
    %1365 = vmatprep.subr.mxu0 %v490
    %1366 = vmatpush1.msra.mxu0 %v489
    %1367 = vmatprep.subr.mxu0 %v488
    %1368 = vmatpush1.msra.mxu0 %v487
    %1369 = vmatprep.subr.mxu0 %v486
    %1370 = vmatpush1.msra.mxu0 %v485
    %1371 = vmatprep.subr.mxu0 %v484
    %1372 = vmatpush1.msra.mxu0 %v483
    %1373 = vmatprep.subr.mxu0 %v482
    %1374 = vmatpush1.msra.mxu0 %v481
    %1375 = vmatprep.subr.mxu0 %v480
    %1376 = vmatpush1.msra.mxu0 %v479
    %1377 = vmatprep.subr.mxu0 0.0
    %1378 = vmatpush2.msra.mxu0 0.0
    %1379 = vmatprep.subr.mxu0 0.0
    %1380 = vmatpush2.msra.mxu0 0.0
    %1381 = vmatprep.subr.mxu0 0.0
    %1382 = vmatpush2.msra.mxu0 0.0
    %1383 = vmatprep.subr.mxu0 0.0
    %1384 = vmatpush2.msra.mxu0 0.0
    %1385 = vmatprep.subr.mxu0 0.0
    %1386 = vmatpush2.msra.mxu0 0.0
    %1387 = vmatprep.subr.mxu0 0.0
    %1388 = vmatpush2.msra.mxu0 0.0
    %1389 = vmatprep.subr.mxu0 0.0
    %1390 = vmatpush2.msra.mxu0 0.0
    %1391 = vmatprep.subr.mxu0 0.0
    %1392 = vmatpush2.msra.mxu0 0.0
    %1393 = vmatprep.subr.mxu0 0.0
    %1394 = vmatpush2.msra.mxu0 0.0
    %1395 = vmatprep.subr.mxu0 0.0
    %1396 = vmatpush2.msra.mxu0 0.0
    %1397 = vmatprep.subr.mxu0 0.0
    %1398 = vmatpush2.msra.mxu0 0.0
    %1399 = vmatprep.subr.mxu0 0.0
    %1400 = vmatpush2.msra.mxu0 0.0
    %1401 = vmatprep.subr.mxu0 0.0
    %1402 = vmatpush2.msra.mxu0 0.0
    %1403 = vmatprep.subr.mxu0 0.0
    %1404 = vmatpush2.msra.mxu0 0.0
    %1405 = vmatprep.subr.mxu0 0.0
    %1406 = vmatpush2.msra.mxu0 0.0
    %1407 = vmatprep.subr.mxu0 0.0
    %1408 = vmatpush2.msra.mxu0 0.0
    %1409 = vmatprep.mubr.f32.mxu0 0.0
    %1410 = vmatmul.mubr.f32.gmra.mxu0 %v607
    %v1411 = vpop.f32.mrf.mxu0
    %v1412 = vadd.f32 %v1341, %v1411
    %v1413 = vpop.f32.mrf.mxu0
    %v1414 = vadd.f32 %v1343, %v1413
    %1415 = vdwg.mxu0
    %v1416 = vadd.f32 %v1412, %v22
    %v1417 = vadd.f32 %v1414, %v26
    %1418 = vmatprep.subr.mxu0 0.0
    %1419 = vmatpush1.msra.mxu0 0.0
    %1420 = vmatprep.subr.mxu0 0.0
    %1421 = vmatpush1.msra.mxu0 0.0
    %1422 = vmatprep.subr.mxu0 0.0
    %1423 = vmatpush1.msra.mxu0 0.0
    %1424 = vmatprep.subr.mxu0 0.0
    %1425 = vmatpush1.msra.mxu0 0.0
    %1426 = vmatprep.subr.mxu0 0.0
    %1427 = vmatpush1.msra.mxu0 0.0
    %1428 = vmatprep.subr.mxu0 0.0
    %1429 = vmatpush1.msra.mxu0 0.0
    %1430 = vmatprep.subr.mxu0 0.0
    %1431 = vmatpush1.msra.mxu0 0.0
    %1432 = vmatprep.subr.mxu0 0.0
    %1433 = vmatpush1.msra.mxu0 0.0
    %1434 = vmatprep.subr.mxu0 %v478
    %1435 = vmatpush1.msra.mxu0 %v477
    %1436 = vmatprep.subr.mxu0 %v476
    %1437 = vmatpush1.msra.mxu0 %v475
    %1438 = vmatprep.subr.mxu0 %v474
    %1439 = vmatpush1.msra.mxu0 %v473
    %1440 = vmatprep.subr.mxu0 %v472
    %1441 = vmatpush1.msra.mxu0 %v471
    %1442 = vmatprep.subr.mxu0 %v470
    %1443 = vmatpush1.msra.mxu0 %v469
    %1444 = vmatprep.subr.mxu0 %v468
    %1445 = vmatpush1.msra.mxu0 %v467
    %1446 = vmatprep.subr.mxu0 %v466
    %1447 = vmatpush1.msra.mxu0 %v465
    %1448 = vmatprep.subr.mxu0 %v464
    %1449 = vmatpush1.msra.mxu0 %v463
    %1450 = vmatprep.subr.mxu0 0.0
    %1451 = vmatpush2.msra.mxu0 0.0
    %1452 = vmatprep.subr.mxu0 0.0
    %1453 = vmatpush2.msra.mxu0 0.0
    %1454 = vmatprep.subr.mxu0 0.0
    %1455 = vmatpush2.msra.mxu0 0.0
    %1456 = vmatprep.subr.mxu0 0.0
    %1457 = vmatpush2.msra.mxu0 0.0
    %1458 = vmatprep.subr.mxu0 0.0
    %1459 = vmatpush2.msra.mxu0 0.0
    %1460 = vmatprep.subr.mxu0 0.0
    %1461 = vmatpush2.msra.mxu0 0.0
    %1462 = vmatprep.subr.mxu0 0.0
    %1463 = vmatpush2.msra.mxu0 0.0
    %1464 = vmatprep.subr.mxu0 0.0
    %1465 = vmatpush2.msra.mxu0 0.0
    %1466 = vmatprep.subr.mxu0 0.0
    %1467 = vmatpush2.msra.mxu0 0.0
    %1468 = vmatprep.subr.mxu0 0.0
    %1469 = vmatpush2.msra.mxu0 0.0
    %1470 = vmatprep.subr.mxu0 0.0
    %1471 = vmatpush2.msra.mxu0 0.0
    %1472 = vmatprep.subr.mxu0 0.0
    %1473 = vmatpush2.msra.mxu0 0.0
    %1474 = vmatprep.subr.mxu0 0.0
    %1475 = vmatpush2.msra.mxu0 0.0
    %1476 = vmatprep.subr.mxu0 0.0
    %1477 = vmatpush2.msra.mxu0 0.0
    %1478 = vmatprep.subr.mxu0 0.0
    %1479 = vmatpush2.msra.mxu0 0.0
    %1480 = vmatprep.subr.mxu0 0.0
    %1481 = vmatpush2.msra.mxu0 0.0
    %1482 = vmatprep.mubr.f32.mxu0 0.0
    %1483 = vmatmul.mubr.f32.gmra.mxu0 %v512
    %v1484 = vpop.f32.mrf.mxu0
    %v1485 = vadd.f32 0.0, %v1484
    %v1486 = vpop.f32.mrf.mxu0
    %v1487 = vadd.f32 0.0, %v1486
    %1488 = vdwg.mxu0
    %v1489 = vadd.f32 %v1416, %v1485
    %v1490 = vxor.u32 %v1489, 2147483648
    %v1491 = vmul.f32 %v1490, 1.442695
    %v1492 = vpow.pop %v1491
    %v1493 = vadd.f32 %v1492, 1.0
    %v1494 = vrcp.pop %v1493
    %v1495 = vmul.f32 1.0, %v1494
    %v1496 = vadd.f32 %v1487, %v29
    %v1497 = vmul.f32 %v1495, %v1496
    %v1498 = vadd.f32 %v1417, %v1497
    %v1499 = vtanh.pop %v1498
    %v1500 = vsub.f32 1.0, %v1495
    %1502 = vrot.lane.b32.xlu0 %v1499, 64
    %v1503 = vpop.permute.xlu0 %1502
    %v1505 = vmul.f32 %v1500, %v1503
    %v1506 = vmul.f32 %v1495, 0.0
    %v1507 = vadd.f32 %v1505, %v1506
    %1508 = vmatprep.subr.mxu0 0.0
    %1509 = vmatpush1.msra.mxu0 0.0
    %1510 = vmatprep.subr.mxu0 0.0
    %1511 = vmatpush1.msra.mxu0 0.0
    %1512 = vmatprep.subr.mxu0 0.0
    %1513 = vmatpush1.msra.mxu0 0.0
    %1514 = vmatprep.subr.mxu0 0.0
    %1515 = vmatpush1.msra.mxu0 0.0
    %1516 = vmatprep.subr.mxu0 0.0
    %1517 = vmatpush1.msra.mxu0 0.0
    %1518 = vmatprep.subr.mxu0 0.0
    %1519 = vmatpush1.msra.mxu0 0.0
    %1520 = vmatprep.subr.mxu0 0.0
    %1521 = vmatpush1.msra.mxu0 0.0
    %1522 = vmatprep.subr.mxu0 0.0
    %1523 = vmatpush1.msra.mxu0 0.0
    %1524 = vmatprep.subr.mxu0 %v510
    %1525 = vmatpush1.msra.mxu0 %v509
    %1526 = vmatprep.subr.mxu0 %v508
    %1527 = vmatpush1.msra.mxu0 %v507
    %1528 = vmatprep.subr.mxu0 %v506
    %1529 = vmatpush1.msra.mxu0 %v505
    %1530 = vmatprep.subr.mxu0 %v504
    %1531 = vmatpush1.msra.mxu0 %v503
    %1532 = vmatprep.subr.mxu0 %v502
    %1533 = vmatpush1.msra.mxu0 %v501
    %1534 = vmatprep.subr.mxu0 %v500
    %1535 = vmatpush1.msra.mxu0 %v499
    %1536 = vmatprep.subr.mxu0 %v498
    %1537 = vmatpush1.msra.mxu0 %v497
    %1538 = vmatprep.subr.mxu0 %v496
    %1539 = vmatpush1.msra.mxu0 %v495
    %1540 = vmatprep.subr.mxu0 0.0
    %1541 = vmatpush2.msra.mxu0 0.0
    %1542 = vmatprep.subr.mxu0 0.0
    %1543 = vmatpush2.msra.mxu0 0.0
    %1544 = vmatprep.subr.mxu0 0.0
    %1545 = vmatpush2.msra.mxu0 0.0
    %1546 = vmatprep.subr.mxu0 0.0
    %1547 = vmatpush2.msra.mxu0 0.0
    %1548 = vmatprep.subr.mxu0 0.0
    %1549 = vmatpush2.msra.mxu0 0.0
    %1550 = vmatprep.subr.mxu0 0.0
    %1551 = vmatpush2.msra.mxu0 0.0
    %1552 = vmatprep.subr.mxu0 0.0
    %1553 = vmatpush2.msra.mxu0 0.0
    %1554 = vmatprep.subr.mxu0 0.0
    %1555 = vmatpush2.msra.mxu0 0.0
    %1556 = vmatprep.subr.mxu0 0.0
    %1557 = vmatpush2.msra.mxu0 0.0
    %1558 = vmatprep.subr.mxu0 0.0
    %1559 = vmatpush2.msra.mxu0 0.0
    %1560 = vmatprep.subr.mxu0 0.0
    %1561 = vmatpush2.msra.mxu0 0.0
    %1562 = vmatprep.subr.mxu0 0.0
    %1563 = vmatpush2.msra.mxu0 0.0
    %1564 = vmatprep.subr.mxu0 0.0
    %1565 = vmatpush2.msra.mxu0 0.0
    %1566 = vmatprep.subr.mxu0 0.0
    %1567 = vmatpush2.msra.mxu0 0.0
    %1568 = vmatprep.subr.mxu0 0.0
    %1569 = vmatpush2.msra.mxu0 0.0
    %1570 = vmatprep.subr.mxu0 0.0
    %1571 = vmatpush2.msra.mxu0 0.0
    %1572 = vmatprep.mubr.f32.mxu0 0.0
    %1573 = vmatmul.mubr.f32.gmra.mxu0 %v1177
    %v1574 = vpop.f32.mrf.mxu0
    %v1575 = vadd.f32 0.0, %v1574
    %v1576 = vpop.f32.mrf.mxu0
    %v1577 = vadd.f32 0.0, %v1576
    %1578 = vdwg.mxu0
    %1579 = vmatprep.subr.mxu0 0.0
    %1580 = vmatpush1.msra.mxu0 0.0
    %1581 = vmatprep.subr.mxu0 0.0
    %1582 = vmatpush1.msra.mxu0 0.0
    %1583 = vmatprep.subr.mxu0 0.0
    %1584 = vmatpush1.msra.mxu0 0.0
    %1585 = vmatprep.subr.mxu0 0.0
    %1586 = vmatpush1.msra.mxu0 0.0
    %1587 = vmatprep.subr.mxu0 0.0
    %1588 = vmatpush1.msra.mxu0 0.0
    %1589 = vmatprep.subr.mxu0 0.0
    %1590 = vmatpush1.msra.mxu0 0.0
    %1591 = vmatprep.subr.mxu0 0.0
    %1592 = vmatpush1.msra.mxu0 0.0
    %1593 = vmatprep.subr.mxu0 0.0
    %1594 = vmatpush1.msra.mxu0 0.0
    %1595 = vmatprep.subr.mxu0 %v494
    %1596 = vmatpush1.msra.mxu0 %v493
    %1597 = vmatprep.subr.mxu0 %v492
    %1598 = vmatpush1.msra.mxu0 %v491
    %1599 = vmatprep.subr.mxu0 %v490
    %1600 = vmatpush1.msra.mxu0 %v489
    %1601 = vmatprep.subr.mxu0 %v488
    %1602 = vmatpush1.msra.mxu0 %v487
    %1603 = vmatprep.subr.mxu0 %v486
    %1604 = vmatpush1.msra.mxu0 %v485
    %1605 = vmatprep.subr.mxu0 %v484
    %1606 = vmatpush1.msra.mxu0 %v483
    %1607 = vmatprep.subr.mxu0 %v482
    %1608 = vmatpush1.msra.mxu0 %v481
    %1609 = vmatprep.subr.mxu0 %v480
    %1610 = vmatpush1.msra.mxu0 %v479
    %1611 = vmatprep.subr.mxu0 0.0
    %1612 = vmatpush2.msra.mxu0 0.0
    %1613 = vmatprep.subr.mxu0 0.0
    %1614 = vmatpush2.msra.mxu0 0.0
    %1615 = vmatprep.subr.mxu0 0.0
    %1616 = vmatpush2.msra.mxu0 0.0
    %1617 = vmatprep.subr.mxu0 0.0
    %1618 = vmatpush2.msra.mxu0 0.0
    %1619 = vmatprep.subr.mxu0 0.0
    %1620 = vmatpush2.msra.mxu0 0.0
    %1621 = vmatprep.subr.mxu0 0.0
    %1622 = vmatpush2.msra.mxu0 0.0
    %1623 = vmatprep.subr.mxu0 0.0
    %1624 = vmatpush2.msra.mxu0 0.0
    %1625 = vmatprep.subr.mxu0 0.0
    %1626 = vmatpush2.msra.mxu0 0.0
    %1627 = vmatprep.subr.mxu0 0.0
    %1628 = vmatpush2.msra.mxu0 0.0
    %1629 = vmatprep.subr.mxu0 0.0
    %1630 = vmatpush2.msra.mxu0 0.0
    %1631 = vmatprep.subr.mxu0 0.0
    %1632 = vmatpush2.msra.mxu0 0.0
    %1633 = vmatprep.subr.mxu0 0.0
    %1634 = vmatpush2.msra.mxu0 0.0
    %1635 = vmatprep.subr.mxu0 0.0
    %1636 = vmatpush2.msra.mxu0 0.0
    %1637 = vmatprep.subr.mxu0 0.0
    %1638 = vmatpush2.msra.mxu0 0.0
    %1639 = vmatprep.subr.mxu0 0.0
    %1640 = vmatpush2.msra.mxu0 0.0
    %1641 = vmatprep.subr.mxu0 0.0
    %1642 = vmatpush2.msra.mxu0 0.0
    %1643 = vmatprep.mubr.f32.mxu0 0.0
    %1644 = vmatmul.mubr.f32.gmra.mxu0 %v702
    %v1645 = vpop.f32.mrf.mxu0
    %v1646 = vadd.f32 %v1575, %v1645
    %v1647 = vpop.f32.mrf.mxu0
    %v1648 = vadd.f32 %v1577, %v1647
    %1649 = vdwg.mxu0
    %v1650 = vadd.f32 %v1646, %v22
    %v1651 = vadd.f32 %v1648, %v26
    %1653 = vrot.lane.b32.xlu0 %v1507, 64
    %v1654 = vpop.permute.xlu0 %1653
    %v1655 = vsel %vm172, %v1654, 0
    %1657 = vmatprep.subr.mxu0 0.0
    %1658 = vmatpush1.msra.mxu0 0.0
    %1659 = vmatprep.subr.mxu0 0.0
    %1660 = vmatpush1.msra.mxu0 0.0
    %1661 = vmatprep.subr.mxu0 0.0
    %1662 = vmatpush1.msra.mxu0 0.0
    %1663 = vmatprep.subr.mxu0 0.0
    %1664 = vmatpush1.msra.mxu0 0.0
    %1665 = vmatprep.subr.mxu0 0.0
    %1666 = vmatpush1.msra.mxu0 0.0
    %1667 = vmatprep.subr.mxu0 0.0
    %1668 = vmatpush1.msra.mxu0 0.0
    %1669 = vmatprep.subr.mxu0 0.0
    %1670 = vmatpush1.msra.mxu0 0.0
    %1671 = vmatprep.subr.mxu0 0.0
    %1672 = vmatpush1.msra.mxu0 0.0
    %1673 = vmatprep.subr.mxu0 %v478
    %1674 = vmatpush1.msra.mxu0 %v477
    %1675 = vmatprep.subr.mxu0 %v476
    %1676 = vmatpush1.msra.mxu0 %v475
    %1677 = vmatprep.subr.mxu0 %v474
    %1678 = vmatpush1.msra.mxu0 %v473
    %1679 = vmatprep.subr.mxu0 %v472
    %1680 = vmatpush1.msra.mxu0 %v471
    %1681 = vmatprep.subr.mxu0 %v470
    %1682 = vmatpush1.msra.mxu0 %v469
    %1683 = vmatprep.subr.mxu0 %v468
    %1684 = vmatpush1.msra.mxu0 %v467
    %1685 = vmatprep.subr.mxu0 %v466
    %1686 = vmatpush1.msra.mxu0 %v465
    %1687 = vmatprep.subr.mxu0 %v464
    %1688 = vmatpush1.msra.mxu0 %v463
    %1689 = vmatprep.subr.mxu0 0.0
    %1690 = vmatpush2.msra.mxu0 0.0
    %1691 = vmatprep.subr.mxu0 0.0
    %1692 = vmatpush2.msra.mxu0 0.0
    %1693 = vmatprep.subr.mxu0 0.0
    %1694 = vmatpush2.msra.mxu0 0.0
    %1695 = vmatprep.subr.mxu0 0.0
    %1696 = vmatpush2.msra.mxu0 0.0
    %1697 = vmatprep.subr.mxu0 0.0
    %1698 = vmatpush2.msra.mxu0 0.0
    %1699 = vmatprep.subr.mxu0 0.0
    %1700 = vmatpush2.msra.mxu0 0.0
    %1701 = vmatprep.subr.mxu0 0.0
    %1702 = vmatpush2.msra.mxu0 0.0
    %1703 = vmatprep.subr.mxu0 0.0
    %1704 = vmatpush2.msra.mxu0 0.0
    %1705 = vmatprep.subr.mxu0 0.0
    %1706 = vmatpush2.msra.mxu0 0.0
    %1707 = vmatprep.subr.mxu0 0.0
    %1708 = vmatpush2.msra.mxu0 0.0
    %1709 = vmatprep.subr.mxu0 0.0
    %1710 = vmatpush2.msra.mxu0 0.0
    %1711 = vmatprep.subr.mxu0 0.0
    %1712 = vmatpush2.msra.mxu0 0.0
    %1713 = vmatprep.subr.mxu0 0.0
    %1714 = vmatpush2.msra.mxu0 0.0
    %1715 = vmatprep.subr.mxu0 0.0
    %1716 = vmatpush2.msra.mxu0 0.0
    %1717 = vmatprep.subr.mxu0 0.0
    %1718 = vmatpush2.msra.mxu0 0.0
    %1719 = vmatprep.subr.mxu0 0.0
    %1720 = vmatpush2.msra.mxu0 0.0
    %1721 = vmatprep.mubr.f32.mxu0 0.0
    %1722 = vmatmul.mubr.f32.gmra.mxu0 %v1655
    %v1723 = vpop.f32.mrf.mxu0
    %v1724 = vadd.f32 0.0, %v1723
    %v1725 = vpop.f32.mrf.mxu0
    %v1726 = vadd.f32 0.0, %v1725
    %1727 = vdwg.mxu0
    %v1728 = vadd.f32 %v1650, %v1724
    %v1729 = vxor.u32 %v1728, 2147483648
    %v1730 = vmul.f32 %v1729, 1.442695
    %v1731 = vpow.pop %v1730
    %v1732 = vadd.f32 %v1731, 1.0
    %v1733 = vrcp.pop %v1732
    %v1734 = vmul.f32 1.0, %v1733
    %v1735 = vadd.f32 %v1726, %v29
    %v1736 = vmul.f32 %v1734, %v1735
    %v1737 = vadd.f32 %v1651, %v1736
    %v1738 = vtanh.pop %v1737
    %v1739 = vsub.f32 1.0, %v1734
    %1741 = vrot.lane.b32.xlu0 %v1738, 64
    %v1742 = vpop.permute.xlu0 %1741
    %v1744 = vmul.f32 %v1739, %v1742
    %v1745 = vmul.f32 %v1734, %v1507
    %v1746 = vadd.f32 %v1744, %v1745
    %1747 = vmatprep.subr.mxu0 0.0
    %1748 = vmatpush1.msra.mxu0 0.0
    %1749 = vmatprep.subr.mxu0 0.0
    %1750 = vmatpush1.msra.mxu0 0.0
    %1751 = vmatprep.subr.mxu0 0.0
    %1752 = vmatpush1.msra.mxu0 0.0
    %1753 = vmatprep.subr.mxu0 0.0
    %1754 = vmatpush1.msra.mxu0 0.0
    %1755 = vmatprep.subr.mxu0 0.0
    %1756 = vmatpush1.msra.mxu0 0.0
    %1757 = vmatprep.subr.mxu0 0.0
    %1758 = vmatpush1.msra.mxu0 0.0
    %1759 = vmatprep.subr.mxu0 0.0
    %1760 = vmatpush1.msra.mxu0 0.0
    %1761 = vmatprep.subr.mxu0 0.0
    %1762 = vmatpush1.msra.mxu0 0.0
    %1763 = vmatprep.subr.mxu0 %v510
    %1764 = vmatpush1.msra.mxu0 %v509
    %1765 = vmatprep.subr.mxu0 %v508
    %1766 = vmatpush1.msra.mxu0 %v507
    %1767 = vmatprep.subr.mxu0 %v506
    %1768 = vmatpush1.msra.mxu0 %v505
    %1769 = vmatprep.subr.mxu0 %v504
    %1770 = vmatpush1.msra.mxu0 %v503
    %1771 = vmatprep.subr.mxu0 %v502
    %1772 = vmatpush1.msra.mxu0 %v501
    %1773 = vmatprep.subr.mxu0 %v500
    %1774 = vmatpush1.msra.mxu0 %v499
    %1775 = vmatprep.subr.mxu0 %v498
    %1776 = vmatpush1.msra.mxu0 %v497
    %1777 = vmatprep.subr.mxu0 %v496
    %1778 = vmatpush1.msra.mxu0 %v495
    %1779 = vmatprep.subr.mxu0 0.0
    %1780 = vmatpush2.msra.mxu0 0.0
    %1781 = vmatprep.subr.mxu0 0.0
    %1782 = vmatpush2.msra.mxu0 0.0
    %1783 = vmatprep.subr.mxu0 0.0
    %1784 = vmatpush2.msra.mxu0 0.0
    %1785 = vmatprep.subr.mxu0 0.0
    %1786 = vmatpush2.msra.mxu0 0.0
    %1787 = vmatprep.subr.mxu0 0.0
    %1788 = vmatpush2.msra.mxu0 0.0
    %1789 = vmatprep.subr.mxu0 0.0
    %1790 = vmatpush2.msra.mxu0 0.0
    %1791 = vmatprep.subr.mxu0 0.0
    %1792 = vmatpush2.msra.mxu0 0.0
    %1793 = vmatprep.subr.mxu0 0.0
    %1794 = vmatpush2.msra.mxu0 0.0
    %1795 = vmatprep.subr.mxu0 0.0
    %1796 = vmatpush2.msra.mxu0 0.0
    %1797 = vmatprep.subr.mxu0 0.0
    %1798 = vmatpush2.msra.mxu0 0.0
    %1799 = vmatprep.subr.mxu0 0.0
    %1800 = vmatpush2.msra.mxu0 0.0
    %1801 = vmatprep.subr.mxu0 0.0
    %1802 = vmatpush2.msra.mxu0 0.0
    %1803 = vmatprep.subr.mxu0 0.0
    %1804 = vmatpush2.msra.mxu0 0.0
    %1805 = vmatprep.subr.mxu0 0.0
    %1806 = vmatpush2.msra.mxu0 0.0
    %1807 = vmatprep.subr.mxu0 0.0
    %1808 = vmatpush2.msra.mxu0 0.0
    %1809 = vmatprep.subr.mxu0 0.0
    %1810 = vmatpush2.msra.mxu0 0.0
    %1811 = vmatprep.mubr.f32.mxu0 0.0
    %1812 = vmatmul.mubr.f32.gmra.mxu0 %v1082
    %v1813 = vpop.f32.mrf.mxu0
    %v1814 = vadd.f32 0.0, %v1813
    %v1815 = vpop.f32.mrf.mxu0
    %v1816 = vadd.f32 0.0, %v1815
    %1817 = vdwg.mxu0
    %1818 = vmatprep.subr.mxu0 0.0
    %1819 = vmatpush1.msra.mxu0 0.0
    %1820 = vmatprep.subr.mxu0 0.0
    %1821 = vmatpush1.msra.mxu0 0.0
    %1822 = vmatprep.subr.mxu0 0.0
    %1823 = vmatpush1.msra.mxu0 0.0
    %1824 = vmatprep.subr.mxu0 0.0
    %1825 = vmatpush1.msra.mxu0 0.0
    %1826 = vmatprep.subr.mxu0 0.0
    %1827 = vmatpush1.msra.mxu0 0.0
    %1828 = vmatprep.subr.mxu0 0.0
    %1829 = vmatpush1.msra.mxu0 0.0
    %1830 = vmatprep.subr.mxu0 0.0
    %1831 = vmatpush1.msra.mxu0 0.0
    %1832 = vmatprep.subr.mxu0 0.0
    %1833 = vmatpush1.msra.mxu0 0.0
    %1834 = vmatprep.subr.mxu0 %v494
    %1835 = vmatpush1.msra.mxu0 %v493
    %1836 = vmatprep.subr.mxu0 %v492
    %1837 = vmatpush1.msra.mxu0 %v491
    %1838 = vmatprep.subr.mxu0 %v490
    %1839 = vmatpush1.msra.mxu0 %v489
    %1840 = vmatprep.subr.mxu0 %v488
    %1841 = vmatpush1.msra.mxu0 %v487
    %1842 = vmatprep.subr.mxu0 %v486
    %1843 = vmatpush1.msra.mxu0 %v485
    %1844 = vmatprep.subr.mxu0 %v484
    %1845 = vmatpush1.msra.mxu0 %v483
    %1846 = vmatprep.subr.mxu0 %v482
    %1847 = vmatpush1.msra.mxu0 %v481
    %1848 = vmatprep.subr.mxu0 %v480
    %1849 = vmatpush1.msra.mxu0 %v479
    %1850 = vmatprep.subr.mxu0 0.0
    %1851 = vmatpush2.msra.mxu0 0.0
    %1852 = vmatprep.subr.mxu0 0.0
    %1853 = vmatpush2.msra.mxu0 0.0
    %1854 = vmatprep.subr.mxu0 0.0
    %1855 = vmatpush2.msra.mxu0 0.0
    %1856 = vmatprep.subr.mxu0 0.0
    %1857 = vmatpush2.msra.mxu0 0.0
    %1858 = vmatprep.subr.mxu0 0.0
    %1859 = vmatpush2.msra.mxu0 0.0
    %1860 = vmatprep.subr.mxu0 0.0
    %1861 = vmatpush2.msra.mxu0 0.0
    %1862 = vmatprep.subr.mxu0 0.0
    %1863 = vmatpush2.msra.mxu0 0.0
    %1864 = vmatprep.subr.mxu0 0.0
    %1865 = vmatpush2.msra.mxu0 0.0
    %1866 = vmatprep.subr.mxu0 0.0
    %1867 = vmatpush2.msra.mxu0 0.0
    %1868 = vmatprep.subr.mxu0 0.0
    %1869 = vmatpush2.msra.mxu0 0.0
    %1870 = vmatprep.subr.mxu0 0.0
    %1871 = vmatpush2.msra.mxu0 0.0
    %1872 = vmatprep.subr.mxu0 0.0
    %1873 = vmatpush2.msra.mxu0 0.0
    %1874 = vmatprep.subr.mxu0 0.0
    %1875 = vmatpush2.msra.mxu0 0.0
    %1876 = vmatprep.subr.mxu0 0.0
    %1877 = vmatpush2.msra.mxu0 0.0
    %1878 = vmatprep.subr.mxu0 0.0
    %1879 = vmatpush2.msra.mxu0 0.0
    %1880 = vmatprep.subr.mxu0 0.0
    %1881 = vmatpush2.msra.mxu0 0.0
    %1882 = vmatprep.mubr.f32.mxu0 0.0
    %1883 = vmatmul.mubr.f32.gmra.mxu0 %v797
    %v1884 = vpop.f32.mrf.mxu0
    %v1885 = vadd.f32 %v1814, %v1884
    %v1886 = vpop.f32.mrf.mxu0
    %v1887 = vadd.f32 %v1816, %v1886
    %1888 = vdwg.mxu0
    %v1889 = vadd.f32 %v1885, %v22
    %v1890 = vadd.f32 %v1887, %v26
    %1892 = vrot.lane.b32.xlu0 %v1746, 64
    %v1893 = vpop.permute.xlu0 %1892
    %v1894 = vsel %vm172, %v1893, 0
    %1896 = vmatprep.subr.mxu0 0.0
    %1897 = vmatpush1.msra.mxu0 0.0
    %1898 = vmatprep.subr.mxu0 0.0
    %1899 = vmatpush1.msra.mxu0 0.0
    %1900 = vmatprep.subr.mxu0 0.0
    %1901 = vmatpush1.msra.mxu0 0.0
    %1902 = vmatprep.subr.mxu0 0.0
    %1903 = vmatpush1.msra.mxu0 0.0
    %1904 = vmatprep.subr.mxu0 0.0
    %1905 = vmatpush1.msra.mxu0 0.0
    %1906 = vmatprep.subr.mxu0 0.0
    %1907 = vmatpush1.msra.mxu0 0.0
    %1908 = vmatprep.subr.mxu0 0.0
    %1909 = vmatpush1.msra.mxu0 0.0
    %1910 = vmatprep.subr.mxu0 0.0
    %1911 = vmatpush1.msra.mxu0 0.0
    %1912 = vmatprep.subr.mxu0 %v478
    %1913 = vmatpush1.msra.mxu0 %v477
    %1914 = vmatprep.subr.mxu0 %v476
    %1915 = vmatpush1.msra.mxu0 %v475
    %1916 = vmatprep.subr.mxu0 %v474
    %1917 = vmatpush1.msra.mxu0 %v473
    %1918 = vmatprep.subr.mxu0 %v472
    %1919 = vmatpush1.msra.mxu0 %v471
    %1920 = vmatprep.subr.mxu0 %v470
    %1921 = vmatpush1.msra.mxu0 %v469
    %1922 = vmatprep.subr.mxu0 %v468
    %1923 = vmatpush1.msra.mxu0 %v467
    %1924 = vmatprep.subr.mxu0 %v466
    %1925 = vmatpush1.msra.mxu0 %v465
    %1926 = vmatprep.subr.mxu0 %v464
    %1927 = vmatpush1.msra.mxu0 %v463
    %1928 = vmatprep.subr.mxu0 0.0
    %1929 = vmatpush2.msra.mxu0 0.0
    %1930 = vmatprep.subr.mxu0 0.0
    %1931 = vmatpush2.msra.mxu0 0.0
    %1932 = vmatprep.subr.mxu0 0.0
    %1933 = vmatpush2.msra.mxu0 0.0
    %1934 = vmatprep.subr.mxu0 0.0
    %1935 = vmatpush2.msra.mxu0 0.0
    %1936 = vmatprep.subr.mxu0 0.0
    %1937 = vmatpush2.msra.mxu0 0.0
    %1938 = vmatprep.subr.mxu0 0.0
    %1939 = vmatpush2.msra.mxu0 0.0
    %1940 = vmatprep.subr.mxu0 0.0
    %1941 = vmatpush2.msra.mxu0 0.0
    %1942 = vmatprep.subr.mxu0 0.0
    %1943 = vmatpush2.msra.mxu0 0.0
    %1944 = vmatprep.subr.mxu0 0.0
    %1945 = vmatpush2.msra.mxu0 0.0
    %1946 = vmatprep.subr.mxu0 0.0
    %1947 = vmatpush2.msra.mxu0 0.0
    %1948 = vmatprep.subr.mxu0 0.0
    %1949 = vmatpush2.msra.mxu0 0.0
    %1950 = vmatprep.subr.mxu0 0.0
    %1951 = vmatpush2.msra.mxu0 0.0
    %1952 = vmatprep.subr.mxu0 0.0
    %1953 = vmatpush2.msra.mxu0 0.0
    %1954 = vmatprep.subr.mxu0 0.0
    %1955 = vmatpush2.msra.mxu0 0.0
    %1956 = vmatprep.subr.mxu0 0.0
    %1957 = vmatpush2.msra.mxu0 0.0
    %1958 = vmatprep.subr.mxu0 0.0
    %1959 = vmatpush2.msra.mxu0 0.0
    %1960 = vmatprep.mubr.f32.mxu0 0.0
    %1961 = vmatmul.mubr.f32.gmra.mxu0 %v1894
    %v1962 = vpop.f32.mrf.mxu0
    %v1963 = vadd.f32 0.0, %v1962
    %v1964 = vpop.f32.mrf.mxu0
    %v1965 = vadd.f32 0.0, %v1964
    %1966 = vdwg.mxu0
    %v1967 = vadd.f32 %v1889, %v1963
    %v1968 = vxor.u32 %v1967, 2147483648
    %v1969 = vmul.f32 %v1968, 1.442695
    %v1970 = vpow.pop %v1969
    %v1971 = vadd.f32 %v1970, 1.0
    %v1972 = vrcp.pop %v1971
    %v1973 = vmul.f32 1.0, %v1972
    %v1974 = vadd.f32 %v1965, %v29
    %v1975 = vmul.f32 %v1973, %v1974
    %v1976 = vadd.f32 %v1890, %v1975
    %v1977 = vtanh.pop %v1976
    %v1978 = vsub.f32 1.0, %v1973
    %1980 = vrot.lane.b32.xlu0 %v1977, 64
    %v1981 = vpop.permute.xlu0 %1980
    %v1983 = vmul.f32 %v1978, %v1981
    %v1984 = vmul.f32 %v1973, %v1746
    %v1985 = vadd.f32 %v1983, %v1984
    %1986 = vmatprep.subr.mxu0 0.0
    %1987 = vmatpush1.msra.mxu0 0.0
    %1988 = vmatprep.subr.mxu0 0.0
    %1989 = vmatpush1.msra.mxu0 0.0
    %1990 = vmatprep.subr.mxu0 0.0
    %1991 = vmatpush1.msra.mxu0 0.0
    %1992 = vmatprep.subr.mxu0 0.0
    %1993 = vmatpush1.msra.mxu0 0.0
    %1994 = vmatprep.subr.mxu0 0.0
    %1995 = vmatpush1.msra.mxu0 0.0
    %1996 = vmatprep.subr.mxu0 0.0
    %1997 = vmatpush1.msra.mxu0 0.0
    %1998 = vmatprep.subr.mxu0 0.0
    %1999 = vmatpush1.msra.mxu0 0.0
    %2000 = vmatprep.subr.mxu0 0.0
    %2001 = vmatpush1.msra.mxu0 0.0
    %2002 = vmatprep.subr.mxu0 %v510
    %2003 = vmatpush1.msra.mxu0 %v509
    %2004 = vmatprep.subr.mxu0 %v508
    %2005 = vmatpush1.msra.mxu0 %v507
    %2006 = vmatprep.subr.mxu0 %v506
    %2007 = vmatpush1.msra.mxu0 %v505
    %2008 = vmatprep.subr.mxu0 %v504
    %2009 = vmatpush1.msra.mxu0 %v503
    %2010 = vmatprep.subr.mxu0 %v502
    %2011 = vmatpush1.msra.mxu0 %v501
    %2012 = vmatprep.subr.mxu0 %v500
    %2013 = vmatpush1.msra.mxu0 %v499
    %2014 = vmatprep.subr.mxu0 %v498
    %2015 = vmatpush1.msra.mxu0 %v497
    %2016 = vmatprep.subr.mxu0 %v496
    %2017 = vmatpush1.msra.mxu0 %v495
    %2018 = vmatprep.subr.mxu0 0.0
    %2019 = vmatpush2.msra.mxu0 0.0
    %2020 = vmatprep.subr.mxu0 0.0
    %2021 = vmatpush2.msra.mxu0 0.0
    %2022 = vmatprep.subr.mxu0 0.0
    %2023 = vmatpush2.msra.mxu0 0.0
    %2024 = vmatprep.subr.mxu0 0.0
    %2025 = vmatpush2.msra.mxu0 0.0
    %2026 = vmatprep.subr.mxu0 0.0
    %2027 = vmatpush2.msra.mxu0 0.0
    %2028 = vmatprep.subr.mxu0 0.0
    %2029 = vmatpush2.msra.mxu0 0.0
    %2030 = vmatprep.subr.mxu0 0.0
    %2031 = vmatpush2.msra.mxu0 0.0
    %2032 = vmatprep.subr.mxu0 0.0
    %2033 = vmatpush2.msra.mxu0 0.0
    %2034 = vmatprep.subr.mxu0 0.0
    %2035 = vmatpush2.msra.mxu0 0.0
    %2036 = vmatprep.subr.mxu0 0.0
    %2037 = vmatpush2.msra.mxu0 0.0
    %2038 = vmatprep.subr.mxu0 0.0
    %2039 = vmatpush2.msra.mxu0 0.0
    %2040 = vmatprep.subr.mxu0 0.0
    %2041 = vmatpush2.msra.mxu0 0.0
    %2042 = vmatprep.subr.mxu0 0.0
    %2043 = vmatpush2.msra.mxu0 0.0
    %2044 = vmatprep.subr.mxu0 0.0
    %2045 = vmatpush2.msra.mxu0 0.0
    %2046 = vmatprep.subr.mxu0 0.0
    %2047 = vmatpush2.msra.mxu0 0.0
    %2048 = vmatprep.subr.mxu0 0.0
    %2049 = vmatpush2.msra.mxu0 0.0
    %2050 = vmatprep.mubr.f32.mxu0 0.0
    %2051 = vmatmul.mubr.f32.gmra.mxu0 %v987
    %v2052 = vpop.f32.mrf.mxu0
    %v2053 = vadd.f32 0.0, %v2052
    %v2054 = vpop.f32.mrf.mxu0
    %v2055 = vadd.f32 0.0, %v2054
    %2056 = vdwg.mxu0
    %2057 = vmatprep.subr.mxu0 0.0
    %2058 = vmatpush1.msra.mxu0 0.0
    %2059 = vmatprep.subr.mxu0 0.0
    %2060 = vmatpush1.msra.mxu0 0.0
    %2061 = vmatprep.subr.mxu0 0.0
    %2062 = vmatpush1.msra.mxu0 0.0
    %2063 = vmatprep.subr.mxu0 0.0
    %2064 = vmatpush1.msra.mxu0 0.0
    %2065 = vmatprep.subr.mxu0 0.0
    %2066 = vmatpush1.msra.mxu0 0.0
    %2067 = vmatprep.subr.mxu0 0.0
    %2068 = vmatpush1.msra.mxu0 0.0
    %2069 = vmatprep.subr.mxu0 0.0
    %2070 = vmatpush1.msra.mxu0 0.0
    %2071 = vmatprep.subr.mxu0 0.0
    %2072 = vmatpush1.msra.mxu0 0.0
    %2073 = vmatprep.subr.mxu0 %v494
    %2074 = vmatpush1.msra.mxu0 %v493
    %2075 = vmatprep.subr.mxu0 %v492
    %2076 = vmatpush1.msra.mxu0 %v491
    %2077 = vmatprep.subr.mxu0 %v490
    %2078 = vmatpush1.msra.mxu0 %v489
    %2079 = vmatprep.subr.mxu0 %v488
    %2080 = vmatpush1.msra.mxu0 %v487
    %2081 = vmatprep.subr.mxu0 %v486
    %2082 = vmatpush1.msra.mxu0 %v485
    %2083 = vmatprep.subr.mxu0 %v484
    %2084 = vmatpush1.msra.mxu0 %v483
    %2085 = vmatprep.subr.mxu0 %v482
    %2086 = vmatpush1.msra.mxu0 %v481
    %2087 = vmatprep.subr.mxu0 %v480
    %2088 = vmatpush1.msra.mxu0 %v479
    %2089 = vmatprep.subr.mxu0 0.0
    %2090 = vmatpush2.msra.mxu0 0.0
    %2091 = vmatprep.subr.mxu0 0.0
    %2092 = vmatpush2.msra.mxu0 0.0
    %2093 = vmatprep.subr.mxu0 0.0
    %2094 = vmatpush2.msra.mxu0 0.0
    %2095 = vmatprep.subr.mxu0 0.0
    %2096 = vmatpush2.msra.mxu0 0.0
    %2097 = vmatprep.subr.mxu0 0.0
    %2098 = vmatpush2.msra.mxu0 0.0
    %2099 = vmatprep.subr.mxu0 0.0
    %2100 = vmatpush2.msra.mxu0 0.0
    %2101 = vmatprep.subr.mxu0 0.0
    %2102 = vmatpush2.msra.mxu0 0.0
    %2103 = vmatprep.subr.mxu0 0.0
    %2104 = vmatpush2.msra.mxu0 0.0
    %2105 = vmatprep.subr.mxu0 0.0
    %2106 = vmatpush2.msra.mxu0 0.0
    %2107 = vmatprep.subr.mxu0 0.0
    %2108 = vmatpush2.msra.mxu0 0.0
    %2109 = vmatprep.subr.mxu0 0.0
    %2110 = vmatpush2.msra.mxu0 0.0
    %2111 = vmatprep.subr.mxu0 0.0
    %2112 = vmatpush2.msra.mxu0 0.0
    %2113 = vmatprep.subr.mxu0 0.0
    %2114 = vmatpush2.msra.mxu0 0.0
    %2115 = vmatprep.subr.mxu0 0.0
    %2116 = vmatpush2.msra.mxu0 0.0
    %2117 = vmatprep.subr.mxu0 0.0
    %2118 = vmatpush2.msra.mxu0 0.0
    %2119 = vmatprep.subr.mxu0 0.0
    %2120 = vmatpush2.msra.mxu0 0.0
    %2121 = vmatprep.mubr.f32.mxu0 0.0
    %2122 = vmatmul.mubr.f32.gmra.mxu0 %v892
    %v2123 = vpop.f32.mrf.mxu0
    %v2124 = vadd.f32 %v2053, %v2123
    %v2125 = vpop.f32.mrf.mxu0
    %v2126 = vadd.f32 %v2055, %v2125
    %2127 = vdwg.mxu0
    %v2128 = vadd.f32 %v2124, %v22
    %v2129 = vadd.f32 %v2126, %v26
    %2131 = vrot.lane.b32.xlu0 %v1985, 64
    %v2132 = vpop.permute.xlu0 %2131
    %v2133 = vsel %vm172, %v2132, 0
    %2135 = vmatprep.subr.mxu0 0.0
    %2136 = vmatpush1.msra.mxu0 0.0
    %2137 = vmatprep.subr.mxu0 0.0
    %2138 = vmatpush1.msra.mxu0 0.0
    %2139 = vmatprep.subr.mxu0 0.0
    %2140 = vmatpush1.msra.mxu0 0.0
    %2141 = vmatprep.subr.mxu0 0.0
    %2142 = vmatpush1.msra.mxu0 0.0
    %2143 = vmatprep.subr.mxu0 0.0
    %2144 = vmatpush1.msra.mxu0 0.0
    %2145 = vmatprep.subr.mxu0 0.0
    %2146 = vmatpush1.msra.mxu0 0.0
    %2147 = vmatprep.subr.mxu0 0.0
    %2148 = vmatpush1.msra.mxu0 0.0
    %2149 = vmatprep.subr.mxu0 0.0
    %2150 = vmatpush1.msra.mxu0 0.0
    %2151 = vmatprep.subr.mxu0 %v478
    %2152 = vmatpush1.msra.mxu0 %v477
    %2153 = vmatprep.subr.mxu0 %v476
    %2154 = vmatpush1.msra.mxu0 %v475
    %2155 = vmatprep.subr.mxu0 %v474
    %2156 = vmatpush1.msra.mxu0 %v473
    %2157 = vmatprep.subr.mxu0 %v472
    %2158 = vmatpush1.msra.mxu0 %v471
    %2159 = vmatprep.subr.mxu0 %v470
    %2160 = vmatpush1.msra.mxu0 %v469
    %2161 = vmatprep.subr.mxu0 %v468
    %2162 = vmatpush1.msra.mxu0 %v467
    %2163 = vmatprep.subr.mxu0 %v466
    %2164 = vmatpush1.msra.mxu0 %v465
    %2165 = vmatprep.subr.mxu0 %v464
    %2166 = vmatpush1.msra.mxu0 %v463
    %2167 = vmatprep.subr.mxu0 0.0
    %2168 = vmatpush2.msra.mxu0 0.0
    %2169 = vmatprep.subr.mxu0 0.0
    %2170 = vmatpush2.msra.mxu0 0.0
    %2171 = vmatprep.subr.mxu0 0.0
    %2172 = vmatpush2.msra.mxu0 0.0
    %2173 = vmatprep.subr.mxu0 0.0
    %2174 = vmatpush2.msra.mxu0 0.0
    %2175 = vmatprep.subr.mxu0 0.0
    %2176 = vmatpush2.msra.mxu0 0.0
    %2177 = vmatprep.subr.mxu0 0.0
    %2178 = vmatpush2.msra.mxu0 0.0
    %2179 = vmatprep.subr.mxu0 0.0
    %2180 = vmatpush2.msra.mxu0 0.0
    %2181 = vmatprep.subr.mxu0 0.0
    %2182 = vmatpush2.msra.mxu0 0.0
    %2183 = vmatprep.subr.mxu0 0.0
    %2184 = vmatpush2.msra.mxu0 0.0
    %2185 = vmatprep.subr.mxu0 0.0
    %2186 = vmatpush2.msra.mxu0 0.0
    %2187 = vmatprep.subr.mxu0 0.0
    %2188 = vmatpush2.msra.mxu0 0.0
    %2189 = vmatprep.subr.mxu0 0.0
    %2190 = vmatpush2.msra.mxu0 0.0
    %2191 = vmatprep.subr.mxu0 0.0
    %2192 = vmatpush2.msra.mxu0 0.0
    %2193 = vmatprep.subr.mxu0 0.0
    %2194 = vmatpush2.msra.mxu0 0.0
    %2195 = vmatprep.subr.mxu0 0.0
    %2196 = vmatpush2.msra.mxu0 0.0
    %2197 = vmatprep.subr.mxu0 0.0
    %2198 = vmatpush2.msra.mxu0 0.0
    %2199 = vmatprep.mubr.f32.mxu0 0.0
    %2200 = vmatmul.mubr.f32.gmra.mxu0 %v2133
    %v2201 = vpop.f32.mrf.mxu0
    %v2202 = vadd.f32 0.0, %v2201
    %v2203 = vpop.f32.mrf.mxu0
    %v2204 = vadd.f32 0.0, %v2203
    %2205 = vdwg.mxu0
    %v2206 = vadd.f32 %v2128, %v2202
    %v2207 = vxor.u32 %v2206, 2147483648
    %v2208 = vmul.f32 %v2207, 1.442695
    %v2209 = vpow.pop %v2208
    %v2210 = vadd.f32 %v2209, 1.0
    %v2211 = vrcp.pop %v2210
    %v2212 = vmul.f32 1.0, %v2211
    %v2213 = vadd.f32 %v2204, %v29
    %v2214 = vmul.f32 %v2212, %v2213
    %v2215 = vadd.f32 %v2129, %v2214
    %v2216 = vtanh.pop %v2215
    %v2217 = vsub.f32 1.0, %v2212
    %2219 = vrot.lane.b32.xlu0 %v2216, 64
    %v2220 = vpop.permute.xlu0 %2219
    %v2222 = vmul.f32 %v2217, %v2220
    %v2223 = vmul.f32 %v2212, %v1985
    %v2224 = vadd.f32 %v2222, %v2223
    %2225 = vmatprep.subr.mxu0 0.0
    %2226 = vmatpush1.msra.mxu0 0.0
    %2227 = vmatprep.subr.mxu0 0.0
    %2228 = vmatpush1.msra.mxu0 0.0
    %2229 = vmatprep.subr.mxu0 0.0
    %2230 = vmatpush1.msra.mxu0 0.0
    %2231 = vmatprep.subr.mxu0 0.0
    %2232 = vmatpush1.msra.mxu0 0.0
    %2233 = vmatprep.subr.mxu0 0.0
    %2234 = vmatpush1.msra.mxu0 0.0
    %2235 = vmatprep.subr.mxu0 0.0
    %2236 = vmatpush1.msra.mxu0 0.0
    %2237 = vmatprep.subr.mxu0 0.0
    %2238 = vmatpush1.msra.mxu0 0.0
    %2239 = vmatprep.subr.mxu0 0.0
    %2240 = vmatpush1.msra.mxu0 0.0
    %2241 = vmatprep.subr.mxu0 %v510
    %2242 = vmatpush1.msra.mxu0 %v509
    %2243 = vmatprep.subr.mxu0 %v508
    %2244 = vmatpush1.msra.mxu0 %v507
    %2245 = vmatprep.subr.mxu0 %v506
    %2246 = vmatpush1.msra.mxu0 %v505
    %2247 = vmatprep.subr.mxu0 %v504
    %2248 = vmatpush1.msra.mxu0 %v503
    %2249 = vmatprep.subr.mxu0 %v502
    %2250 = vmatpush1.msra.mxu0 %v501
    %2251 = vmatprep.subr.mxu0 %v500
    %2252 = vmatpush1.msra.mxu0 %v499
    %2253 = vmatprep.subr.mxu0 %v498
    %2254 = vmatpush1.msra.mxu0 %v497
    %2255 = vmatprep.subr.mxu0 %v496
    %2256 = vmatpush1.msra.mxu0 %v495
    %2257 = vmatprep.subr.mxu0 0.0
    %2258 = vmatpush2.msra.mxu0 0.0
    %2259 = vmatprep.subr.mxu0 0.0
    %2260 = vmatpush2.msra.mxu0 0.0
    %2261 = vmatprep.subr.mxu0 0.0
    %2262 = vmatpush2.msra.mxu0 0.0
    %2263 = vmatprep.subr.mxu0 0.0
    %2264 = vmatpush2.msra.mxu0 0.0
    %2265 = vmatprep.subr.mxu0 0.0
    %2266 = vmatpush2.msra.mxu0 0.0
    %2267 = vmatprep.subr.mxu0 0.0
    %2268 = vmatpush2.msra.mxu0 0.0
    %2269 = vmatprep.subr.mxu0 0.0
    %2270 = vmatpush2.msra.mxu0 0.0
    %2271 = vmatprep.subr.mxu0 0.0
    %2272 = vmatpush2.msra.mxu0 0.0
    %2273 = vmatprep.subr.mxu0 0.0
    %2274 = vmatpush2.msra.mxu0 0.0
    %2275 = vmatprep.subr.mxu0 0.0
    %2276 = vmatpush2.msra.mxu0 0.0
    %2277 = vmatprep.subr.mxu0 0.0
    %2278 = vmatpush2.msra.mxu0 0.0
    %2279 = vmatprep.subr.mxu0 0.0
    %2280 = vmatpush2.msra.mxu0 0.0
    %2281 = vmatprep.subr.mxu0 0.0
    %2282 = vmatpush2.msra.mxu0 0.0
    %2283 = vmatprep.subr.mxu0 0.0
    %2284 = vmatpush2.msra.mxu0 0.0
    %2285 = vmatprep.subr.mxu0 0.0
    %2286 = vmatpush2.msra.mxu0 0.0
    %2287 = vmatprep.subr.mxu0 0.0
    %2288 = vmatpush2.msra.mxu0 0.0
    %2289 = vmatprep.mubr.f32.mxu0 0.0
    %2290 = vmatmul.mubr.f32.gmra.mxu0 %v892
    %v2291 = vpop.f32.mrf.mxu0
    %v2292 = vadd.f32 0.0, %v2291
    %v2293 = vpop.f32.mrf.mxu0
    %v2294 = vadd.f32 0.0, %v2293
    %2295 = vdwg.mxu0
    %2296 = vmatprep.subr.mxu0 0.0
    %2297 = vmatpush1.msra.mxu0 0.0
    %2298 = vmatprep.subr.mxu0 0.0
    %2299 = vmatpush1.msra.mxu0 0.0
    %2300 = vmatprep.subr.mxu0 0.0
    %2301 = vmatpush1.msra.mxu0 0.0
    %2302 = vmatprep.subr.mxu0 0.0
    %2303 = vmatpush1.msra.mxu0 0.0
    %2304 = vmatprep.subr.mxu0 0.0
    %2305 = vmatpush1.msra.mxu0 0.0
    %2306 = vmatprep.subr.mxu0 0.0
    %2307 = vmatpush1.msra.mxu0 0.0
    %2308 = vmatprep.subr.mxu0 0.0
    %2309 = vmatpush1.msra.mxu0 0.0
    %2310 = vmatprep.subr.mxu0 0.0
    %2311 = vmatpush1.msra.mxu0 0.0
    %2312 = vmatprep.subr.mxu0 %v494
    %2313 = vmatpush1.msra.mxu0 %v493
    %2314 = vmatprep.subr.mxu0 %v492
    %2315 = vmatpush1.msra.mxu0 %v491
    %2316 = vmatprep.subr.mxu0 %v490
    %2317 = vmatpush1.msra.mxu0 %v489
    %2318 = vmatprep.subr.mxu0 %v488
    %2319 = vmatpush1.msra.mxu0 %v487
    %2320 = vmatprep.subr.mxu0 %v486
    %2321 = vmatpush1.msra.mxu0 %v485
    %2322 = vmatprep.subr.mxu0 %v484
    %2323 = vmatpush1.msra.mxu0 %v483
    %2324 = vmatprep.subr.mxu0 %v482
    %2325 = vmatpush1.msra.mxu0 %v481
    %2326 = vmatprep.subr.mxu0 %v480
    %2327 = vmatpush1.msra.mxu0 %v479
    %2328 = vmatprep.subr.mxu0 0.0
    %2329 = vmatpush2.msra.mxu0 0.0
    %2330 = vmatprep.subr.mxu0 0.0
    %2331 = vmatpush2.msra.mxu0 0.0
    %2332 = vmatprep.subr.mxu0 0.0
    %2333 = vmatpush2.msra.mxu0 0.0
    %2334 = vmatprep.subr.mxu0 0.0
    %2335 = vmatpush2.msra.mxu0 0.0
    %2336 = vmatprep.subr.mxu0 0.0
    %2337 = vmatpush2.msra.mxu0 0.0
    %2338 = vmatprep.subr.mxu0 0.0
    %2339 = vmatpush2.msra.mxu0 0.0
    %2340 = vmatprep.subr.mxu0 0.0
    %2341 = vmatpush2.msra.mxu0 0.0
    %2342 = vmatprep.subr.mxu0 0.0
    %2343 = vmatpush2.msra.mxu0 0.0
    %2344 = vmatprep.subr.mxu0 0.0
    %2345 = vmatpush2.msra.mxu0 0.0
    %2346 = vmatprep.subr.mxu0 0.0
    %2347 = vmatpush2.msra.mxu0 0.0
    %2348 = vmatprep.subr.mxu0 0.0
    %2349 = vmatpush2.msra.mxu0 0.0
    %2350 = vmatprep.subr.mxu0 0.0
    %2351 = vmatpush2.msra.mxu0 0.0
    %2352 = vmatprep.subr.mxu0 0.0
    %2353 = vmatpush2.msra.mxu0 0.0
    %2354 = vmatprep.subr.mxu0 0.0
    %2355 = vmatpush2.msra.mxu0 0.0
    %2356 = vmatprep.subr.mxu0 0.0
    %2357 = vmatpush2.msra.mxu0 0.0
    %2358 = vmatprep.subr.mxu0 0.0
    %2359 = vmatpush2.msra.mxu0 0.0
    %2360 = vmatprep.mubr.f32.mxu0 0.0
    %2361 = vmatmul.mubr.f32.gmra.mxu0 %v987
    %v2362 = vpop.f32.mrf.mxu0
    %v2363 = vadd.f32 %v2292, %v2362
    %v2364 = vpop.f32.mrf.mxu0
    %v2365 = vadd.f32 %v2294, %v2364
    %2366 = vdwg.mxu0
    %v2367 = vadd.f32 %v2363, %v22
    %v2368 = vadd.f32 %v2365, %v26
    %2370 = vrot.lane.b32.xlu0 %v2224, 64
    %v2371 = vpop.permute.xlu0 %2370
    %v2372 = vsel %vm172, %v2371, 0
    %2374 = vmatprep.subr.mxu0 0.0
    %2375 = vmatpush1.msra.mxu0 0.0
    %2376 = vmatprep.subr.mxu0 0.0
    %2377 = vmatpush1.msra.mxu0 0.0
    %2378 = vmatprep.subr.mxu0 0.0
    %2379 = vmatpush1.msra.mxu0 0.0
    %2380 = vmatprep.subr.mxu0 0.0
    %2381 = vmatpush1.msra.mxu0 0.0
    %2382 = vmatprep.subr.mxu0 0.0
    %2383 = vmatpush1.msra.mxu0 0.0
    %2384 = vmatprep.subr.mxu0 0.0
    %2385 = vmatpush1.msra.mxu0 0.0
    %2386 = vmatprep.subr.mxu0 0.0
    %2387 = vmatpush1.msra.mxu0 0.0
    %2388 = vmatprep.subr.mxu0 0.0
    %2389 = vmatpush1.msra.mxu0 0.0
    %2390 = vmatprep.subr.mxu0 %v478
    %2391 = vmatpush1.msra.mxu0 %v477
    %2392 = vmatprep.subr.mxu0 %v476
    %2393 = vmatpush1.msra.mxu0 %v475
    %2394 = vmatprep.subr.mxu0 %v474
    %2395 = vmatpush1.msra.mxu0 %v473
    %2396 = vmatprep.subr.mxu0 %v472
    %2397 = vmatpush1.msra.mxu0 %v471
    %2398 = vmatprep.subr.mxu0 %v470
    %2399 = vmatpush1.msra.mxu0 %v469
    %2400 = vmatprep.subr.mxu0 %v468
    %2401 = vmatpush1.msra.mxu0 %v467
    %2402 = vmatprep.subr.mxu0 %v466
    %2403 = vmatpush1.msra.mxu0 %v465
    %2404 = vmatprep.subr.mxu0 %v464
    %2405 = vmatpush1.msra.mxu0 %v463
    %2406 = vmatprep.subr.mxu0 0.0
    %2407 = vmatpush2.msra.mxu0 0.0
    %2408 = vmatprep.subr.mxu0 0.0
    %2409 = vmatpush2.msra.mxu0 0.0
    %2410 = vmatprep.subr.mxu0 0.0
    %2411 = vmatpush2.msra.mxu0 0.0
    %2412 = vmatprep.subr.mxu0 0.0
    %2413 = vmatpush2.msra.mxu0 0.0
    %2414 = vmatprep.subr.mxu0 0.0
    %2415 = vmatpush2.msra.mxu0 0.0
    %2416 = vmatprep.subr.mxu0 0.0
    %2417 = vmatpush2.msra.mxu0 0.0
    %2418 = vmatprep.subr.mxu0 0.0
    %2419 = vmatpush2.msra.mxu0 0.0
    %2420 = vmatprep.subr.mxu0 0.0
    %2421 = vmatpush2.msra.mxu0 0.0
    %2422 = vmatprep.subr.mxu0 0.0
    %2423 = vmatpush2.msra.mxu0 0.0
    %2424 = vmatprep.subr.mxu0 0.0
    %2425 = vmatpush2.msra.mxu0 0.0
    %2426 = vmatprep.subr.mxu0 0.0
    %2427 = vmatpush2.msra.mxu0 0.0
    %2428 = vmatprep.subr.mxu0 0.0
    %2429 = vmatpush2.msra.mxu0 0.0
    %2430 = vmatprep.subr.mxu0 0.0
    %2431 = vmatpush2.msra.mxu0 0.0
    %2432 = vmatprep.subr.mxu0 0.0
    %2433 = vmatpush2.msra.mxu0 0.0
    %2434 = vmatprep.subr.mxu0 0.0
    %2435 = vmatpush2.msra.mxu0 0.0
    %2436 = vmatprep.subr.mxu0 0.0
    %2437 = vmatpush2.msra.mxu0 0.0
    %2438 = vmatprep.mubr.f32.mxu0 0.0
    %2439 = vmatmul.mubr.f32.gmra.mxu0 %v2372
    %v2440 = vpop.f32.mrf.mxu0
    %v2441 = vadd.f32 0.0, %v2440
    %v2442 = vpop.f32.mrf.mxu0
    %v2443 = vadd.f32 0.0, %v2442
    %2444 = vdwg.mxu0
    %v2445 = vadd.f32 %v2367, %v2441
    %v2446 = vxor.u32 %v2445, 2147483648
    %v2447 = vmul.f32 %v2446, 1.442695
    %v2448 = vpow.pop %v2447
    %v2449 = vadd.f32 %v2448, 1.0
    %v2450 = vrcp.pop %v2449
    %v2451 = vmul.f32 1.0, %v2450
    %v2452 = vadd.f32 %v2443, %v29
    %v2453 = vmul.f32 %v2451, %v2452
    %v2454 = vadd.f32 %v2368, %v2453
    %v2455 = vtanh.pop %v2454
    %v2456 = vsub.f32 1.0, %v2451
    %2458 = vrot.lane.b32.xlu0 %v2455, 64
    %v2459 = vpop.permute.xlu0 %2458
    %v2461 = vmul.f32 %v2456, %v2459
    %v2462 = vmul.f32 %v2451, %v2224
    %v2463 = vadd.f32 %v2461, %v2462
    %2464 = vmatprep.subr.mxu0 0.0
    %2465 = vmatpush1.msra.mxu0 0.0
    %2466 = vmatprep.subr.mxu0 0.0
    %2467 = vmatpush1.msra.mxu0 0.0
    %2468 = vmatprep.subr.mxu0 0.0
    %2469 = vmatpush1.msra.mxu0 0.0
    %2470 = vmatprep.subr.mxu0 0.0
    %2471 = vmatpush1.msra.mxu0 0.0
    %2472 = vmatprep.subr.mxu0 0.0
    %2473 = vmatpush1.msra.mxu0 0.0
    %2474 = vmatprep.subr.mxu0 0.0
    %2475 = vmatpush1.msra.mxu0 0.0
    %2476 = vmatprep.subr.mxu0 0.0
    %2477 = vmatpush1.msra.mxu0 0.0
    %2478 = vmatprep.subr.mxu0 0.0
    %2479 = vmatpush1.msra.mxu0 0.0
    %2480 = vmatprep.subr.mxu0 %v510
    %2481 = vmatpush1.msra.mxu0 %v509
    %2482 = vmatprep.subr.mxu0 %v508
    %2483 = vmatpush1.msra.mxu0 %v507
    %2484 = vmatprep.subr.mxu0 %v506
    %2485 = vmatpush1.msra.mxu0 %v505
    %2486 = vmatprep.subr.mxu0 %v504
    %2487 = vmatpush1.msra.mxu0 %v503
    %2488 = vmatprep.subr.mxu0 %v502
    %2489 = vmatpush1.msra.mxu0 %v501
    %2490 = vmatprep.subr.mxu0 %v500
    %2491 = vmatpush1.msra.mxu0 %v499
    %2492 = vmatprep.subr.mxu0 %v498
    %2493 = vmatpush1.msra.mxu0 %v497
    %2494 = vmatprep.subr.mxu0 %v496
    %2495 = vmatpush1.msra.mxu0 %v495
    %2496 = vmatprep.subr.mxu0 0.0
    %2497 = vmatpush2.msra.mxu0 0.0
    %2498 = vmatprep.subr.mxu0 0.0
    %2499 = vmatpush2.msra.mxu0 0.0
    %2500 = vmatprep.subr.mxu0 0.0
    %2501 = vmatpush2.msra.mxu0 0.0
    %2502 = vmatprep.subr.mxu0 0.0
    %2503 = vmatpush2.msra.mxu0 0.0
    %2504 = vmatprep.subr.mxu0 0.0
    %2505 = vmatpush2.msra.mxu0 0.0
    %2506 = vmatprep.subr.mxu0 0.0
    %2507 = vmatpush2.msra.mxu0 0.0
    %2508 = vmatprep.subr.mxu0 0.0
    %2509 = vmatpush2.msra.mxu0 0.0
    %2510 = vmatprep.subr.mxu0 0.0
    %2511 = vmatpush2.msra.mxu0 0.0
    %2512 = vmatprep.subr.mxu0 0.0
    %2513 = vmatpush2.msra.mxu0 0.0
    %2514 = vmatprep.subr.mxu0 0.0
    %2515 = vmatpush2.msra.mxu0 0.0
    %2516 = vmatprep.subr.mxu0 0.0
    %2517 = vmatpush2.msra.mxu0 0.0
    %2518 = vmatprep.subr.mxu0 0.0
    %2519 = vmatpush2.msra.mxu0 0.0
    %2520 = vmatprep.subr.mxu0 0.0
    %2521 = vmatpush2.msra.mxu0 0.0
    %2522 = vmatprep.subr.mxu0 0.0
    %2523 = vmatpush2.msra.mxu0 0.0
    %2524 = vmatprep.subr.mxu0 0.0
    %2525 = vmatpush2.msra.mxu0 0.0
    %2526 = vmatprep.subr.mxu0 0.0
    %2527 = vmatpush2.msra.mxu0 0.0
    %2528 = vmatprep.mubr.f32.mxu0 0.0
    %2529 = vmatmul.mubr.f32.gmra.mxu0 %v797
    %v2530 = vpop.f32.mrf.mxu0
    %v2531 = vadd.f32 0.0, %v2530
    %v2532 = vpop.f32.mrf.mxu0
    %v2533 = vadd.f32 0.0, %v2532
    %2534 = vdwg.mxu0
    %2535 = vmatprep.subr.mxu0 0.0
    %2536 = vmatpush1.msra.mxu0 0.0
    %2537 = vmatprep.subr.mxu0 0.0
    %2538 = vmatpush1.msra.mxu0 0.0
    %2539 = vmatprep.subr.mxu0 0.0
    %2540 = vmatpush1.msra.mxu0 0.0
    %2541 = vmatprep.subr.mxu0 0.0
    %2542 = vmatpush1.msra.mxu0 0.0
    %2543 = vmatprep.subr.mxu0 0.0
    %2544 = vmatpush1.msra.mxu0 0.0
    %2545 = vmatprep.subr.mxu0 0.0
    %2546 = vmatpush1.msra.mxu0 0.0
    %2547 = vmatprep.subr.mxu0 0.0
    %2548 = vmatpush1.msra.mxu0 0.0
    %2549 = vmatprep.subr.mxu0 0.0
    %2550 = vmatpush1.msra.mxu0 0.0
    %2551 = vmatprep.subr.mxu0 %v494
    %2552 = vmatpush1.msra.mxu0 %v493
    %2553 = vmatprep.subr.mxu0 %v492
    %2554 = vmatpush1.msra.mxu0 %v491
    %2555 = vmatprep.subr.mxu0 %v490
    %2556 = vmatpush1.msra.mxu0 %v489
    %2557 = vmatprep.subr.mxu0 %v488
    %2558 = vmatpush1.msra.mxu0 %v487
    %2559 = vmatprep.subr.mxu0 %v486
    %2560 = vmatpush1.msra.mxu0 %v485
    %2561 = vmatprep.subr.mxu0 %v484
    %2562 = vmatpush1.msra.mxu0 %v483
    %2563 = vmatprep.subr.mxu0 %v482
    %2564 = vmatpush1.msra.mxu0 %v481
    %2565 = vmatprep.subr.mxu0 %v480
    %2566 = vmatpush1.msra.mxu0 %v479
    %2567 = vmatprep.subr.mxu0 0.0
    %2568 = vmatpush2.msra.mxu0 0.0
    %2569 = vmatprep.subr.mxu0 0.0
    %2570 = vmatpush2.msra.mxu0 0.0
    %2571 = vmatprep.subr.mxu0 0.0
    %2572 = vmatpush2.msra.mxu0 0.0
    %2573 = vmatprep.subr.mxu0 0.0
    %2574 = vmatpush2.msra.mxu0 0.0
    %2575 = vmatprep.subr.mxu0 0.0
    %2576 = vmatpush2.msra.mxu0 0.0
    %2577 = vmatprep.subr.mxu0 0.0
    %2578 = vmatpush2.msra.mxu0 0.0
    %2579 = vmatprep.subr.mxu0 0.0
    %2580 = vmatpush2.msra.mxu0 0.0
    %2581 = vmatprep.subr.mxu0 0.0
    %2582 = vmatpush2.msra.mxu0 0.0
    %2583 = vmatprep.subr.mxu0 0.0
    %2584 = vmatpush2.msra.mxu0 0.0
    %2585 = vmatprep.subr.mxu0 0.0
    %2586 = vmatpush2.msra.mxu0 0.0
    %2587 = vmatprep.subr.mxu0 0.0
    %2588 = vmatpush2.msra.mxu0 0.0
    %2589 = vmatprep.subr.mxu0 0.0
    %2590 = vmatpush2.msra.mxu0 0.0
    %2591 = vmatprep.subr.mxu0 0.0
    %2592 = vmatpush2.msra.mxu0 0.0
    %2593 = vmatprep.subr.mxu0 0.0
    %2594 = vmatpush2.msra.mxu0 0.0
    %2595 = vmatprep.subr.mxu0 0.0
    %2596 = vmatpush2.msra.mxu0 0.0
    %2597 = vmatprep.subr.mxu0 0.0
    %2598 = vmatpush2.msra.mxu0 0.0
    %2599 = vmatprep.mubr.f32.mxu0 0.0
    %2600 = vmatmul.mubr.f32.gmra.mxu0 %v1082
    %v2601 = vpop.f32.mrf.mxu0
    %v2602 = vadd.f32 %v2531, %v2601
    %v2603 = vpop.f32.mrf.mxu0
    %v2604 = vadd.f32 %v2533, %v2603
    %2605 = vdwg.mxu0
    %v2606 = vadd.f32 %v2602, %v22
    %v2607 = vadd.f32 %v2604, %v26
    %2609 = vrot.lane.b32.xlu0 %v2463, 64
    %v2610 = vpop.permute.xlu0 %2609
    %v2611 = vsel %vm172, %v2610, 0
    %2613 = vmatprep.subr.mxu0 0.0
    %2614 = vmatpush1.msra.mxu0 0.0
    %2615 = vmatprep.subr.mxu0 0.0
    %2616 = vmatpush1.msra.mxu0 0.0
    %2617 = vmatprep.subr.mxu0 0.0
    %2618 = vmatpush1.msra.mxu0 0.0
    %2619 = vmatprep.subr.mxu0 0.0
    %2620 = vmatpush1.msra.mxu0 0.0
    %2621 = vmatprep.subr.mxu0 0.0
    %2622 = vmatpush1.msra.mxu0 0.0
    %2623 = vmatprep.subr.mxu0 0.0
    %2624 = vmatpush1.msra.mxu0 0.0
    %2625 = vmatprep.subr.mxu0 0.0
    %2626 = vmatpush1.msra.mxu0 0.0
    %2627 = vmatprep.subr.mxu0 0.0
    %2628 = vmatpush1.msra.mxu0 0.0
    %2629 = vmatprep.subr.mxu0 %v478
    %2630 = vmatpush1.msra.mxu0 %v477
    %2631 = vmatprep.subr.mxu0 %v476
    %2632 = vmatpush1.msra.mxu0 %v475
    %2633 = vmatprep.subr.mxu0 %v474
    %2634 = vmatpush1.msra.mxu0 %v473
    %2635 = vmatprep.subr.mxu0 %v472
    %2636 = vmatpush1.msra.mxu0 %v471
    %2637 = vmatprep.subr.mxu0 %v470
    %2638 = vmatpush1.msra.mxu0 %v469
    %2639 = vmatprep.subr.mxu0 %v468
    %2640 = vmatpush1.msra.mxu0 %v467
    %2641 = vmatprep.subr.mxu0 %v466
    %2642 = vmatpush1.msra.mxu0 %v465
    %2643 = vmatprep.subr.mxu0 %v464
    %2644 = vmatpush1.msra.mxu0 %v463
    %2645 = vmatprep.subr.mxu0 0.0
    %2646 = vmatpush2.msra.mxu0 0.0
    %2647 = vmatprep.subr.mxu0 0.0
    %2648 = vmatpush2.msra.mxu0 0.0
    %2649 = vmatprep.subr.mxu0 0.0
    %2650 = vmatpush2.msra.mxu0 0.0
    %2651 = vmatprep.subr.mxu0 0.0
    %2652 = vmatpush2.msra.mxu0 0.0
    %2653 = vmatprep.subr.mxu0 0.0
    %2654 = vmatpush2.msra.mxu0 0.0
    %2655 = vmatprep.subr.mxu0 0.0
    %2656 = vmatpush2.msra.mxu0 0.0
    %2657 = vmatprep.subr.mxu0 0.0
    %2658 = vmatpush2.msra.mxu0 0.0
    %2659 = vmatprep.subr.mxu0 0.0
    %2660 = vmatpush2.msra.mxu0 0.0
    %2661 = vmatprep.subr.mxu0 0.0
    %2662 = vmatpush2.msra.mxu0 0.0
    %2663 = vmatprep.subr.mxu0 0.0
    %2664 = vmatpush2.msra.mxu0 0.0
    %2665 = vmatprep.subr.mxu0 0.0
    %2666 = vmatpush2.msra.mxu0 0.0
    %2667 = vmatprep.subr.mxu0 0.0
    %2668 = vmatpush2.msra.mxu0 0.0
    %2669 = vmatprep.subr.mxu0 0.0
    %2670 = vmatpush2.msra.mxu0 0.0
    %2671 = vmatprep.subr.mxu0 0.0
    %2672 = vmatpush2.msra.mxu0 0.0
    %2673 = vmatprep.subr.mxu0 0.0
    %2674 = vmatpush2.msra.mxu0 0.0
    %2675 = vmatprep.subr.mxu0 0.0
    %2676 = vmatpush2.msra.mxu0 0.0
    %2677 = vmatprep.mubr.f32.mxu0 0.0
    %2678 = vmatmul.mubr.f32.gmra.mxu0 %v2611
    %v2679 = vpop.f32.mrf.mxu0
    %v2680 = vadd.f32 0.0, %v2679
    %v2681 = vpop.f32.mrf.mxu0
    %v2682 = vadd.f32 0.0, %v2681
    %2683 = vdwg.mxu0
    %v2684 = vadd.f32 %v2606, %v2680
    %v2685 = vxor.u32 %v2684, 2147483648
    %v2686 = vmul.f32 %v2685, 1.442695
    %v2687 = vpow.pop %v2686
    %v2688 = vadd.f32 %v2687, 1.0
    %v2689 = vrcp.pop %v2688
    %v2690 = vmul.f32 1.0, %v2689
    %v2691 = vadd.f32 %v2682, %v29
    %v2692 = vmul.f32 %v2690, %v2691
    %v2693 = vadd.f32 %v2607, %v2692
    %v2694 = vtanh.pop %v2693
    %v2695 = vsub.f32 1.0, %v2690
    %2697 = vrot.lane.b32.xlu0 %v2694, 64
    %v2698 = vpop.permute.xlu0 %2697
    %v2700 = vmul.f32 %v2695, %v2698
    %v2701 = vmul.f32 %v2690, %v2463
    %v2702 = vadd.f32 %v2700, %v2701
    %2703 = vmatprep.subr.mxu0 0.0
    %2704 = vmatpush1.msra.mxu0 0.0
    %2705 = vmatprep.subr.mxu0 0.0
    %2706 = vmatpush1.msra.mxu0 0.0
    %2707 = vmatprep.subr.mxu0 0.0
    %2708 = vmatpush1.msra.mxu0 0.0
    %2709 = vmatprep.subr.mxu0 0.0
    %2710 = vmatpush1.msra.mxu0 0.0
    %2711 = vmatprep.subr.mxu0 0.0
    %2712 = vmatpush1.msra.mxu0 0.0
    %2713 = vmatprep.subr.mxu0 0.0
    %2714 = vmatpush1.msra.mxu0 0.0
    %2715 = vmatprep.subr.mxu0 0.0
    %2716 = vmatpush1.msra.mxu0 0.0
    %2717 = vmatprep.subr.mxu0 0.0
    %2718 = vmatpush1.msra.mxu0 0.0
    %2719 = vmatprep.subr.mxu0 %v510
    %2720 = vmatpush1.msra.mxu0 %v509
    %2721 = vmatprep.subr.mxu0 %v508
    %2722 = vmatpush1.msra.mxu0 %v507
    %2723 = vmatprep.subr.mxu0 %v506
    %2724 = vmatpush1.msra.mxu0 %v505
    %2725 = vmatprep.subr.mxu0 %v504
    %2726 = vmatpush1.msra.mxu0 %v503
    %2727 = vmatprep.subr.mxu0 %v502
    %2728 = vmatpush1.msra.mxu0 %v501
    %2729 = vmatprep.subr.mxu0 %v500
    %2730 = vmatpush1.msra.mxu0 %v499
    %2731 = vmatprep.subr.mxu0 %v498
    %2732 = vmatpush1.msra.mxu0 %v497
    %2733 = vmatprep.subr.mxu0 %v496
    %2734 = vmatpush1.msra.mxu0 %v495
    %2735 = vmatprep.subr.mxu0 0.0
    %2736 = vmatpush2.msra.mxu0 0.0
    %2737 = vmatprep.subr.mxu0 0.0
    %2738 = vmatpush2.msra.mxu0 0.0
    %2739 = vmatprep.subr.mxu0 0.0
    %2740 = vmatpush2.msra.mxu0 0.0
    %2741 = vmatprep.subr.mxu0 0.0
    %2742 = vmatpush2.msra.mxu0 0.0
    %2743 = vmatprep.subr.mxu0 0.0
    %2744 = vmatpush2.msra.mxu0 0.0
    %2745 = vmatprep.subr.mxu0 0.0
    %2746 = vmatpush2.msra.mxu0 0.0
    %2747 = vmatprep.subr.mxu0 0.0
    %2748 = vmatpush2.msra.mxu0 0.0
    %2749 = vmatprep.subr.mxu0 0.0
    %2750 = vmatpush2.msra.mxu0 0.0
    %2751 = vmatprep.subr.mxu0 0.0
    %2752 = vmatpush2.msra.mxu0 0.0
    %2753 = vmatprep.subr.mxu0 0.0
    %2754 = vmatpush2.msra.mxu0 0.0
    %2755 = vmatprep.subr.mxu0 0.0
    %2756 = vmatpush2.msra.mxu0 0.0
    %2757 = vmatprep.subr.mxu0 0.0
    %2758 = vmatpush2.msra.mxu0 0.0
    %2759 = vmatprep.subr.mxu0 0.0
    %2760 = vmatpush2.msra.mxu0 0.0
    %2761 = vmatprep.subr.mxu0 0.0
    %2762 = vmatpush2.msra.mxu0 0.0
    %2763 = vmatprep.subr.mxu0 0.0
    %2764 = vmatpush2.msra.mxu0 0.0
    %2765 = vmatprep.subr.mxu0 0.0
    %2766 = vmatpush2.msra.mxu0 0.0
    %2767 = vmatprep.mubr.f32.mxu0 0.0
    %2768 = vmatmul.mubr.f32.gmra.mxu0 %v702
    %v2769 = vpop.f32.mrf.mxu0
    %v2770 = vadd.f32 0.0, %v2769
    %v2771 = vpop.f32.mrf.mxu0
    %v2772 = vadd.f32 0.0, %v2771
    %2773 = vdwg.mxu0
    %2774 = vmatprep.subr.mxu0 0.0
    %2775 = vmatpush1.msra.mxu0 0.0
    %2776 = vmatprep.subr.mxu0 0.0
    %2777 = vmatpush1.msra.mxu0 0.0
    %2778 = vmatprep.subr.mxu0 0.0
    %2779 = vmatpush1.msra.mxu0 0.0
    %2780 = vmatprep.subr.mxu0 0.0
    %2781 = vmatpush1.msra.mxu0 0.0
    %2782 = vmatprep.subr.mxu0 0.0
    %2783 = vmatpush1.msra.mxu0 0.0
    %2784 = vmatprep.subr.mxu0 0.0
    %2785 = vmatpush1.msra.mxu0 0.0
    %2786 = vmatprep.subr.mxu0 0.0
    %2787 = vmatpush1.msra.mxu0 0.0
    %2788 = vmatprep.subr.mxu0 0.0
    %2789 = vmatpush1.msra.mxu0 0.0
    %2790 = vmatprep.subr.mxu0 %v494
    %2791 = vmatpush1.msra.mxu0 %v493
    %2792 = vmatprep.subr.mxu0 %v492
    %2793 = vmatpush1.msra.mxu0 %v491
    %2794 = vmatprep.subr.mxu0 %v490
    %2795 = vmatpush1.msra.mxu0 %v489
    %2796 = vmatprep.subr.mxu0 %v488
    %2797 = vmatpush1.msra.mxu0 %v487
    %2798 = vmatprep.subr.mxu0 %v486
    %2799 = vmatpush1.msra.mxu0 %v485
    %2800 = vmatprep.subr.mxu0 %v484
    %2801 = vmatpush1.msra.mxu0 %v483
    %2802 = vmatprep.subr.mxu0 %v482
    %2803 = vmatpush1.msra.mxu0 %v481
    %2804 = vmatprep.subr.mxu0 %v480
    %2805 = vmatpush1.msra.mxu0 %v479
    %2806 = vmatprep.subr.mxu0 0.0
    %2807 = vmatpush2.msra.mxu0 0.0
    %2808 = vmatprep.subr.mxu0 0.0
    %2809 = vmatpush2.msra.mxu0 0.0
    %2810 = vmatprep.subr.mxu0 0.0
    %2811 = vmatpush2.msra.mxu0 0.0
    %2812 = vmatprep.subr.mxu0 0.0
    %2813 = vmatpush2.msra.mxu0 0.0
    %2814 = vmatprep.subr.mxu0 0.0
    %2815 = vmatpush2.msra.mxu0 0.0
    %2816 = vmatprep.subr.mxu0 0.0
    %2817 = vmatpush2.msra.mxu0 0.0
    %2818 = vmatprep.subr.mxu0 0.0
    %2819 = vmatpush2.msra.mxu0 0.0
    %2820 = vmatprep.subr.mxu0 0.0
    %2821 = vmatpush2.msra.mxu0 0.0
    %2822 = vmatprep.subr.mxu0 0.0
    %2823 = vmatpush2.msra.mxu0 0.0
    %2824 = vmatprep.subr.mxu0 0.0
    %2825 = vmatpush2.msra.mxu0 0.0
    %2826 = vmatprep.subr.mxu0 0.0
    %2827 = vmatpush2.msra.mxu0 0.0
    %2828 = vmatprep.subr.mxu0 0.0
    %2829 = vmatpush2.msra.mxu0 0.0
    %2830 = vmatprep.subr.mxu0 0.0
    %2831 = vmatpush2.msra.mxu0 0.0
    %2832 = vmatprep.subr.mxu0 0.0
    %2833 = vmatpush2.msra.mxu0 0.0
    %2834 = vmatprep.subr.mxu0 0.0
    %2835 = vmatpush2.msra.mxu0 0.0
    %2836 = vmatprep.subr.mxu0 0.0
    %2837 = vmatpush2.msra.mxu0 0.0
    %2838 = vmatprep.mubr.f32.mxu0 0.0
    %2839 = vmatmul.mubr.f32.gmra.mxu0 %v1177
    %v2840 = vpop.f32.mrf.mxu0
    %v2841 = vadd.f32 %v2770, %v2840
    %v2842 = vpop.f32.mrf.mxu0
    %v2843 = vadd.f32 %v2772, %v2842
    %2844 = vdwg.mxu0
    %v2845 = vadd.f32 %v2841, %v22
    %v2846 = vadd.f32 %v2843, %v26
    %2848 = vrot.lane.b32.xlu0 %v2702, 64
    %v2849 = vpop.permute.xlu0 %2848
    %v2850 = vsel %vm172, %v2849, 0
    %2852 = vmatprep.subr.mxu0 0.0
    %2853 = vmatpush1.msra.mxu0 0.0
    %2854 = vmatprep.subr.mxu0 0.0
    %2855 = vmatpush1.msra.mxu0 0.0
    %2856 = vmatprep.subr.mxu0 0.0
    %2857 = vmatpush1.msra.mxu0 0.0
    %2858 = vmatprep.subr.mxu0 0.0
    %2859 = vmatpush1.msra.mxu0 0.0
    %2860 = vmatprep.subr.mxu0 0.0
    %2861 = vmatpush1.msra.mxu0 0.0
    %2862 = vmatprep.subr.mxu0 0.0
    %2863 = vmatpush1.msra.mxu0 0.0
    %2864 = vmatprep.subr.mxu0 0.0
    %2865 = vmatpush1.msra.mxu0 0.0
    %2866 = vmatprep.subr.mxu0 0.0
    %2867 = vmatpush1.msra.mxu0 0.0
    %2868 = vmatprep.subr.mxu0 %v478
    %2869 = vmatpush1.msra.mxu0 %v477
    %2870 = vmatprep.subr.mxu0 %v476
    %2871 = vmatpush1.msra.mxu0 %v475
    %2872 = vmatprep.subr.mxu0 %v474
    %2873 = vmatpush1.msra.mxu0 %v473
    %2874 = vmatprep.subr.mxu0 %v472
    %2875 = vmatpush1.msra.mxu0 %v471
    %2876 = vmatprep.subr.mxu0 %v470
    %2877 = vmatpush1.msra.mxu0 %v469
    %2878 = vmatprep.subr.mxu0 %v468
    %2879 = vmatpush1.msra.mxu0 %v467
    %2880 = vmatprep.subr.mxu0 %v466
    %2881 = vmatpush1.msra.mxu0 %v465
    %2882 = vmatprep.subr.mxu0 %v464
    %2883 = vmatpush1.msra.mxu0 %v463
    %2884 = vmatprep.subr.mxu0 0.0
    %2885 = vmatpush2.msra.mxu0 0.0
    %2886 = vmatprep.subr.mxu0 0.0
    %2887 = vmatpush2.msra.mxu0 0.0
    %2888 = vmatprep.subr.mxu0 0.0
    %2889 = vmatpush2.msra.mxu0 0.0
    %2890 = vmatprep.subr.mxu0 0.0
    %2891 = vmatpush2.msra.mxu0 0.0
    %2892 = vmatprep.subr.mxu0 0.0
    %2893 = vmatpush2.msra.mxu0 0.0
    %2894 = vmatprep.subr.mxu0 0.0
    %2895 = vmatpush2.msra.mxu0 0.0
    %2896 = vmatprep.subr.mxu0 0.0
    %2897 = vmatpush2.msra.mxu0 0.0
    %2898 = vmatprep.subr.mxu0 0.0
    %2899 = vmatpush2.msra.mxu0 0.0
    %2900 = vmatprep.subr.mxu0 0.0
    %2901 = vmatpush2.msra.mxu0 0.0
    %2902 = vmatprep.subr.mxu0 0.0
    %2903 = vmatpush2.msra.mxu0 0.0
    %2904 = vmatprep.subr.mxu0 0.0
    %2905 = vmatpush2.msra.mxu0 0.0
    %2906 = vmatprep.subr.mxu0 0.0
    %2907 = vmatpush2.msra.mxu0 0.0
    %2908 = vmatprep.subr.mxu0 0.0
    %2909 = vmatpush2.msra.mxu0 0.0
    %2910 = vmatprep.subr.mxu0 0.0
    %2911 = vmatpush2.msra.mxu0 0.0
    %2912 = vmatprep.subr.mxu0 0.0
    %2913 = vmatpush2.msra.mxu0 0.0
    %2914 = vmatprep.subr.mxu0 0.0
    %2915 = vmatpush2.msra.mxu0 0.0
    %2916 = vmatprep.mubr.f32.mxu0 0.0
    %2917 = vmatmul.mubr.f32.gmra.mxu0 %v2850
    %v2918 = vpop.f32.mrf.mxu0
    %v2919 = vadd.f32 0.0, %v2918
    %v2920 = vpop.f32.mrf.mxu0
    %v2921 = vadd.f32 0.0, %v2920
    %2922 = vdwg.mxu0
    %v2923 = vadd.f32 %v2845, %v2919
    %v2924 = vxor.u32 %v2923, 2147483648
    %v2925 = vmul.f32 %v2924, 1.442695
    %v2926 = vpow.pop %v2925
    %v2927 = vadd.f32 %v2926, 1.0
    %v2928 = vrcp.pop %v2927
    %v2929 = vmul.f32 1.0, %v2928
    %v2930 = vadd.f32 %v2921, %v29
    %v2931 = vmul.f32 %v2929, %v2930
    %v2932 = vadd.f32 %v2846, %v2931
    %v2933 = vtanh.pop %v2932
    %v2934 = vsub.f32 1.0, %v2929
    %2936 = vrot.lane.b32.xlu0 %v2933, 64
    %v2937 = vpop.permute.xlu0 %2936
    %v2939 = vmul.f32 %v2934, %v2937
    %v2940 = vmul.f32 %v2929, %v2702
    %v2941 = vadd.f32 %v2939, %v2940
    %2942 = vmatprep.subr.mxu0 0.0
    %2943 = vmatpush1.msra.mxu0 0.0
    %2944 = vmatprep.subr.mxu0 0.0
    %2945 = vmatpush1.msra.mxu0 0.0
    %2946 = vmatprep.subr.mxu0 0.0
    %2947 = vmatpush1.msra.mxu0 0.0
    %2948 = vmatprep.subr.mxu0 0.0
    %2949 = vmatpush1.msra.mxu0 0.0
    %2950 = vmatprep.subr.mxu0 0.0
    %2951 = vmatpush1.msra.mxu0 0.0
    %2952 = vmatprep.subr.mxu0 0.0
    %2953 = vmatpush1.msra.mxu0 0.0
    %2954 = vmatprep.subr.mxu0 0.0
    %2955 = vmatpush1.msra.mxu0 0.0
    %2956 = vmatprep.subr.mxu0 0.0
    %2957 = vmatpush1.msra.mxu0 0.0
    %2958 = vmatprep.subr.mxu0 %v510
    %2959 = vmatpush1.msra.mxu0 %v509
    %2960 = vmatprep.subr.mxu0 %v508
    %2961 = vmatpush1.msra.mxu0 %v507
    %2962 = vmatprep.subr.mxu0 %v506
    %2963 = vmatpush1.msra.mxu0 %v505
    %2964 = vmatprep.subr.mxu0 %v504
    %2965 = vmatpush1.msra.mxu0 %v503
    %2966 = vmatprep.subr.mxu0 %v502
    %2967 = vmatpush1.msra.mxu0 %v501
    %2968 = vmatprep.subr.mxu0 %v500
    %2969 = vmatpush1.msra.mxu0 %v499
    %2970 = vmatprep.subr.mxu0 %v498
    %2971 = vmatpush1.msra.mxu0 %v497
    %2972 = vmatprep.subr.mxu0 %v496
    %2973 = vmatpush1.msra.mxu0 %v495
    %2974 = vmatprep.subr.mxu0 0.0
    %2975 = vmatpush2.msra.mxu0 0.0
    %2976 = vmatprep.subr.mxu0 0.0
    %2977 = vmatpush2.msra.mxu0 0.0
    %2978 = vmatprep.subr.mxu0 0.0
    %2979 = vmatpush2.msra.mxu0 0.0
    %2980 = vmatprep.subr.mxu0 0.0
    %2981 = vmatpush2.msra.mxu0 0.0
    %2982 = vmatprep.subr.mxu0 0.0
    %2983 = vmatpush2.msra.mxu0 0.0
    %2984 = vmatprep.subr.mxu0 0.0
    %2985 = vmatpush2.msra.mxu0 0.0
    %2986 = vmatprep.subr.mxu0 0.0
    %2987 = vmatpush2.msra.mxu0 0.0
    %2988 = vmatprep.subr.mxu0 0.0
    %2989 = vmatpush2.msra.mxu0 0.0
    %2990 = vmatprep.subr.mxu0 0.0
    %2991 = vmatpush2.msra.mxu0 0.0
    %2992 = vmatprep.subr.mxu0 0.0
    %2993 = vmatpush2.msra.mxu0 0.0
    %2994 = vmatprep.subr.mxu0 0.0
    %2995 = vmatpush2.msra.mxu0 0.0
    %2996 = vmatprep.subr.mxu0 0.0
    %2997 = vmatpush2.msra.mxu0 0.0
    %2998 = vmatprep.subr.mxu0 0.0
    %2999 = vmatpush2.msra.mxu0 0.0
    %3000 = vmatprep.subr.mxu0 0.0
    %3001 = vmatpush2.msra.mxu0 0.0
    %3002 = vmatprep.subr.mxu0 0.0
    %3003 = vmatpush2.msra.mxu0 0.0
    %3004 = vmatprep.subr.mxu0 0.0
    %3005 = vmatpush2.msra.mxu0 0.0
    %3006 = vmatprep.mubr.f32.mxu0 0.0
    %3007 = vmatmul.mubr.f32.gmra.mxu0 %v607
    %v3008 = vpop.f32.mrf.mxu0
    %v3009 = vadd.f32 0.0, %v3008
    %v3010 = vpop.f32.mrf.mxu0
    %v3011 = vadd.f32 0.0, %v3010
    %3012 = vdwg.mxu0
    %3013 = vmatprep.subr.mxu0 0.0
    %3014 = vmatpush1.msra.mxu0 0.0
    %3015 = vmatprep.subr.mxu0 0.0
    %3016 = vmatpush1.msra.mxu0 0.0
    %3017 = vmatprep.subr.mxu0 0.0
    %3018 = vmatpush1.msra.mxu0 0.0
    %3019 = vmatprep.subr.mxu0 0.0
    %3020 = vmatpush1.msra.mxu0 0.0
    %3021 = vmatprep.subr.mxu0 0.0
    %3022 = vmatpush1.msra.mxu0 0.0
    %3023 = vmatprep.subr.mxu0 0.0
    %3024 = vmatpush1.msra.mxu0 0.0
    %3025 = vmatprep.subr.mxu0 0.0
    %3026 = vmatpush1.msra.mxu0 0.0
    %3027 = vmatprep.subr.mxu0 0.0
    %3028 = vmatpush1.msra.mxu0 0.0
    %3029 = vmatprep.subr.mxu0 %v494
    %3030 = vmatpush1.msra.mxu0 %v493
    %3031 = vmatprep.subr.mxu0 %v492
    %3032 = vmatpush1.msra.mxu0 %v491
    %3033 = vmatprep.subr.mxu0 %v490
    %3034 = vmatpush1.msra.mxu0 %v489
    %3035 = vmatprep.subr.mxu0 %v488
    %3036 = vmatpush1.msra.mxu0 %v487
    %3037 = vmatprep.subr.mxu0 %v486
    %3038 = vmatpush1.msra.mxu0 %v485
    %3039 = vmatprep.subr.mxu0 %v484
    %3040 = vmatpush1.msra.mxu0 %v483
    %3041 = vmatprep.subr.mxu0 %v482
    %3042 = vmatpush1.msra.mxu0 %v481
    %3043 = vmatprep.subr.mxu0 %v480
    %3044 = vmatpush1.msra.mxu0 %v479
    %3045 = vmatprep.subr.mxu0 0.0
    %3046 = vmatpush2.msra.mxu0 0.0
    %3047 = vmatprep.subr.mxu0 0.0
    %3048 = vmatpush2.msra.mxu0 0.0
    %3049 = vmatprep.subr.mxu0 0.0
    %3050 = vmatpush2.msra.mxu0 0.0
    %3051 = vmatprep.subr.mxu0 0.0
    %3052 = vmatpush2.msra.mxu0 0.0
    %3053 = vmatprep.subr.mxu0 0.0
    %3054 = vmatpush2.msra.mxu0 0.0
    %3055 = vmatprep.subr.mxu0 0.0
    %3056 = vmatpush2.msra.mxu0 0.0
    %3057 = vmatprep.subr.mxu0 0.0
    %3058 = vmatpush2.msra.mxu0 0.0
    %3059 = vmatprep.subr.mxu0 0.0
    %3060 = vmatpush2.msra.mxu0 0.0
    %3061 = vmatprep.subr.mxu0 0.0
    %3062 = vmatpush2.msra.mxu0 0.0
    %3063 = vmatprep.subr.mxu0 0.0
    %3064 = vmatpush2.msra.mxu0 0.0
    %3065 = vmatprep.subr.mxu0 0.0
    %3066 = vmatpush2.msra.mxu0 0.0
    %3067 = vmatprep.subr.mxu0 0.0
    %3068 = vmatpush2.msra.mxu0 0.0
    %3069 = vmatprep.subr.mxu0 0.0
    %3070 = vmatpush2.msra.mxu0 0.0
    %3071 = vmatprep.subr.mxu0 0.0
    %3072 = vmatpush2.msra.mxu0 0.0
    %3073 = vmatprep.subr.mxu0 0.0
    %3074 = vmatpush2.msra.mxu0 0.0
    %3075 = vmatprep.subr.mxu0 0.0
    %3076 = vmatpush2.msra.mxu0 0.0
    %3077 = vmatprep.mubr.f32.mxu0 0.0
    %3078 = vmatmul.mubr.f32.gmra.mxu0 %v1272
    %v3079 = vpop.f32.mrf.mxu0
    %v3080 = vadd.f32 %v3009, %v3079
    %v3081 = vpop.f32.mrf.mxu0
    %v3082 = vadd.f32 %v3011, %v3081
    %3083 = vdwg.mxu0
    %v3084 = vadd.f32 %v3080, %v22
    %v3085 = vadd.f32 %v3082, %v26
    %3087 = vrot.lane.b32.xlu0 %v2941, 64
    %v3088 = vpop.permute.xlu0 %3087
    %v3089 = vsel %vm172, %v3088, 0
    %3091 = vmatprep.subr.mxu0 0.0
    %3092 = vmatpush1.msra.mxu0 0.0
    %3093 = vmatprep.subr.mxu0 0.0
    %3094 = vmatpush1.msra.mxu0 0.0
    %3095 = vmatprep.subr.mxu0 0.0
    %3096 = vmatpush1.msra.mxu0 0.0
    %3097 = vmatprep.subr.mxu0 0.0
    %3098 = vmatpush1.msra.mxu0 0.0
    %3099 = vmatprep.subr.mxu0 0.0
    %3100 = vmatpush1.msra.mxu0 0.0
    %3101 = vmatprep.subr.mxu0 0.0
    %3102 = vmatpush1.msra.mxu0 0.0
    %3103 = vmatprep.subr.mxu0 0.0
    %3104 = vmatpush1.msra.mxu0 0.0
    %3105 = vmatprep.subr.mxu0 0.0
    %3106 = vmatpush1.msra.mxu0 0.0
    %3107 = vmatprep.subr.mxu0 %v478
    %3108 = vmatpush1.msra.mxu0 %v477
    %3109 = vmatprep.subr.mxu0 %v476
    %3110 = vmatpush1.msra.mxu0 %v475
    %3111 = vmatprep.subr.mxu0 %v474
    %3112 = vmatpush1.msra.mxu0 %v473
    %3113 = vmatprep.subr.mxu0 %v472
    %3114 = vmatpush1.msra.mxu0 %v471
    %3115 = vmatprep.subr.mxu0 %v470
    %3116 = vmatpush1.msra.mxu0 %v469
    %3117 = vmatprep.subr.mxu0 %v468
    %3118 = vmatpush1.msra.mxu0 %v467
    %3119 = vmatprep.subr.mxu0 %v466
    %3120 = vmatpush1.msra.mxu0 %v465
    %3121 = vmatprep.subr.mxu0 %v464
    %3122 = vmatpush1.msra.mxu0 %v463
    %3123 = vmatprep.subr.mxu0 0.0
    %3124 = vmatpush2.msra.mxu0 0.0
    %3125 = vmatprep.subr.mxu0 0.0
    %3126 = vmatpush2.msra.mxu0 0.0
    %3127 = vmatprep.subr.mxu0 0.0
    %3128 = vmatpush2.msra.mxu0 0.0
    %3129 = vmatprep.subr.mxu0 0.0
    %3130 = vmatpush2.msra.mxu0 0.0
    %3131 = vmatprep.subr.mxu0 0.0
    %3132 = vmatpush2.msra.mxu0 0.0
    %3133 = vmatprep.subr.mxu0 0.0
    %3134 = vmatpush2.msra.mxu0 0.0
    %3135 = vmatprep.subr.mxu0 0.0
    %3136 = vmatpush2.msra.mxu0 0.0
    %3137 = vmatprep.subr.mxu0 0.0
    %3138 = vmatpush2.msra.mxu0 0.0
    %3139 = vmatprep.subr.mxu0 0.0
    %3140 = vmatpush2.msra.mxu0 0.0
    %3141 = vmatprep.subr.mxu0 0.0
    %3142 = vmatpush2.msra.mxu0 0.0
    %3143 = vmatprep.subr.mxu0 0.0
    %3144 = vmatpush2.msra.mxu0 0.0
    %3145 = vmatprep.subr.mxu0 0.0
    %3146 = vmatpush2.msra.mxu0 0.0
    %3147 = vmatprep.subr.mxu0 0.0
    %3148 = vmatpush2.msra.mxu0 0.0
    %3149 = vmatprep.subr.mxu0 0.0
    %3150 = vmatpush2.msra.mxu0 0.0
    %3151 = vmatprep.subr.mxu0 0.0
    %3152 = vmatpush2.msra.mxu0 0.0
    %3153 = vmatprep.subr.mxu0 0.0
    %3154 = vmatpush2.msra.mxu0 0.0
    %3155 = vmatprep.mubr.f32.mxu0 0.0
    %3156 = vmatmul.mubr.f32.gmra.mxu0 %v3089
    %v3157 = vpop.f32.mrf.mxu0
    %v3158 = vadd.f32 0.0, %v3157
    %v3159 = vpop.f32.mrf.mxu0
    %v3160 = vadd.f32 0.0, %v3159
    %3161 = vdwg.mxu0
    %v3162 = vadd.f32 %v3084, %v3158
    %v3163 = vxor.u32 %v3162, 2147483648
    %v3164 = vmul.f32 %v3163, 1.442695
    %v3165 = vpow.pop %v3164
    %v3166 = vadd.f32 %v3165, 1.0
    %v3167 = vrcp.pop %v3166
    %v3168 = vmul.f32 1.0, %v3167
    %v3169 = vadd.f32 %v3160, %v29
    %v3170 = vmul.f32 %v3168, %v3169
    %v3171 = vadd.f32 %v3085, %v3170
    %v3172 = vtanh.pop %v3171
    %v3173 = vsub.f32 1.0, %v3168
    %3175 = vrot.lane.b32.xlu0 %v3172, 64
    %v3176 = vpop.permute.xlu0 %3175
    %v3178 = vmul.f32 %v3173, %v3176
    %v3179 = vmul.f32 %v3168, %v2941
    %v3180 = vadd.f32 %v3178, %v3179
    %v3181 = vld [vmem:[%s2] sm:$0xff]
    %v3182 = vld [vmem:[%s2 + $0x8] sm:$0xff]
    %v3183 = vld [vmem:[%s2 + $0x10] sm:$0xff]
    %v3184 = vld [vmem:[%s2 + $0x18] sm:$0xff]
    %v3185 = vld [vmem:[%s2 + $0x20] sm:$0xff]
    %v3186 = vld [vmem:[%s2 + $0x28] sm:$0xff]
    %v3187 = vld [vmem:[%s2 + $0x30] sm:$0xff]
    %v3188 = vld [vmem:[%s2 + $0x38] sm:$0xff]
    %v3189 = vld [vmem:[%s2 + $0x40] sm:$0xff]
    %v3190 = vld [vmem:[%s2 + $0x48] sm:$0xff]
    %v3191 = vld [vmem:[%s2 + $0x50] sm:$0xff]
    %v3192 = vld [vmem:[%s2 + $0x58] sm:$0xff]
    %v3193 = vld [vmem:[%s2 + $0x60] sm:$0xff]
    %v3194 = vld [vmem:[%s2 + $0x68] sm:$0xff]
    %v3195 = vld [vmem:[%s2 + $0x70] sm:$0xff]
    %v3196 = vld [vmem:[%s2 + $0x78] sm:$0xff]
    %3198 = vrot.lane.b32.xlu0 %v3180, 64
    %v3199 = vpop.permute.xlu0 %3198
    %v3200 = vsel %vm172, %v3199, 0
    %3202 = vmatprep.subr.mxu0 0.0
    %3203 = vmatpush1.msra.mxu0 0.0
    %3204 = vmatprep.subr.mxu0 0.0
    %3205 = vmatpush1.msra.mxu0 0.0
    %3206 = vmatprep.subr.mxu0 0.0
    %3207 = vmatpush1.msra.mxu0 0.0
    %3208 = vmatprep.subr.mxu0 0.0
    %3209 = vmatpush1.msra.mxu0 0.0
    %3210 = vmatprep.subr.mxu0 0.0
    %3211 = vmatpush1.msra.mxu0 0.0
    %3212 = vmatprep.subr.mxu0 0.0
    %3213 = vmatpush1.msra.mxu0 0.0
    %3214 = vmatprep.subr.mxu0 0.0
    %3215 = vmatpush1.msra.mxu0 0.0
    %3216 = vmatprep.subr.mxu0 0.0
    %3217 = vmatpush1.msra.mxu0 0.0
    %3218 = vmatprep.subr.mxu0 0.0
    %3219 = vmatpush1.msra.mxu0 %v3196
    %3220 = vmatprep.subr.mxu0 0.0
    %3221 = vmatpush1.msra.mxu0 %v3195
    %3222 = vmatprep.subr.mxu0 0.0
    %3223 = vmatpush1.msra.mxu0 %v3194
    %3224 = vmatprep.subr.mxu0 0.0
    %3225 = vmatpush1.msra.mxu0 %v3193
    %3226 = vmatprep.subr.mxu0 0.0
    %3227 = vmatpush1.msra.mxu0 %v3192
    %3228 = vmatprep.subr.mxu0 0.0
    %3229 = vmatpush1.msra.mxu0 %v3191
    %3230 = vmatprep.subr.mxu0 0.0
    %3231 = vmatpush1.msra.mxu0 %v3190
    %3232 = vmatprep.subr.mxu0 0.0
    %3233 = vmatpush1.msra.mxu0 %v3189
    %3234 = vmatprep.subr.mxu0 0.0
    %3235 = vmatpush2.msra.mxu0 0.0
    %3236 = vmatprep.subr.mxu0 0.0
    %3237 = vmatpush2.msra.mxu0 0.0
    %3238 = vmatprep.subr.mxu0 0.0
    %3239 = vmatpush2.msra.mxu0 0.0
    %3240 = vmatprep.subr.mxu0 0.0
    %3241 = vmatpush2.msra.mxu0 0.0
    %3242 = vmatprep.subr.mxu0 0.0
    %3243 = vmatpush2.msra.mxu0 0.0
    %3244 = vmatprep.subr.mxu0 0.0
    %3245 = vmatpush2.msra.mxu0 0.0
    %3246 = vmatprep.subr.mxu0 0.0
    %3247 = vmatpush2.msra.mxu0 0.0
    %3248 = vmatprep.subr.mxu0 0.0
    %3249 = vmatpush2.msra.mxu0 0.0
    %3250 = vmatprep.subr.mxu0 0.0
    %3251 = vmatpush2.msra.mxu0 0.0
    %3252 = vmatprep.subr.mxu0 0.0
    %3253 = vmatpush2.msra.mxu0 0.0
    %3254 = vmatprep.subr.mxu0 0.0
    %3255 = vmatpush2.msra.mxu0 0.0
    %3256 = vmatprep.subr.mxu0 0.0
    %3257 = vmatpush2.msra.mxu0 0.0
    %3258 = vmatprep.subr.mxu0 0.0
    %3259 = vmatpush2.msra.mxu0 0.0
    %3260 = vmatprep.subr.mxu0 0.0
    %3261 = vmatpush2.msra.mxu0 0.0
    %3262 = vmatprep.subr.mxu0 0.0
    %3263 = vmatpush2.msra.mxu0 0.0
    %3264 = vmatprep.subr.mxu0 0.0
    %3265 = vmatpush2.msra.mxu0 0.0
    %3266 = vmatprep.mubr.f32.mxu0 0.0
    %3267 = vmatmul.mubr.f32.gmra.mxu0 %v3200
    %v3268 = vpop.f32.mrf.mxu0
    %v3269 = vadd.f32 0.0, %v3268
    %v3270 = vpop.f32.mrf.mxu0
    %3271 = vdwg.mxu0
    %3272 = vmatprep.subr.mxu0 0.0
    %3273 = vmatpush1.msra.mxu0 0.0
    %3274 = vmatprep.subr.mxu0 0.0
    %3275 = vmatpush1.msra.mxu0 0.0
    %3276 = vmatprep.subr.mxu0 0.0
    %3277 = vmatpush1.msra.mxu0 0.0
    %3278 = vmatprep.subr.mxu0 0.0
    %3279 = vmatpush1.msra.mxu0 0.0
    %3280 = vmatprep.subr.mxu0 0.0
    %3281 = vmatpush1.msra.mxu0 0.0
    %3282 = vmatprep.subr.mxu0 0.0
    %3283 = vmatpush1.msra.mxu0 0.0
    %3284 = vmatprep.subr.mxu0 0.0
    %3285 = vmatpush1.msra.mxu0 0.0
    %3286 = vmatprep.subr.mxu0 0.0
    %3287 = vmatpush1.msra.mxu0 0.0
    %3288 = vmatprep.subr.mxu0 0.0
    %3289 = vmatpush1.msra.mxu0 %v3188
    %3290 = vmatprep.subr.mxu0 0.0
    %3291 = vmatpush1.msra.mxu0 %v3187
    %3292 = vmatprep.subr.mxu0 0.0
    %3293 = vmatpush1.msra.mxu0 %v3186
    %3294 = vmatprep.subr.mxu0 0.0
    %3295 = vmatpush1.msra.mxu0 %v3185
    %3296 = vmatprep.subr.mxu0 0.0
    %3297 = vmatpush1.msra.mxu0 %v3184
    %3298 = vmatprep.subr.mxu0 0.0
    %3299 = vmatpush1.msra.mxu0 %v3183
    %3300 = vmatprep.subr.mxu0 0.0
    %3301 = vmatpush1.msra.mxu0 %v3182
    %3302 = vmatprep.subr.mxu0 0.0
    %3303 = vmatpush1.msra.mxu0 %v3181
    %3304 = vmatprep.subr.mxu0 0.0
    %3305 = vmatpush2.msra.mxu0 0.0
    %3306 = vmatprep.subr.mxu0 0.0
    %3307 = vmatpush2.msra.mxu0 0.0
    %3308 = vmatprep.subr.mxu0 0.0
    %3309 = vmatpush2.msra.mxu0 0.0
    %3310 = vmatprep.subr.mxu0 0.0
    %3311 = vmatpush2.msra.mxu0 0.0
    %3312 = vmatprep.subr.mxu0 0.0
    %3313 = vmatpush2.msra.mxu0 0.0
    %3314 = vmatprep.subr.mxu0 0.0
    %3315 = vmatpush2.msra.mxu0 0.0
    %3316 = vmatprep.subr.mxu0 0.0
    %3317 = vmatpush2.msra.mxu0 0.0
    %3318 = vmatprep.subr.mxu0 0.0
    %3319 = vmatpush2.msra.mxu0 0.0
    %3320 = vmatprep.subr.mxu0 0.0
    %3321 = vmatpush2.msra.mxu0 0.0
    %3322 = vmatprep.subr.mxu0 0.0
    %3323 = vmatpush2.msra.mxu0 0.0
    %3324 = vmatprep.subr.mxu0 0.0
    %3325 = vmatpush2.msra.mxu0 0.0
    %3326 = vmatprep.subr.mxu0 0.0
    %3327 = vmatpush2.msra.mxu0 0.0
    %3328 = vmatprep.subr.mxu0 0.0
    %3329 = vmatpush2.msra.mxu0 0.0
    %3330 = vmatprep.subr.mxu0 0.0
    %3331 = vmatpush2.msra.mxu0 0.0
    %3332 = vmatprep.subr.mxu0 0.0
    %3333 = vmatpush2.msra.mxu0 0.0
    %3334 = vmatprep.subr.mxu0 0.0
    %3335 = vmatpush2.msra.mxu0 0.0
    %3336 = vmatprep.mubr.f32.mxu0 0.0
    %3337 = vmatmul.mubr.f32.gmra.mxu0 %v1272
    %v3338 = vpop.f32.mrf.mxu0
    %v3339 = vadd.f32 %v3269, %v3338
    %v3340 = vpop.f32.mrf.mxu0
    %3341 = vdwg.mxu0
    %v3342 = vadd.f32 %v3339, %v30
    %v3343 = vxor.u32 %v3342, 2147483648
    %v3344 = vmul.f32 %v3343, 1.442695
    %v3345 = vpow.pop %v3344
    %v3346 = vadd.f32 %v3345, 1.0
    %v3347 = vrcp.pop %v3346
    %v3348 = vmul.f32 1.0, %v3347
    %v3349 = vld [vmem:[%s2 + $0x80] sm:$0xff]
    %v3350 = vld [vmem:[%s2 + $0x88] sm:$0xff]
    %v3351 = vld [vmem:[%s2 + $0x90] sm:$0xff]
    %v3352 = vld [vmem:[%s2 + $0x98] sm:$0xff]
    %vm3353 = vcmask 261120
    %v3355 = vsel %vm3353, %v3348, 0
    %3357 = vmatprep.subr.mxu0 0.0
    %3358 = vmatpush1.msra.mxu0 0.0
    %3359 = vmatprep.subr.mxu0 0.0
    %3360 = vmatpush1.msra.mxu0 0.0
    %3361 = vmatprep.subr.mxu0 0.0
    %3362 = vmatpush1.msra.mxu0 0.0
    %3363 = vmatprep.subr.mxu0 0.0
    %3364 = vmatpush1.msra.mxu0 0.0
    %3365 = vmatprep.subr.mxu0 0.0
    %3366 = vmatpush1.msra.mxu0 0.0
    %3367 = vmatprep.subr.mxu0 0.0
    %3368 = vmatpush1.msra.mxu0 0.0
    %3369 = vmatprep.subr.mxu0 0.0
    %3370 = vmatpush1.msra.mxu0 0.0
    %3371 = vmatprep.subr.mxu0 0.0
    %3372 = vmatpush1.msra.mxu0 0.0
    %3373 = vmatprep.subr.mxu0 0.0
    %3374 = vmatpush1.msra.mxu0 0.0
    %3375 = vmatprep.subr.mxu0 0.0
    %3376 = vmatpush1.msra.mxu0 0.0
    %3377 = vmatprep.subr.mxu0 0.0
    %3378 = vmatpush1.msra.mxu0 0.0
    %3379 = vmatprep.subr.mxu0 0.0
    %3380 = vmatpush1.msra.mxu0 0.0
    %3381 = vmatprep.subr.mxu0 0.0
    %3382 = vmatpush1.msra.mxu0 %v3352
    %3383 = vmatprep.subr.mxu0 0.0
    %3384 = vmatpush1.msra.mxu0 %v3351
    %3385 = vmatprep.subr.mxu0 0.0
    %3386 = vmatpush1.msra.mxu0 %v3350
    %3387 = vmatprep.subr.mxu0 0.0
    %3388 = vmatpush1.msra.mxu0 %v3349
    %3389 = vmatprep.subr.mxu0 0.0
    %3390 = vmatpush2.msra.mxu0 0.0
    %3391 = vmatprep.subr.mxu0 0.0
    %3392 = vmatpush2.msra.mxu0 0.0
    %3393 = vmatprep.subr.mxu0 0.0
    %3394 = vmatpush2.msra.mxu0 0.0
    %3395 = vmatprep.subr.mxu0 0.0
    %3396 = vmatpush2.msra.mxu0 0.0
    %3397 = vmatprep.subr.mxu0 0.0
    %3398 = vmatpush2.msra.mxu0 0.0
    %3399 = vmatprep.subr.mxu0 0.0
    %3400 = vmatpush2.msra.mxu0 0.0
    %3401 = vmatprep.subr.mxu0 0.0
    %3402 = vmatpush2.msra.mxu0 0.0
    %3403 = vmatprep.subr.mxu0 0.0
    %3404 = vmatpush2.msra.mxu0 0.0
    %3405 = vmatprep.subr.mxu0 0.0
    %3406 = vmatpush2.msra.mxu0 0.0
    %3407 = vmatprep.subr.mxu0 0.0
    %3408 = vmatpush2.msra.mxu0 0.0
    %3409 = vmatprep.subr.mxu0 0.0
    %3410 = vmatpush2.msra.mxu0 0.0
    %3411 = vmatprep.subr.mxu0 0.0
    %3412 = vmatpush2.msra.mxu0 0.0
    %3413 = vmatprep.subr.mxu0 0.0
    %3414 = vmatpush2.msra.mxu0 0.0
    %3415 = vmatprep.subr.mxu0 0.0
    %3416 = vmatpush2.msra.mxu0 0.0
    %3417 = vmatprep.subr.mxu0 0.0
    %3418 = vmatpush2.msra.mxu0 0.0
    %3419 = vmatprep.subr.mxu0 0.0
    %3420 = vmatpush2.msra.mxu0 0.0
    %3421 = vmatprep.mubr.f32.mxu0 0.0
    %3422 = vmatmul.mubr.f32.gmra.mxu0 %v3355
    %v3423 = vpop.f32.mrf.mxu0
    %v3424 = vadd.f32 %v31, %v3423
    %v3425 = vpop.f32.mrf.mxu0
    %3426 = vdwg.mxu0
    %v3427 = vxor.u32 %v3424, 2147483648
    %v3428 = vmul.f32 %v3427, 1.442695
    %v3429 = vpow.pop %v3428
    %v3430 = vadd.f32 %v3429, 1.0
    %v3431 = vrcp.pop %v3430
    %v3432 = vmul.f32 1.0, %v3431
    %v3433 = vld [vmem:[%s2 + $0xa0] sm:$0xff]
    %v3434 = vld [vmem:[%s2 + $0xa8] sm:$0xff]
    %v3435 = vld [vmem:[%s2 + $0xb0] sm:$0xff]
    %v3436 = vld [vmem:[%s2 + $0xb8] sm:$0xff]
    %v3437 = vld [vmem:[%s2 + $0xc0] sm:$0xff]
    %v3438 = vld [vmem:[%s2 + $0xc8] sm:$0xff]
    %v3439 = vld [vmem:[%s2 + $0xd0] sm:$0xff]
    %v3440 = vld [vmem:[%s2 + $0xd8] sm:$0xff]
    %v3442 = vrot.slane %v3432, 2
    %v3443 = vsel %vm3353, %v3442, 0
    %3445 = vmatprep.subr.mxu0 0.0
    %3446 = vmatpush1.msra.mxu0 0.0
    %3447 = vmatprep.subr.mxu0 0.0
    %3448 = vmatpush1.msra.mxu0 0.0
    %3449 = vmatprep.subr.mxu0 0.0
    %3450 = vmatpush1.msra.mxu0 0.0
    %3451 = vmatprep.subr.mxu0 0.0
    %3452 = vmatpush1.msra.mxu0 0.0
    %3453 = vmatprep.subr.mxu0 0.0
    %3454 = vmatpush1.msra.mxu0 0.0
    %3455 = vmatprep.subr.mxu0 0.0
    %3456 = vmatpush1.msra.mxu0 0.0
    %3457 = vmatprep.subr.mxu0 0.0
    %3458 = vmatpush1.msra.mxu0 0.0
    %3459 = vmatprep.subr.mxu0 0.0
    %3460 = vmatpush1.msra.mxu0 0.0
    %3461 = vmatprep.subr.mxu0 0.0
    %3462 = vmatpush1.msra.mxu0 0.0
    %3463 = vmatprep.subr.mxu0 0.0
    %3464 = vmatpush1.msra.mxu0 0.0
    %3465 = vmatprep.subr.mxu0 0.0
    %3466 = vmatpush1.msra.mxu0 0.0
    %3467 = vmatprep.subr.mxu0 0.0
    %3468 = vmatpush1.msra.mxu0 0.0
    %3469 = vmatprep.subr.mxu0 0.0
    %3470 = vmatpush1.msra.mxu0 %v3440
    %3471 = vmatprep.subr.mxu0 0.0
    %3472 = vmatpush1.msra.mxu0 %v3439
    %3473 = vmatprep.subr.mxu0 0.0
    %3474 = vmatpush1.msra.mxu0 %v3438
    %3475 = vmatprep.subr.mxu0 0.0
    %3476 = vmatpush1.msra.mxu0 %v3437
    %3477 = vmatprep.subr.mxu0 0.0
    %3478 = vmatpush2.msra.mxu0 0.0
    %3479 = vmatprep.subr.mxu0 0.0
    %3480 = vmatpush2.msra.mxu0 0.0
    %3481 = vmatprep.subr.mxu0 0.0
    %3482 = vmatpush2.msra.mxu0 0.0
    %3483 = vmatprep.subr.mxu0 0.0
    %3484 = vmatpush2.msra.mxu0 0.0
    %3485 = vmatprep.subr.mxu0 0.0
    %3486 = vmatpush2.msra.mxu0 0.0
    %3487 = vmatprep.subr.mxu0 0.0
    %3488 = vmatpush2.msra.mxu0 0.0
    %3489 = vmatprep.subr.mxu0 0.0
    %3490 = vmatpush2.msra.mxu0 0.0
    %3491 = vmatprep.subr.mxu0 0.0
    %3492 = vmatpush2.msra.mxu0 0.0
    %3493 = vmatprep.subr.mxu0 0.0
    %3494 = vmatpush2.msra.mxu0 0.0
    %3495 = vmatprep.subr.mxu0 0.0
    %3496 = vmatpush2.msra.mxu0 0.0
    %3497 = vmatprep.subr.mxu0 0.0
    %3498 = vmatpush2.msra.mxu0 0.0
    %3499 = vmatprep.subr.mxu0 0.0
    %3500 = vmatpush2.msra.mxu0 0.0
    %3501 = vmatprep.subr.mxu0 0.0
    %3502 = vmatpush2.msra.mxu0 0.0
    %3503 = vmatprep.subr.mxu0 0.0
    %3504 = vmatpush2.msra.mxu0 0.0
    %3505 = vmatprep.subr.mxu0 0.0
    %3506 = vmatpush2.msra.mxu0 0.0
    %3507 = vmatprep.subr.mxu0 0.0
    %3508 = vmatpush2.msra.mxu0 0.0
    %3509 = vmatprep.mubr.f32.mxu0 0.0
    %3510 = vmatmul.mubr.f32.gmra.mxu0 %v3443
    %v3511 = vpop.f32.mrf.mxu0
    %v3512 = vadd.f32 0.0, %v3511
    %v3513 = vpop.f32.mrf.mxu0
    %3514 = vdwg.mxu0
    %v3515 = vsel %vm3353, %v3432, 0
    %3517 = vmatprep.subr.mxu0 0.0
    %3518 = vmatpush1.msra.mxu0 0.0
    %3519 = vmatprep.subr.mxu0 0.0
    %3520 = vmatpush1.msra.mxu0 0.0
    %3521 = vmatprep.subr.mxu0 0.0
    %3522 = vmatpush1.msra.mxu0 0.0
    %3523 = vmatprep.subr.mxu0 0.0
    %3524 = vmatpush1.msra.mxu0 0.0
    %3525 = vmatprep.subr.mxu0 0.0
    %3526 = vmatpush1.msra.mxu0 0.0
    %3527 = vmatprep.subr.mxu0 0.0
    %3528 = vmatpush1.msra.mxu0 0.0
    %3529 = vmatprep.subr.mxu0 0.0
    %3530 = vmatpush1.msra.mxu0 0.0
    %3531 = vmatprep.subr.mxu0 0.0
    %3532 = vmatpush1.msra.mxu0 0.0
    %3533 = vmatprep.subr.mxu0 0.0
    %3534 = vmatpush1.msra.mxu0 0.0
    %3535 = vmatprep.subr.mxu0 0.0
    %3536 = vmatpush1.msra.mxu0 0.0
    %3537 = vmatprep.subr.mxu0 0.0
    %3538 = vmatpush1.msra.mxu0 0.0
    %3539 = vmatprep.subr.mxu0 0.0
    %3540 = vmatpush1.msra.mxu0 0.0
    %3541 = vmatprep.subr.mxu0 0.0
    %3542 = vmatpush1.msra.mxu0 %v3436
    %3543 = vmatprep.subr.mxu0 0.0
    %3544 = vmatpush1.msra.mxu0 %v3435
    %3545 = vmatprep.subr.mxu0 0.0
    %3546 = vmatpush1.msra.mxu0 %v3434
    %3547 = vmatprep.subr.mxu0 0.0
    %3548 = vmatpush1.msra.mxu0 %v3433
    %3549 = vmatprep.subr.mxu0 0.0
    %3550 = vmatpush2.msra.mxu0 0.0
    %3551 = vmatprep.subr.mxu0 0.0
    %3552 = vmatpush2.msra.mxu0 0.0
    %3553 = vmatprep.subr.mxu0 0.0
    %3554 = vmatpush2.msra.mxu0 0.0
    %3555 = vmatprep.subr.mxu0 0.0
    %3556 = vmatpush2.msra.mxu0 0.0
    %3557 = vmatprep.subr.mxu0 0.0
    %3558 = vmatpush2.msra.mxu0 0.0
    %3559 = vmatprep.subr.mxu0 0.0
    %3560 = vmatpush2.msra.mxu0 0.0
    %3561 = vmatprep.subr.mxu0 0.0
    %3562 = vmatpush2.msra.mxu0 0.0
    %3563 = vmatprep.subr.mxu0 0.0
    %3564 = vmatpush2.msra.mxu0 0.0
    %3565 = vmatprep.subr.mxu0 0.0
    %3566 = vmatpush2.msra.mxu0 0.0
    %3567 = vmatprep.subr.mxu0 0.0
    %3568 = vmatpush2.msra.mxu0 0.0
    %3569 = vmatprep.subr.mxu0 0.0
    %3570 = vmatpush2.msra.mxu0 0.0
    %3571 = vmatprep.subr.mxu0 0.0
    %3572 = vmatpush2.msra.mxu0 0.0
    %3573 = vmatprep.subr.mxu0 0.0
    %3574 = vmatpush2.msra.mxu0 0.0
    %3575 = vmatprep.subr.mxu0 0.0
    %3576 = vmatpush2.msra.mxu0 0.0
    %3577 = vmatprep.subr.mxu0 0.0
    %3578 = vmatpush2.msra.mxu0 0.0
    %3579 = vmatprep.subr.mxu0 0.0
    %3580 = vmatpush2.msra.mxu0 0.0
    %3581 = vmatprep.mubr.f32.mxu0 0.0
    %3582 = vmatmul.mubr.f32.gmra.mxu0 %v3515
    %v3583 = vpop.f32.mrf.mxu0
    %v3584 = vadd.f32 %v3512, %v3583
    %v3585 = vpop.f32.mrf.mxu0
    %3586 = vdwg.mxu0
    %v3587 = vld [vmem:[%s2 + $0xe0] sm:$0xff]
    %v3588 = vld [vmem:[%s2 + $0xe8] sm:$0xff]
    %v3589 = vld [vmem:[%s2 + $0xf0] sm:$0xff]
    %v3590 = vld [vmem:[%s2 + $0xf8] sm:$0xff]
    %v3591 = vrot.slane %v3432, 4
    %v3592 = vsel %vm3353, %v3591, 0
    %3594 = vmatprep.subr.mxu0 0.0
    %3595 = vmatpush1.msra.mxu0 0.0
    %3596 = vmatprep.subr.mxu0 0.0
    %3597 = vmatpush1.msra.mxu0 0.0
    %3598 = vmatprep.subr.mxu0 0.0
    %3599 = vmatpush1.msra.mxu0 0.0
    %3600 = vmatprep.subr.mxu0 0.0
    %3601 = vmatpush1.msra.mxu0 0.0
    %3602 = vmatprep.subr.mxu0 0.0
    %3603 = vmatpush1.msra.mxu0 0.0
    %3604 = vmatprep.subr.mxu0 0.0
    %3605 = vmatpush1.msra.mxu0 0.0
    %3606 = vmatprep.subr.mxu0 0.0
    %3607 = vmatpush1.msra.mxu0 0.0
    %3608 = vmatprep.subr.mxu0 0.0
    %3609 = vmatpush1.msra.mxu0 0.0
    %3610 = vmatprep.subr.mxu0 0.0
    %3611 = vmatpush1.msra.mxu0 0.0
    %3612 = vmatprep.subr.mxu0 0.0
    %3613 = vmatpush1.msra.mxu0 0.0
    %3614 = vmatprep.subr.mxu0 0.0
    %3615 = vmatpush1.msra.mxu0 0.0
    %3616 = vmatprep.subr.mxu0 0.0
    %3617 = vmatpush1.msra.mxu0 0.0
    %3618 = vmatprep.subr.mxu0 0.0
    %3619 = vmatpush1.msra.mxu0 %v3590
    %3620 = vmatprep.subr.mxu0 0.0
    %3621 = vmatpush1.msra.mxu0 %v3589
    %3622 = vmatprep.subr.mxu0 0.0
    %3623 = vmatpush1.msra.mxu0 %v3588
    %3624 = vmatprep.subr.mxu0 0.0
    %3625 = vmatpush1.msra.mxu0 %v3587
    %3626 = vmatprep.subr.mxu0 0.0
    %3627 = vmatpush2.msra.mxu0 0.0
    %3628 = vmatprep.subr.mxu0 0.0
    %3629 = vmatpush2.msra.mxu0 0.0
    %3630 = vmatprep.subr.mxu0 0.0
    %3631 = vmatpush2.msra.mxu0 0.0
    %3632 = vmatprep.subr.mxu0 0.0
    %3633 = vmatpush2.msra.mxu0 0.0
    %3634 = vmatprep.subr.mxu0 0.0
    %3635 = vmatpush2.msra.mxu0 0.0
    %3636 = vmatprep.subr.mxu0 0.0
    %3637 = vmatpush2.msra.mxu0 0.0
    %3638 = vmatprep.subr.mxu0 0.0
    %3639 = vmatpush2.msra.mxu0 0.0
    %3640 = vmatprep.subr.mxu0 0.0
    %3641 = vmatpush2.msra.mxu0 0.0
    %3642 = vmatprep.subr.mxu0 0.0
    %3643 = vmatpush2.msra.mxu0 0.0
    %3644 = vmatprep.subr.mxu0 0.0
    %3645 = vmatpush2.msra.mxu0 0.0
    %3646 = vmatprep.subr.mxu0 0.0
    %3647 = vmatpush2.msra.mxu0 0.0
    %3648 = vmatprep.subr.mxu0 0.0
    %3649 = vmatpush2.msra.mxu0 0.0
    %3650 = vmatprep.subr.mxu0 0.0
    %3651 = vmatpush2.msra.mxu0 0.0
    %3652 = vmatprep.subr.mxu0 0.0
    %3653 = vmatpush2.msra.mxu0 0.0
    %3654 = vmatprep.subr.mxu0 0.0
    %3655 = vmatpush2.msra.mxu0 0.0
    %3656 = vmatprep.subr.mxu0 0.0
    %3657 = vmatpush2.msra.mxu0 0.0
    %3658 = vmatprep.mubr.f32.mxu0 0.0
    %3659 = vmatmul.mubr.f32.gmra.mxu0 %v3592
    %v3660 = vpop.f32.mrf.mxu0
    %v3661 = vadd.f32 0.0, %v3660
    %v3662 = vpop.f32.mrf.mxu0
    %3663 = vdwg.mxu0
    %v3664 = vadd.f32 %v3584, %v3661
    %v3665 = vadd.f32 %v3664, %v32
    %v3666 = vxor.u32 %v3665, 2147483648
    %v3667 = vmul.f32 %v3666, 1.442695
    %v3668 = vpow.pop %v3667
    %v3669 = vadd.f32 %v3668, 1.0
    %v3670 = vrcp.pop %v3669
    %v3671 = vmul.f32 1.0, %v3670
    %v3672 = vld [vmem:[%s2 + $0x100] sm:$0xff]
    %v3673 = vld [vmem:[%s2 + $0x108] sm:$0xff]
    %v3674 = vld [vmem:[%s2 + $0x110] sm:$0xff]
    %v3675 = vld [vmem:[%s2 + $0x118] sm:$0xff]
    %v3677 = vsel %vm3353, %v3671, 0
    %3679 = vmatprep.subr.mxu0 0.0
    %3680 = vmatpush1.msra.mxu0 0.0
    %3681 = vmatprep.subr.mxu0 0.0
    %3682 = vmatpush1.msra.mxu0 0.0
    %3683 = vmatprep.subr.mxu0 0.0
    %3684 = vmatpush1.msra.mxu0 0.0
    %3685 = vmatprep.subr.mxu0 0.0
    %3686 = vmatpush1.msra.mxu0 0.0
    %3687 = vmatprep.subr.mxu0 0.0
    %3688 = vmatpush1.msra.mxu0 0.0
    %3689 = vmatprep.subr.mxu0 0.0
    %3690 = vmatpush1.msra.mxu0 0.0
    %3691 = vmatprep.subr.mxu0 0.0
    %3692 = vmatpush1.msra.mxu0 0.0
    %3693 = vmatprep.subr.mxu0 0.0
    %3694 = vmatpush1.msra.mxu0 0.0
    %3695 = vmatprep.subr.mxu0 0.0
    %3696 = vmatpush1.msra.mxu0 0.0
    %3697 = vmatprep.subr.mxu0 0.0
    %3698 = vmatpush1.msra.mxu0 0.0
    %3699 = vmatprep.subr.mxu0 0.0
    %3700 = vmatpush1.msra.mxu0 0.0
    %3701 = vmatprep.subr.mxu0 0.0
    %3702 = vmatpush1.msra.mxu0 0.0
    %3703 = vmatprep.subr.mxu0 0.0
    %3704 = vmatpush1.msra.mxu0 %v3675
    %3705 = vmatprep.subr.mxu0 0.0
    %3706 = vmatpush1.msra.mxu0 %v3674
    %3707 = vmatprep.subr.mxu0 0.0
    %3708 = vmatpush1.msra.mxu0 %v3673
    %3709 = vmatprep.subr.mxu0 0.0
    %3710 = vmatpush1.msra.mxu0 %v3672
    %3711 = vmatprep.subr.mxu0 0.0
    %3712 = vmatpush2.msra.mxu0 0.0
    %3713 = vmatprep.subr.mxu0 0.0
    %3714 = vmatpush2.msra.mxu0 0.0
    %3715 = vmatprep.subr.mxu0 0.0
    %3716 = vmatpush2.msra.mxu0 0.0
    %3717 = vmatprep.subr.mxu0 0.0
    %3718 = vmatpush2.msra.mxu0 0.0
    %3719 = vmatprep.subr.mxu0 0.0
    %3720 = vmatpush2.msra.mxu0 0.0
    %3721 = vmatprep.subr.mxu0 0.0
    %3722 = vmatpush2.msra.mxu0 0.0
    %3723 = vmatprep.subr.mxu0 0.0
    %3724 = vmatpush2.msra.mxu0 0.0
    %3725 = vmatprep.subr.mxu0 0.0
    %3726 = vmatpush2.msra.mxu0 0.0
    %3727 = vmatprep.subr.mxu0 0.0
    %3728 = vmatpush2.msra.mxu0 0.0
    %3729 = vmatprep.subr.mxu0 0.0
    %3730 = vmatpush2.msra.mxu0 0.0
    %3731 = vmatprep.subr.mxu0 0.0
    %3732 = vmatpush2.msra.mxu0 0.0
    %3733 = vmatprep.subr.mxu0 0.0
    %3734 = vmatpush2.msra.mxu0 0.0
    %3735 = vmatprep.subr.mxu0 0.0
    %3736 = vmatpush2.msra.mxu0 0.0
    %3737 = vmatprep.subr.mxu0 0.0
    %3738 = vmatpush2.msra.mxu0 0.0
    %3739 = vmatprep.subr.mxu0 0.0
    %3740 = vmatpush2.msra.mxu0 0.0
    %3741 = vmatprep.subr.mxu0 0.0
    %3742 = vmatpush2.msra.mxu0 0.0
    %3743 = vmatprep.mubr.f32.mxu0 0.0
    %3744 = vmatmul.mubr.f32.gmra.mxu0 %v3677
    %v3745 = vpop.f32.mrf.mxu0
    %v3746 = vadd.f32 %v33, %v3745
    %v3747 = vpop.f32.mrf.mxu0
    %3748 = vdwg.mxu0
    %v3749 = vxor.u32 %v3746, 2147483648
    %v3750 = vmul.f32 %v3749, 1.442695
    %v3751 = vpow.pop %v3750
    %v3752 = vadd.f32 %v3751, 1.0
    %v3753 = vrcp.pop %v3752
    %v3754 = vmul.f32 1.0, %v3753
    %vm3755 = vcmask 9216
    %3756 = vst.msk [vmem:[#allocation2] sm:$0x3] %vm3755, %v3754
    // Predicated region
    $region14: #{rnn_net_forward.1} parent=1 // pred_check
      _
    $region15: #{rnn_net_forward.1} parent=1 // pred_check_branch
      %3758 = sbr.rel (0) target = $region17
    $region16: #{rnn_net_forward.1} parent=1 // pred_region
      %s3760 = ssub.s32 32, 32
      %3761 = vsyncadd [#allocation3], %s3760
      %s3763 = sshll.u32 [#allocation2], 4
      %s3764 = int_to_ptr.vmem [resolvable:$true] %s3763
      %3766 = dma.vmem_to_hbm [thread:$0]  %s3764, 32, %s3, [#allocation3]
    $region17: #{rnn_net_forward.1} parent=1 // pred_fallthru
      _
    // Predicated region
    $region18: #{rnn_net_forward.1} parent=1 // pred_check
      _
    $region19: #{rnn_net_forward.1} parent=1 // pred_check_branch
      %3768 = sbr.rel (0) target = $region21
    $region20: #{rnn_net_forward.1} parent=1 // pred_region
      %3769 = dma.done [#allocation3], 32
    $region21: #{rnn_net_forward.1} parent=1 // pred_fallthru
      _
    %3770 = vsyncpa [#allocation3], 1

</llo_original>
